<compile_context>
chip_gen: v7x
topology: tpu7x:2x2x1
jax: 0.10.0
libtpu: 0.0.40
codegen_flags: <defaults>
</compile_context>

<pallas_src>
import functools

import jax
import jax.numpy as jnp
from jax.experimental import pallas as pl
from jax.experimental.pallas import tpu as pltpu

NUM_CLASSES = 9
CONV_OUT = 32      # "real" conv output channels per backbone
FEAT = 128         # lane-dense feature width (CONV_OUT zero-padded to 128)


# -----------------------------------------------------------------------------
# Kernel 1: fused 3x3 conv + bias + ReLU + global-average-pool (one backbone)
#
#   grid = (N,)  -- one image per grid step; the batch axis is "parallel" so it
#   is software-pipelined and sharded across both TensorCores on v7x.
#
#   x_pad : [N, H+2, W+2, C] bf16   (padded once; activation read ONCE from HBM)
#   w     : [9, C, F]        bf16   (tap-major (kh, kw); F=128 lane-dense)
#   b     : [1, F]           f32
#   out   : [N, 1, F]        f32    (per-image pooled features)
# -----------------------------------------------------------------------------
def _conv_relu_gap_kernel(x_ref, w_ref, b_ref, o_ref, *, H, W, C, F):
    HW = H * W
    acc = jnp.zeros((HW, F), jnp.float32)
    # 3x3 conv as 9 accumulated channel-contraction matmuls over shifted taps
    # of the VMEM-resident padded tile (bf16 operands, f32 accumulation).
    for kh in range(3):
        for kw in range(3):
            tap = x_ref[0, pl.ds(kh, H), pl.ds(kw, W), :]        # (H, W, C) bf16
            tap2d = tap.reshape(HW, C)
            wk = w_ref[kh * 3 + kw]                              # (C, F) bf16
            acc = acc + jnp.dot(tap2d, wk,
                                preferred_element_type=jnp.float32)
    acc = jnp.maximum(acc + b_ref[...], 0.0)                     # bias + ReLU
    # GAP as a ones-vector matmul so the reduction rides the MXU, not the XLU.
    ones = jnp.ones((1, HW), jnp.float32)
    pooled = jnp.dot(ones, acc, preferred_element_type=jnp.float32) * (1.0 / HW)
    o_ref[...] = pooled.reshape(1, 1, F)


def conv_relu_gap(x_nhwc, conv_w, conv_b, feat_width=FEAT):
    """3x3 same-conv + bias + ReLU + GAP.  Returns [N, feat_width] f32."""
    N, H, W, C = x_nhwc.shape
    cout = conv_w.shape[-1]
    F = feat_width
    # Zero-pad output channels to a lane-dense width (multiple of 128) so every
    # matmul lane / store is unmasked; padded channels stay exactly zero
    # (zero weights + zero bias -> ReLU -> 0), so logits are unchanged.
    w = jnp.pad(conv_w, ((0, 0), (0, 0), (0, 0), (0, F - cout)))
    w = w.reshape(9, C, F).astype(jnp.bfloat16)
    b = jnp.pad(conv_b, ((0, 0), (0, F - cout))).astype(jnp.float32)
    # Pad spatially once and stream the activation in bf16 (halves HBM read
    # bytes on the dominant stream; accumulation stays f32).
    x_pad = jnp.pad(x_nhwc, ((0, 0), (1, 1), (1, 1), (0, 0))).astype(jnp.bfloat16)

    # TODO(synk): for large H*W (e.g. 224x224 melanoma crops) additionally tile
    # the spatial axis with a 2-row halo (manual double-buffered DMA) so the
    # per-step working set stays well under v7x's 64 MiB VMEM.
    kernel = functools.partial(_conv_relu_gap_kernel, H=H, W=W, C=C, F=F)

    flops = 2 * N * H * W * 9 * C * F
    bytes_accessed = x_pad.size * 2 + w.size * 2 + b.size * 4 + N * F * 4

    out = pl.pallas_call(
        kernel,
        out_shape=jax.ShapeDtypeStruct((N, 1, F), jnp.float32),
        grid=(N,),
        in_specs=[
            pl.BlockSpec((1, H + 2, W + 2, C), lambda n: (n, 0, 0, 0)),
            pl.BlockSpec((9, C, F), lambda n: (0, 0, 0)),    # resident weights
            pl.BlockSpec((1, F), lambda n: (0, 0)),          # resident bias
        ],
        out_specs=pl.BlockSpec((1, 1, F), lambda n: (n, 0, 0)),
        compiler_params=pltpu.CompilerParams(
            dimension_semantics=("parallel",),
            vmem_limit_bytes=32 * 1024 * 1024,
        ),
        cost_estimate=pl.CostEstimate(
            flops=flops, transcendentals=0, bytes_accessed=bytes_accessed),
    )(x_pad, w, b)
    return out.reshape(N, F)


# -----------------------------------------------------------------------------
# Kernel 2: fused classifier head:  ReLU(concat(featA, featB)) @ Wc + bc
#   feat_a, feat_b : [N, F] f32
#   wa, wb         : [F, 9] f32   (the two row-blocks of the concat weight)
#   bc             : [1, 9] f32
#   out            : [N, 9] f32
# -----------------------------------------------------------------------------
def _head_kernel(fa_ref, fb_ref, wa_ref, wb_ref, b_ref, o_ref):
    fa = jnp.maximum(fa_ref[...], 0.0)     # F.relu on the concatenated features
    fb = jnp.maximum(fb_ref[...], 0.0)
    logits = jnp.dot(fa, wa_ref[...], preferred_element_type=jnp.float32)
    logits = logits + jnp.dot(fb, wb_ref[...], preferred_element_type=jnp.float32)
    o_ref[...] = logits + b_ref[...]


def classifier_head(feat_a, feat_b, wa, wb, bc):
    N, F = feat_a.shape
    ncls = bc.shape[-1]
    return pl.pallas_call(
        _head_kernel,
        out_shape=jax.ShapeDtypeStruct((N, ncls), jnp.float32),
        grid=(1,),
        in_specs=[
            pl.BlockSpec((N, F), lambda i: (0, 0)),
            pl.BlockSpec((N, F), lambda i: (0, 0)),
            pl.BlockSpec((F, ncls), lambda i: (0, 0)),
            pl.BlockSpec((F, ncls), lambda i: (0, 0)),
            pl.BlockSpec((1, ncls), lambda i: (0, 0)),
        ],
        out_specs=pl.BlockSpec((N, ncls), lambda i: (0, 0)),
        compiler_params=pltpu.CompilerParams(
            dimension_semantics=("arbitrary",)),
        cost_estimate=pl.CostEstimate(
            flops=2 * N * 2 * F * ncls,
            transcendentals=0,
            bytes_accessed=(2 * N * F + 2 * F * ncls + ncls + N * ncls) * 4),
    )(feat_a, feat_b, wa, wb, bc)


# -----------------------------------------------------------------------------
# Model: MelanomaNet forward (NCHW in -> [N, 9] logits out)
# -----------------------------------------------------------------------------
def init_params(key, c_in):
    ks = jax.random.split(key, 6)
    conv_w_a = jax.random.normal(ks[0], (3, 3, c_in, CONV_OUT), jnp.float32) * 0.05
    conv_b_a = jax.random.normal(ks[1], (1, CONV_OUT), jnp.float32) * 0.01
    conv_w_b = jax.random.normal(ks[2], (3, 3, c_in, CONV_OUT), jnp.float32) * 0.05
    conv_b_b = jax.random.normal(ks[3], (1, CONV_OUT), jnp.float32) * 0.01
    fc_w = jax.random.normal(ks[4], (2 * CONV_OUT, NUM_CLASSES), jnp.float32) * 0.05
    fc_b = jax.random.normal(ks[5], (1, NUM_CLASSES), jnp.float32) * 0.01
    return conv_w_a, conv_b_a, conv_w_b, conv_b_b, fc_w, fc_b


def melanoma_net_forward(x_nchw, params):
    conv_w_a, conv_b_a, conv_w_b, conv_b_b, fc_w, fc_b = params
    x_nhwc = jnp.transpose(x_nchw, (0, 2, 3, 1))                 # NCHW -> NHWC
    # Two "backbones" (stand-ins for the timm models) applied to the same input.
    feat_a = conv_relu_gap(x_nhwc, conv_w_a, conv_b_a)           # [N, FEAT]
    feat_b = conv_relu_gap(x_nhwc, conv_w_b, conv_b_b)           # [N, FEAT]
    # Pad the classifier weight rows to the lane-dense (zero-padded) feature
    # channels; padded rows multiply exact zeros, so logits are unchanged.
    wa = jnp.pad(fc_w[:CONV_OUT], ((0, FEAT - CONV_OUT), (0, 0)))
    wb = jnp.pad(fc_w[CONV_OUT:], ((0, FEAT - CONV_OUT), (0, 0)))
    return classifier_head(feat_a, feat_b, wa, wb, fc_b)         # [N, 9]


if __name__ == "__main__":
    key = jax.random.PRNGKey(0)
    kx, kp = jax.random.split(key)

    N, C, H, W = 2, 4, 16, 16
    x = jax.random.normal(kx, (N, C, H, W), jnp.float32)
    params = init_params(kp, C)

    logits = jax.jit(melanoma_net_forward)(x, params)
    logits = jax.block_until_ready(logits)

    assert logits.shape == (N, NUM_CLASSES), logits.shape
    assert logits.dtype == jnp.float32
    assert bool(jnp.all(jnp.isfinite(logits)))
    print("KERNEL_OK")
</pallas_src>

<mosaic_0001>
module attributes {stable_mosaic.version = 11 : i64} {
  func.func @_conv_relu_gap_kernel(%arg0: i32, %arg1: memref<1x18x18x4xbf16, #tpu.memory_space<vmem>>, %arg2: memref<9x4x128xbf16, #tpu.memory_space<vmem>>, %arg3: memref<1x128xf32, #tpu.memory_space<vmem>>, %arg4: memref<1x1x128xf32, #tpu.memory_space<vmem>>) attributes {dimension_semantics = [#tpu.dimension_semantics<parallel>], iteration_bounds = array<i64: 2>, scalar_prefetch = 0 : i64, scratch_operands = 0 : i64, tpu.core_type = #tpu.core_type<tc>, window_params = [{transform_indices = @transform_0, window_bounds = array<i64: 1, 18, 18, 4>}, {pipeline_mode = #tpu.pipeline_mode<synchronous>, transform_indices = @transform_1, window_bounds = array<i64: 9, 4, 128>}, {pipeline_mode = #tpu.pipeline_mode<synchronous>, transform_indices = @transform_2, window_bounds = array<i64: 1, 128>}, {transform_indices = @transform_3, window_bounds = array<i64: 1, 1, 128>}]} {
    %cst = arith.constant 0.000000e+00 : f32
    %0 = vector.broadcast %cst : f32 to vector<256x128xf32>
    %c0 = arith.constant 0 : index
    %c0_0 = arith.constant 0 : index
    %c0_1 = arith.constant 0 : index
    %c0_2 = arith.constant 0 : index
    %1 = vector.load %arg1[%c0, %c0_0, %c0_1, %c0_2] : memref<1x18x18x4xbf16, #tpu.memory_space<vmem>>, vector<1x16x16x4xbf16>
    %2 = vector.shape_cast %1 : vector<1x16x16x4xbf16> to vector<16x16x4xbf16>
    %3 = vector.shape_cast %2 : vector<16x16x4xbf16> to vector<256x4xbf16>
    %c0_3 = arith.constant 0 : index
    %c0_4 = arith.constant 0 : index
    %c0_5 = arith.constant 0 : index
    %4 = vector.load %arg2[%c0_3, %c0_4, %c0_5] : memref<9x4x128xbf16, #tpu.memory_space<vmem>>, vector<1x4x128xbf16>
    %5 = vector.shape_cast %4 : vector<1x4x128xbf16> to vector<4x128xbf16>
    %cst_6 = arith.constant dense<0.000000e+00> : vector<256x128xf32>
    %6 = tpu.matmul %3, %5, %cst_6 {dimension_numbers = #tpu.dot_dimension_numbers<[1], [0], [0], [1], [0, 0, 1, 1], [], []>} : vector<256x4xbf16>, vector<4x128xbf16>, vector<256x128xf32> -> vector<256x128xf32>
    %7 = arith.addf %0, %6 : vector<256x128xf32>
    %c0_7 = arith.constant 0 : index
    %c0_8 = arith.constant 0 : index
    %c1 = arith.constant 1 : index
    %c0_9 = arith.constant 0 : index
    %8 = vector.load %arg1[%c0_7, %c0_8, %c1, %c0_9] : memref<1x18x18x4xbf16, #tpu.memory_space<vmem>>, vector<1x16x16x4xbf16>
    %9 = vector.shape_cast %8 : vector<1x16x16x4xbf16> to vector<16x16x4xbf16>
    %10 = vector.shape_cast %9 : vector<16x16x4xbf16> to vector<256x4xbf16>
    %c1_10 = arith.constant 1 : index
    %c0_11 = arith.constant 0 : index
    %c0_12 = arith.constant 0 : index
    %11 = vector.load %arg2[%c1_10, %c0_11, %c0_12] : memref<9x4x128xbf16, #tpu.memory_space<vmem>>, vector<1x4x128xbf16>
    %12 = vector.shape_cast %11 : vector<1x4x128xbf16> to vector<4x128xbf16>
    %cst_13 = arith.constant dense<0.000000e+00> : vector<256x128xf32>
    %13 = tpu.matmul %10, %12, %cst_13 {dimension_numbers = #tpu.dot_dimension_numbers<[1], [0], [0], [1], [0, 0, 1, 1], [], []>} : vector<256x4xbf16>, vector<4x128xbf16>, vector<256x128xf32> -> vector<256x128xf32>
    %14 = arith.addf %7, %13 : vector<256x128xf32>
    %c0_14 = arith.constant 0 : index
    %c0_15 = arith.constant 0 : index
    %c2 = arith.constant 2 : index
    %c0_16 = arith.constant 0 : index
    %15 = vector.load %arg1[%c0_14, %c0_15, %c2, %c0_16] : memref<1x18x18x4xbf16, #tpu.memory_space<vmem>>, vector<1x16x16x4xbf16>
    %16 = vector.shape_cast %15 : vector<1x16x16x4xbf16> to vector<16x16x4xbf16>
    %17 = vector.shape_cast %16 : vector<16x16x4xbf16> to vector<256x4xbf16>
    %c2_17 = arith.constant 2 : index
    %c0_18 = arith.constant 0 : index
    %c0_19 = arith.constant 0 : index
    %18 = vector.load %arg2[%c2_17, %c0_18, %c0_19] : memref<9x4x128xbf16, #tpu.memory_space<vmem>>, vector<1x4x128xbf16>
    %19 = vector.shape_cast %18 : vector<1x4x128xbf16> to vector<4x128xbf16>
    %cst_20 = arith.constant dense<0.000000e+00> : vector<256x128xf32>
    %20 = tpu.matmul %17, %19, %cst_20 {dimension_numbers = #tpu.dot_dimension_numbers<[1], [0], [0], [1], [0, 0, 1, 1], [], []>} : vector<256x4xbf16>, vector<4x128xbf16>, vector<256x128xf32> -> vector<256x128xf32>
    %21 = arith.addf %14, %20 : vector<256x128xf32>
    %c0_21 = arith.constant 0 : index
    %c1_22 = arith.constant 1 : index
    %c0_23 = arith.constant 0 : index
    %c0_24 = arith.constant 0 : index
    %22 = vector.load %arg1[%c0_21, %c1_22, %c0_23, %c0_24] : memref<1x18x18x4xbf16, #tpu.memory_space<vmem>>, vector<1x16x16x4xbf16>
    %23 = vector.shape_cast %22 : vector<1x16x16x4xbf16> to vector<16x16x4xbf16>
    %24 = vector.shape_cast %23 : vector<16x16x4xbf16> to vector<256x4xbf16>
    %c3 = arith.constant 3 : index
    %c0_25 = arith.constant 0 : index
    %c0_26 = arith.constant 0 : index
    %25 = vector.load %arg2[%c3, %c0_25, %c0_26] : memref<9x4x128xbf16, #tpu.memory_space<vmem>>, vector<1x4x128xbf16>
    %26 = vector.shape_cast %25 : vector<1x4x128xbf16> to vector<4x128xbf16>
    %cst_27 = arith.constant dense<0.000000e+00> : vector<256x128xf32>
    %27 = tpu.matmul %24, %26, %cst_27 {dimension_numbers = #tpu.dot_dimension_numbers<[1], [0], [0], [1], [0, 0, 1, 1], [], []>} : vector<256x4xbf16>, vector<4x128xbf16>, vector<256x128xf32> -> vector<256x128xf32>
    %28 = arith.addf %21, %27 : vector<256x128xf32>
    %c0_28 = arith.constant 0 : index
    %c1_29 = arith.constant 1 : index
    %c1_30 = arith.constant 1 : index
    %c0_31 = arith.constant 0 : index
    %29 = vector.load %arg1[%c0_28, %c1_29, %c1_30, %c0_31] : memref<1x18x18x4xbf16, #tpu.memory_space<vmem>>, vector<1x16x16x4xbf16>
    %30 = vector.shape_cast %29 : vector<1x16x16x4xbf16> to vector<16x16x4xbf16>
    %31 = vector.shape_cast %30 : vector<16x16x4xbf16> to vector<256x4xbf16>
    %c4 = arith.constant 4 : index
    %c0_32 = arith.constant 0 : index
    %c0_33 = arith.constant 0 : index
    %32 = vector.load %arg2[%c4, %c0_32, %c0_33] : memref<9x4x128xbf16, #tpu.memory_space<vmem>>, vector<1x4x128xbf16>
    %33 = vector.shape_cast %32 : vector<1x4x128xbf16> to vector<4x128xbf16>
    %cst_34 = arith.constant dense<0.000000e+00> : vector<256x128xf32>
    %34 = tpu.matmul %31, %33, %cst_34 {dimension_numbers = #tpu.dot_dimension_numbers<[1], [0], [0], [1], [0, 0, 1, 1], [], []>} : vector<256x4xbf16>, vector<4x128xbf16>, vector<256x128xf32> -> vector<256x128xf32>
    %35 = arith.addf %28, %34 : vector<256x128xf32>
    %c0_35 = arith.constant 0 : index
    %c1_36 = arith.constant 1 : index
    %c2_37 = arith.constant 2 : index
    %c0_38 = arith.constant 0 : index
    %36 = vector.load %arg1[%c0_35, %c1_36, %c2_37, %c0_38] : memref<1x18x18x4xbf16, #tpu.memory_space<vmem>>, vector<1x16x16x4xbf16>
    %37 = vector.shape_cast %36 : vector<1x16x16x4xbf16> to vector<16x16x4xbf16>
    %38 = vector.shape_cast %37 : vector<16x16x4xbf16> to vector<256x4xbf16>
    %c5 = arith.constant 5 : index
    %c0_39 = arith.constant 0 : index
    %c0_40 = arith.constant 0 : index
    %39 = vector.load %arg2[%c5, %c0_39, %c0_40] : memref<9x4x128xbf16, #tpu.memory_space<vmem>>, vector<1x4x128xbf16>
    %40 = vector.shape_cast %39 : vector<1x4x128xbf16> to vector<4x128xbf16>
    %cst_41 = arith.constant dense<0.000000e+00> : vector<256x128xf32>
    %41 = tpu.matmul %38, %40, %cst_41 {dimension_numbers = #tpu.dot_dimension_numbers<[1], [0], [0], [1], [0, 0, 1, 1], [], []>} : vector<256x4xbf16>, vector<4x128xbf16>, vector<256x128xf32> -> vector<256x128xf32>
    %42 = arith.addf %35, %41 : vector<256x128xf32>
    %c0_42 = arith.constant 0 : index
    %c2_43 = arith.constant 2 : index
    %c0_44 = arith.constant 0 : index
    %c0_45 = arith.constant 0 : index
    %43 = vector.load %arg1[%c0_42, %c2_43, %c0_44, %c0_45] : memref<1x18x18x4xbf16, #tpu.memory_space<vmem>>, vector<1x16x16x4xbf16>
    %44 = vector.shape_cast %43 : vector<1x16x16x4xbf16> to vector<16x16x4xbf16>
    %45 = vector.shape_cast %44 : vector<16x16x4xbf16> to vector<256x4xbf16>
    %c6 = arith.constant 6 : index
    %c0_46 = arith.constant 0 : index
    %c0_47 = arith.constant 0 : index
    %46 = vector.load %arg2[%c6, %c0_46, %c0_47] : memref<9x4x128xbf16, #tpu.memory_space<vmem>>, vector<1x4x128xbf16>
    %47 = vector.shape_cast %46 : vector<1x4x128xbf16> to vector<4x128xbf16>
    %cst_48 = arith.constant dense<0.000000e+00> : vector<256x128xf32>
    %48 = tpu.matmul %45, %47, %cst_48 {dimension_numbers = #tpu.dot_dimension_numbers<[1], [0], [0], [1], [0, 0, 1, 1], [], []>} : vector<256x4xbf16>, vector<4x128xbf16>, vector<256x128xf32> -> vector<256x128xf32>
    %49 = arith.addf %42, %48 : vector<256x128xf32>
    %c0_49 = arith.constant 0 : index
    %c2_50 = arith.constant 2 : index
    %c1_51 = arith.constant 1 : index
    %c0_52 = arith.constant 0 : index
    %50 = vector.load %arg1[%c0_49, %c2_50, %c1_51, %c0_52] : memref<1x18x18x4xbf16, #tpu.memory_space<vmem>>, vector<1x16x16x4xbf16>
    %51 = vector.shape_cast %50 : vector<1x16x16x4xbf16> to vector<16x16x4xbf16>
    %52 = vector.shape_cast %51 : vector<16x16x4xbf16> to vector<256x4xbf16>
    %c7 = arith.constant 7 : index
    %c0_53 = arith.constant 0 : index
    %c0_54 = arith.constant 0 : index
    %53 = vector.load %arg2[%c7, %c0_53, %c0_54] : memref<9x4x128xbf16, #tpu.memory_space<vmem>>, vector<1x4x128xbf16>
    %54 = vector.shape_cast %53 : vector<1x4x128xbf16> to vector<4x128xbf16>
    %cst_55 = arith.constant dense<0.000000e+00> : vector<256x128xf32>
    %55 = tpu.matmul %52, %54, %cst_55 {dimension_numbers = #tpu.dot_dimension_numbers<[1], [0], [0], [1], [0, 0, 1, 1], [], []>} : vector<256x4xbf16>, vector<4x128xbf16>, vector<256x128xf32> -> vector<256x128xf32>
    %56 = arith.addf %49, %55 : vector<256x128xf32>
    %c0_56 = arith.constant 0 : index
    %c2_57 = arith.constant 2 : index
    %c2_58 = arith.constant 2 : index
    %c0_59 = arith.constant 0 : index
    %57 = vector.load %arg1[%c0_56, %c2_57, %c2_58, %c0_59] : memref<1x18x18x4xbf16, #tpu.memory_space<vmem>>, vector<1x16x16x4xbf16>
    %58 = vector.shape_cast %57 : vector<1x16x16x4xbf16> to vector<16x16x4xbf16>
    %59 = vector.shape_cast %58 : vector<16x16x4xbf16> to vector<256x4xbf16>
    %c8 = arith.constant 8 : index
    %c0_60 = arith.constant 0 : index
    %c0_61 = arith.constant 0 : index
    %60 = vector.load %arg2[%c8, %c0_60, %c0_61] : memref<9x4x128xbf16, #tpu.memory_space<vmem>>, vector<1x4x128xbf16>
    %61 = vector.shape_cast %60 : vector<1x4x128xbf16> to vector<4x128xbf16>
    %cst_62 = arith.constant dense<0.000000e+00> : vector<256x128xf32>
    %62 = tpu.matmul %59, %61, %cst_62 {dimension_numbers = #tpu.dot_dimension_numbers<[1], [0], [0], [1], [0, 0, 1, 1], [], []>} : vector<256x4xbf16>, vector<4x128xbf16>, vector<256x128xf32> -> vector<256x128xf32>
    %63 = arith.addf %56, %62 : vector<256x128xf32>
    %c0_63 = arith.constant 0 : index
    %c0_64 = arith.constant 0 : index
    %64 = vector.load %arg3[%c0_63, %c0_64] : memref<1x128xf32, #tpu.memory_space<vmem>>, vector<1x128xf32>
    %65 = vector.broadcast %64 : vector<1x128xf32> to vector<256x128xf32>
    %66 = arith.addf %63, %65 : vector<256x128xf32>
    %cst_65 = arith.constant 0.000000e+00 : f32
    %67 = vector.broadcast %cst_65 : f32 to vector<256x128xf32>
    %68 = arith.maximumf %66, %67 : vector<256x128xf32>
    %cst_66 = arith.constant 1.000000e+00 : f32
    %69 = vector.broadcast %cst_66 : f32 to vector<1x256xf32>
    %cst_67 = arith.constant dense<0.000000e+00> : vector<1x128xf32>
    %70 = tpu.matmul %69, %68, %cst_67 {dimension_numbers = #tpu.dot_dimension_numbers<[1], [0], [0], [1], [0, 0, 1, 1], [], []>} : vector<1x256xf32>, vector<256x128xf32>, vector<1x128xf32> -> vector<1x128xf32>
    %cst_68 = arith.constant 3.906250e-03 : f32
    %71 = vector.broadcast %cst_68 : f32 to vector<1x128xf32>
    %72 = arith.mulf %70, %71 : vector<1x128xf32>
    %73 = vector.shape_cast %72 : vector<1x128xf32> to vector<1x1x128xf32>
    %c0_69 = arith.constant 0 : index
    %c0_70 = arith.constant 0 : index
    %c0_71 = arith.constant 0 : index
    %74 = vector.load %arg4[%c0_69, %c0_70, %c0_71] : memref<1x1x128xf32, #tpu.memory_space<vmem>>, vector<1x1x128xf32>
    tpu.vector_store %arg4[%c0_69, %c0_70, %c0_71], %73 {strides = array<i32>} : memref<1x1x128xf32, #tpu.memory_space<vmem>>, vector<1x1x128xf32>,
    return
  }
  func.func @transform_0(%arg0: i32) -> (i32, i32, i32, i32) {
    %c0_i32 = arith.constant 0 : i32
    %c0_i32_0 = arith.constant 0 : i32
    %c0_i32_1 = arith.constant 0 : i32
    %c0_i32_2 = arith.constant 0 : i32
    return %arg0, %c0_i32, %c0_i32_0, %c0_i32_1 : i32, i32, i32, i32
  }
  func.func @transform_1(%arg0: i32) -> (i32, i32, i32) {
    %c0_i32 = arith.constant 0 : i32
    %c0_i32_0 = arith.constant 0 : i32
    %c0_i32_1 = arith.constant 0 : i32
    %c0_i32_2 = arith.constant 0 : i32
    return %c0_i32, %c0_i32_0, %c0_i32_1 : i32, i32, i32
  }
  func.func @transform_2(%arg0: i32) -> (i32, i32) {
    %c0_i32 = arith.constant 0 : i32
    %c0_i32_0 = arith.constant 0 : i32
    %c0_i32_1 = arith.constant 0 : i32
    return %c0_i32, %c0_i32_0 : i32, i32
  }
  func.func @transform_3(%arg0: i32) -> (i32, i32, i32) {
    %c0_i32 = arith.constant 0 : i32
    %c0_i32_0 = arith.constant 0 : i32
    %c0_i32_1 = arith.constant 0 : i32
    return %arg0, %c0_i32, %c0_i32_0 : i32, i32, i32
  }
}

module attributes {stable_mosaic.version = 11 : i64} {
  func.func @_head_kernel(%arg0: i32, %arg1: memref<2x128xf32, #tpu.memory_space<vmem>>, %arg2: memref<2x128xf32, #tpu.memory_space<vmem>>, %arg3: memref<128x9xf32, #tpu.memory_space<vmem>>, %arg4: memref<128x9xf32, #tpu.memory_space<vmem>>, %arg5: memref<1x9xf32, #tpu.memory_space<vmem>>, %arg6: memref<2x9xf32, #tpu.memory_space<vmem>>) attributes {dimension_semantics = [#tpu.dimension_semantics<arbitrary>], iteration_bounds = array<i64: 1>, scalar_prefetch = 0 : i64, scratch_operands = 0 : i64, tpu.core_type = #tpu.core_type<tc>, window_params = [{pipeline_mode = #tpu.pipeline_mode<synchronous>, transform_indices = @transform_0, window_bounds = array<i64: 2, 128>}, {pipeline_mode = #tpu.pipeline_mode<synchronous>, transform_indices = @transform_1, window_bounds = array<i64: 2, 128>}, {pipeline_mode = #tpu.pipeline_mode<synchronous>, transform_indices = @transform_2, window_bounds = array<i64: 128, 9>}, {pipeline_mode = #tpu.pipeline_mode<synchronous>, transform_indices = @transform_3, window_bounds = array<i64: 128, 9>}, {pipeline_mode = #tpu.pipeline_mode<synchronous>, transform_indices = @transform_4, window_bounds = array<i64: 1, 9>}, {pipeline_mode = #tpu.pipeline_mode<synchronous>, transform_indices = @transform_5, window_bounds = array<i64: 2, 9>}]} {
    %c0 = arith.constant 0 : index
    %c0_0 = arith.constant 0 : index
    %0 = vector.load %arg1[%c0, %c0_0] : memref<2x128xf32, #tpu.memory_space<vmem>>, vector<2x128xf32>
    %cst = arith.constant 0.000000e+00 : f32
    %1 = vector.broadcast %cst : f32 to vector<2x128xf32>
    %2 = arith.maximumf %0, %1 : vector<2x128xf32>
    %c0_1 = arith.constant 0 : index
    %c0_2 = arith.constant 0 : index
    %3 = vector.load %arg2[%c0_1, %c0_2] : memref<2x128xf32, #tpu.memory_space<vmem>>, vector<2x128xf32>
    %cst_3 = arith.constant 0.000000e+00 : f32
    %4 = vector.broadcast %cst_3 : f32 to vector<2x128xf32>
    %5 = arith.maximumf %3, %4 : vector<2x128xf32>
    %c0_4 = arith.constant 0 : index
    %c0_5 = arith.constant 0 : index
    %6 = vector.load %arg3[%c0_4, %c0_5] : memref<128x9xf32, #tpu.memory_space<vmem>>, vector<128x9xf32>
    %cst_6 = arith.constant dense<0.000000e+00> : vector<2x9xf32>
    %7 = tpu.matmul %2, %6, %cst_6 {dimension_numbers = #tpu.dot_dimension_numbers<[1], [0], [0], [1], [0, 0, 1, 1], [], []>} : vector<2x128xf32>, vector<128x9xf32>, vector<2x9xf32> -> vector<2x9xf32>
    %c0_7 = arith.constant 0 : index
    %c0_8 = arith.constant 0 : index
    %8 = vector.load %arg4[%c0_7, %c0_8] : memref<128x9xf32, #tpu.memory_space<vmem>>, vector<128x9xf32>
    %cst_9 = arith.constant dense<0.000000e+00> : vector<2x9xf32>
    %9 = tpu.matmul %5, %8, %cst_9 {dimension_numbers = #tpu.dot_dimension_numbers<[1], [0], [0], [1], [0, 0, 1, 1], [], []>} : vector<2x128xf32>, vector<128x9xf32>, vector<2x9xf32> -> vector<2x9xf32>
    %10 = arith.addf %7, %9 : vector<2x9xf32>
    %c0_10 = arith.constant 0 : index
    %c0_11 = arith.constant 0 : index
    %11 = vector.load %arg5[%c0_10, %c0_11] : memref<1x9xf32, #tpu.memory_space<vmem>>, vector<1x9xf32>
    %12 = vector.broadcast %11 : vector<1x9xf32> to vector<2x9xf32>
    %13 = arith.addf %10, %12 : vector<2x9xf32>
    %c0_12 = arith.constant 0 : index
    %c0_13 = arith.constant 0 : index
    %14 = vector.load %arg6[%c0_12, %c0_13] : memref<2x9xf32, #tpu.memory_space<vmem>>, vector<2x9xf32>
    tpu.vector_store %arg6[%c0_12, %c0_13], %13 {strides = array<i32>} : memref<2x9xf32, #tpu.memory_space<vmem>>, vector<2x9xf32>,
    return
  }
  func.func @transform_0(%arg0: i32) -> (i32, i32) {
    %c0_i32 = arith.constant 0 : i32
    %c0_i32_0 = arith.constant 0 : i32
    %c0_i32_1 = arith.constant 0 : i32
    return %c0_i32, %c0_i32_0 : i32, i32
  }
  func.func @transform_1(%arg0: i32) -> (i32, i32) {
    %c0_i32 = arith.constant 0 : i32
    %c0_i32_0 = arith.constant 0 : i32
    %c0_i32_1 = arith.constant 0 : i32
    return %c0_i32, %c0_i32_0 : i32, i32
  }
  func.func @transform_2(%arg0: i32) -> (i32, i32) {
    %c0_i32 = arith.constant 0 : i32
    %c0_i32_0 = arith.constant 0 : i32
    %c0_i32_1 = arith.constant 0 : i32
    return %c0_i32, %c0_i32_0 : i32, i32
  }
  func.func @transform_3(%arg0: i32) -> (i32, i32) {
    %c0_i32 = arith.constant 0 : i32
    %c0_i32_0 = arith.constant 0 : i32
    %c0_i32_1 = arith.constant 0 : i32
    return %c0_i32, %c0_i32_0 : i32, i32
  }
  func.func @transform_4(%arg0: i32) -> (i32, i32) {
    %c0_i32 = arith.constant 0 : i32
    %c0_i32_0 = arith.constant 0 : i32
    %c0_i32_1 = arith.constant 0 : i32
    return %c0_i32, %c0_i32_0 : i32, i32
  }
  func.func @transform_5(%arg0: i32) -> (i32, i32) {
    %c0_i32 = arith.constant 0 : i32
    %c0_i32_0 = arith.constant 0 : i32
    %c0_i32_1 = arith.constant 0 : i32
    return %c0_i32, %c0_i32_0 : i32, i32
  }
}

</mosaic_0001>

<llo_original>
// kernel: melanoma_net_forward.5
$region0: #{melanoma_net_forward.5}
  #allocation0 [shape = 'u32[]', space=smem, size = 0x4, offset = 0x4, fixed_abs, tag = 'smem constant byte address 0x4 - core index']
  #allocation1 [shape = 'u32[144,128]{1,0:T(1,128)}', space=vmem, size = 0x12000, scoped, tag = 'internal scratch']
  %s0 = inlined_call_operand.vmem [shape: f32[2,128], index: 0, kind: input, shape index: {}]
  %s1 = inlined_call_operand.vmem [shape: f32[2,128], index: 1, kind: input, shape index: {}]
  %s2 = inlined_call_operand.vmem [shape: f32[128,9], index: 2, kind: input, shape index: {}]
  %s3 = inlined_call_operand.vmem [shape: f32[128,9], index: 3, kind: input, shape index: {}]
  %s4 = inlined_call_operand.vmem [shape: f32[1,9], index: 4, kind: input, shape index: {}]
  %s5 = inlined_call_operand.hbm [shape: f32[2,9], index: 5, kind: output, shape index: {}]
  %s6 = sld [smem:[#allocation0]]
  $region30: #{melanoma_net_forward.5} parent=0
    _
  %s8 = ssub.s32 1, %s6
  %s9 = scalar_select 0, %s8, %s6
  $region1: #{melanoma_net_forward.5} parent=0
    #allocation2 [shape = 'u8[1024]{0}', space=vmem, size = 0x400, scoped, tag = 'output window, operand 0, single buffered']
    #allocation3 [shape = 's32[1]{0}', space=sflag, size = 0x4, scoped, tag = 'scoped memory for melanoma_net_forward.5']
    %10 = vsyncpa [#allocation3], 0
    // Predicated region
    $region2: #{melanoma_net_forward.5} parent=1 // pred_check
      _
    $region3: #{melanoma_net_forward.5} parent=1 // pred_check_branch
      %12 = sbr.rel (0) target = $region5
    $region4: #{melanoma_net_forward.5} parent=1 // pred_region
      _
    $region5: #{melanoma_net_forward.5} parent=1 // pred_fallthru
      _
    // Predicated region
    $region6: #{melanoma_net_forward.5} parent=1 // pred_check
      _
    $region7: #{melanoma_net_forward.5} parent=1 // pred_check_branch
      %14 = sbr.rel (0) target = $region9
    $region8: #{melanoma_net_forward.5} parent=1 // pred_region
      _
    $region9: #{melanoma_net_forward.5} parent=1 // pred_fallthru
      _
    // Predicated region
    $region10: #{melanoma_net_forward.5} parent=1 // pred_check
      _
    $region11: #{melanoma_net_forward.5} parent=1 // pred_check_branch
      %16 = sbr.rel (0) target = $region13
    $region12: #{melanoma_net_forward.5} parent=1 // pred_region
      _
    $region13: #{melanoma_net_forward.5} parent=1 // pred_fallthru
      _
    // Predicated region
    $region14: #{melanoma_net_forward.5} parent=1 // pred_check
      _
    $region15: #{melanoma_net_forward.5} parent=1 // pred_check_branch
      %18 = sbr.rel (0) target = $region17
    $region16: #{melanoma_net_forward.5} parent=1 // pred_region
      _
    $region17: #{melanoma_net_forward.5} parent=1 // pred_fallthru
      _
    // Predicated region
    $region18: #{melanoma_net_forward.5} parent=1 // pred_check
      _
    $region19: #{melanoma_net_forward.5} parent=1 // pred_check_branch
      %20 = sbr.rel (0) target = $region21
    $region20: #{melanoma_net_forward.5} parent=1 // pred_region
      _
    $region21: #{melanoma_net_forward.5} parent=1 // pred_fallthru
      _
    %v21 = vld [vmem:[%s0] sm:$0x3]
    %v22 = vmax.f32 %v21, 0.0
    %v23 = vld [vmem:[%s1] sm:$0x3]
    %v24 = vmax.f32 %v23, 0.0
    %v25 = vld [vmem:[%s2] sm:$0xff]
    %v26 = vld [vmem:[%s2 + $0x8] sm:$0xff]
    %v27 = vld [vmem:[%s2 + $0x10] sm:$0xff]
    %v28 = vld [vmem:[%s2 + $0x18] sm:$0xff]
    %v29 = vld [vmem:[%s2 + $0x20] sm:$0xff]
    %v30 = vld [vmem:[%s2 + $0x28] sm:$0xff]
    %v31 = vld [vmem:[%s2 + $0x30] sm:$0xff]
    %v32 = vld [vmem:[%s2 + $0x38] sm:$0xff]
    %v33 = vld [vmem:[%s2 + $0x40] sm:$0xff]
    %v34 = vld [vmem:[%s2 + $0x48] sm:$0xff]
    %v35 = vld [vmem:[%s2 + $0x50] sm:$0xff]
    %v36 = vld [vmem:[%s2 + $0x58] sm:$0xff]
    %v37 = vld [vmem:[%s2 + $0x60] sm:$0xff]
    %v38 = vld [vmem:[%s2 + $0x68] sm:$0xff]
    %v39 = vld [vmem:[%s2 + $0x70] sm:$0xff]
    %v40 = vld [vmem:[%s2 + $0x78] sm:$0xff]
    %v41 = vld [vmem:[%s3] sm:$0xff]
    %v42 = vld [vmem:[%s3 + $0x8] sm:$0xff]
    %v43 = vld [vmem:[%s3 + $0x10] sm:$0xff]
    %v44 = vld [vmem:[%s3 + $0x18] sm:$0xff]
    %v45 = vld [vmem:[%s3 + $0x20] sm:$0xff]
    %v46 = vld [vmem:[%s3 + $0x28] sm:$0xff]
    %v47 = vld [vmem:[%s3 + $0x30] sm:$0xff]
    %v48 = vld [vmem:[%s3 + $0x38] sm:$0xff]
    %v49 = vld [vmem:[%s3 + $0x40] sm:$0xff]
    %v50 = vld [vmem:[%s3 + $0x48] sm:$0xff]
    %v51 = vld [vmem:[%s3 + $0x50] sm:$0xff]
    %v52 = vld [vmem:[%s3 + $0x58] sm:$0xff]
    %v53 = vld [vmem:[%s3 + $0x60] sm:$0xff]
    %v54 = vld [vmem:[%s3 + $0x68] sm:$0xff]
    %v55 = vld [vmem:[%s3 + $0x70] sm:$0xff]
    %v56 = vld [vmem:[%s3 + $0x78] sm:$0xff]
    %57 = vmatprep.subr.mxu0 0.0
    %58 = vmatpush1.msra.mxu0 %v41
    %59 = vmatprep.subr.mxu0 0.0
    %60 = vmatpush1.msra.mxu0 %v42
    %61 = vmatprep.subr.mxu0 0.0
    %62 = vmatpush1.msra.mxu0 %v43
    %63 = vmatprep.subr.mxu0 0.0
    %64 = vmatpush1.msra.mxu0 %v44
    %65 = vmatprep.subr.mxu0 0.0
    %66 = vmatpush1.msra.mxu0 %v45
    %67 = vmatprep.subr.mxu0 0.0
    %68 = vmatpush1.msra.mxu0 %v46
    %69 = vmatprep.subr.mxu0 0.0
    %70 = vmatpush1.msra.mxu0 %v47
    %71 = vmatprep.subr.mxu0 0.0
    %72 = vmatpush1.msra.mxu0 %v48
    %73 = vmatprep.subr.mxu0 0.0
    %74 = vmatpush1.msra.mxu0 %v49
    %75 = vmatprep.subr.mxu0 0.0
    %76 = vmatpush1.msra.mxu0 %v50
    %77 = vmatprep.subr.mxu0 0.0
    %78 = vmatpush1.msra.mxu0 %v51
    %79 = vmatprep.subr.mxu0 0.0
    %80 = vmatpush1.msra.mxu0 %v52
    %81 = vmatprep.subr.mxu0 0.0
    %82 = vmatpush1.msra.mxu0 %v53
    %83 = vmatprep.subr.mxu0 0.0
    %84 = vmatpush1.msra.mxu0 %v54
    %85 = vmatprep.subr.mxu0 0.0
    %86 = vmatpush1.msra.mxu0 %v55
    %87 = vmatprep.subr.mxu0 0.0
    %88 = vmatpush1.msra.mxu0 %v56
    %89 = vmatprep.subr.mxu0 0.0
    %90 = vmatpush1.msra.mxu0 0.0
    %91 = vmatprep.subr.mxu0 0.0
    %92 = vmatpush1.msra.mxu0 0.0
    %93 = vmatprep.subr.mxu0 0.0
    %94 = vmatpush1.msra.mxu0 0.0
    %95 = vmatprep.subr.mxu0 0.0
    %96 = vmatpush1.msra.mxu0 0.0
    %97 = vmatprep.subr.mxu0 0.0
    %98 = vmatpush1.msra.mxu0 0.0
    %99 = vmatprep.subr.mxu0 0.0
    %100 = vmatpush1.msra.mxu0 0.0
    %101 = vmatprep.subr.mxu0 0.0
    %102 = vmatpush1.msra.mxu0 0.0
    %103 = vmatprep.subr.mxu0 0.0
    %104 = vmatpush1.msra.mxu0 0.0
    %105 = vmatprep.subr.mxu0 0.0
    %106 = vmatpush1.msra.mxu0 0.0
    %107 = vmatprep.subr.mxu0 0.0
    %108 = vmatpush1.msra.mxu0 0.0
    %109 = vmatprep.subr.mxu0 0.0
    %110 = vmatpush1.msra.mxu0 0.0
    %111 = vmatprep.subr.mxu0 0.0
    %112 = vmatpush1.msra.mxu0 0.0
    %113 = vmatprep.subr.mxu0 0.0
    %114 = vmatpush1.msra.mxu0 0.0
    %115 = vmatprep.subr.mxu0 0.0
    %116 = vmatpush1.msra.mxu0 0.0
    %117 = vmatprep.subr.mxu0 0.0
    %118 = vmatpush1.msra.mxu0 0.0
    %119 = vmatprep.subr.mxu0 0.0
    %120 = vmatpush1.msra.mxu0 0.0
    %121 = vmatprep.mubr.f32.mxu0 0.0
    %122 = vmatmul.mubr.f32.gmra.mrb[0].mxu0 %v24
    %v123 = vpop.f32.mrb[0].mxu0
    %v124 = vadd.f32 0.0, %v123
    %v125 = vpop.f32.mrb[0].mxu0
    %126 = vdwg.mxu0
    %127 = vmatprep.subr.mxu0 0.0
    %128 = vmatpush1.msra.mxu0 %v25
    %129 = vmatprep.subr.mxu0 0.0
    %130 = vmatpush1.msra.mxu0 %v26
    %131 = vmatprep.subr.mxu0 0.0
    %132 = vmatpush1.msra.mxu0 %v27
    %133 = vmatprep.subr.mxu0 0.0
    %134 = vmatpush1.msra.mxu0 %v28
    %135 = vmatprep.subr.mxu0 0.0
    %136 = vmatpush1.msra.mxu0 %v29
    %137 = vmatprep.subr.mxu0 0.0
    %138 = vmatpush1.msra.mxu0 %v30
    %139 = vmatprep.subr.mxu0 0.0
    %140 = vmatpush1.msra.mxu0 %v31
    %141 = vmatprep.subr.mxu0 0.0
    %142 = vmatpush1.msra.mxu0 %v32
    %143 = vmatprep.subr.mxu0 0.0
    %144 = vmatpush1.msra.mxu0 %v33
    %145 = vmatprep.subr.mxu0 0.0
    %146 = vmatpush1.msra.mxu0 %v34
    %147 = vmatprep.subr.mxu0 0.0
    %148 = vmatpush1.msra.mxu0 %v35
    %149 = vmatprep.subr.mxu0 0.0
    %150 = vmatpush1.msra.mxu0 %v36
    %151 = vmatprep.subr.mxu0 0.0
    %152 = vmatpush1.msra.mxu0 %v37
    %153 = vmatprep.subr.mxu0 0.0
    %154 = vmatpush1.msra.mxu0 %v38
    %155 = vmatprep.subr.mxu0 0.0
    %156 = vmatpush1.msra.mxu0 %v39
    %157 = vmatprep.subr.mxu0 0.0
    %158 = vmatpush1.msra.mxu0 %v40
    %159 = vmatprep.subr.mxu0 0.0
    %160 = vmatpush1.msra.mxu0 0.0
    %161 = vmatprep.subr.mxu0 0.0
    %162 = vmatpush1.msra.mxu0 0.0
    %163 = vmatprep.subr.mxu0 0.0
    %164 = vmatpush1.msra.mxu0 0.0
    %165 = vmatprep.subr.mxu0 0.0
    %166 = vmatpush1.msra.mxu0 0.0
    %167 = vmatprep.subr.mxu0 0.0
    %168 = vmatpush1.msra.mxu0 0.0
    %169 = vmatprep.subr.mxu0 0.0
    %170 = vmatpush1.msra.mxu0 0.0
    %171 = vmatprep.subr.mxu0 0.0
    %172 = vmatpush1.msra.mxu0 0.0
    %173 = vmatprep.subr.mxu0 0.0
    %174 = vmatpush1.msra.mxu0 0.0
    %175 = vmatprep.subr.mxu0 0.0
    %176 = vmatpush1.msra.mxu0 0.0
    %177 = vmatprep.subr.mxu0 0.0
    %178 = vmatpush1.msra.mxu0 0.0
    %179 = vmatprep.subr.mxu0 0.0
    %180 = vmatpush1.msra.mxu0 0.0
    %181 = vmatprep.subr.mxu0 0.0
    %182 = vmatpush1.msra.mxu0 0.0
    %183 = vmatprep.subr.mxu0 0.0
    %184 = vmatpush1.msra.mxu0 0.0
    %185 = vmatprep.subr.mxu0 0.0
    %186 = vmatpush1.msra.mxu0 0.0
    %187 = vmatprep.subr.mxu0 0.0
    %188 = vmatpush1.msra.mxu0 0.0
    %189 = vmatprep.subr.mxu0 0.0
    %190 = vmatpush1.msra.mxu0 0.0
    %191 = vmatprep.mubr.f32.mxu0 0.0
    %192 = vmatmul.mubr.f32.gmra.mrb[0].mxu0 %v22
    %v193 = vpop.f32.mrb[0].mxu0
    %v194 = vadd.f32 %v124, %v193
    %v195 = vpop.f32.mrb[0].mxu0
    %196 = vdwg.mxu0
    %v197 = vld [vmem:[%s4] sm:$0x1]
    %v199 = vlaneseq
    %v200 = vshrl.u32 %v199, 7
    %v201 = vsub.s32 0, %v200
    %v202 = vrot.slane %v197, %v201
    %v204 = vadd.f32 %v194, %v202
    %vm205 = vcmask 66560
    %206 = vst.msk [vmem:[#allocation2] sm:$0x3] %vm205, %v204
    // Predicated region
    $region22: #{melanoma_net_forward.5} parent=1 // pred_check
      _
    $region23: #{melanoma_net_forward.5} parent=1 // pred_check_branch
      %208 = sbr.rel (0) target = $region25
    $region24: #{melanoma_net_forward.5} parent=1 // pred_region
      %s210 = ssub.s32 32, 32
      %211 = vsyncadd [#allocation3], %s210
      %s213 = sshll.u32 [#allocation2], 4
      %s214 = int_to_ptr.vmem [resolvable:$true] %s213
      %216 = dma.vmem_to_hbm [thread:$0]  %s214, 32, %s5, [#allocation3]
    $region25: #{melanoma_net_forward.5} parent=1 // pred_fallthru
      _
    // Predicated region
    $region26: #{melanoma_net_forward.5} parent=1 // pred_check
      _
    $region27: #{melanoma_net_forward.5} parent=1 // pred_check_branch
      %218 = sbr.rel (0) target = $region29
    $region28: #{melanoma_net_forward.5} parent=1 // pred_region
      %219 = dma.done [#allocation3], 32
    $region29: #{melanoma_net_forward.5} parent=1 // pred_fallthru
      _
    %220 = vsyncpa [#allocation3], 1

// kernel: melanoma_net_forward.3
$region0: #{melanoma_net_forward.3}
  #allocation0 [shape = 'u32[]', space=smem, size = 0x4, offset = 0x4, fixed_abs, tag = 'smem constant byte address 0x4 - core index']
  #allocation1 [shape = 'u32[144,128]{1,0:T(1,128)}', space=vmem, size = 0x12000, scoped, tag = 'internal scratch']
  %s0 = inlined_call_operand.vmem [shape: bf16[2,18,18,4], index: 0, kind: input, shape index: {}]
  %s1 = inlined_call_operand.vmem [shape: bf16[9,4,128], index: 1, kind: input, shape index: {}]
  %s2 = inlined_call_operand.vmem [shape: f32[1,128], index: 2, kind: input, shape index: {}]
  %s3 = inlined_call_operand.vmem [shape: f32[2,1,128], index: 3, kind: output, shape index: {}]
  %s4 = sld [smem:[#allocation0]]
  $region45: #{melanoma_net_forward.3} parent=0
    _
  %s6 = ssub.s32 1, %s4
  %s7 = scalar_select 0, %s6, %s4
  loop: start=0, step=1, limit=4
  $region2: #{melanoma_net_forward.3} parent=0 // loop_pre_header
    _
  $region3: #{melanoma_net_forward.3} parent=0 // loop_header
    %s9 = sphi 0, %s13
    %p10 = scmp.ge.s32.totalorder %s9, 4
    %s19 = sphi 0, %s21
    %s22 = sphi 0, %s19
    %s23 = sphi 0, %s22
    %s39 = sphi 0, %s23
    %s43 = sphi 0, %s43
    %s45 = sphi 0, %s43
    %s46 = sphi 0, %s45
    %s60 = sphi 0, %s46
    %s64 = sphi 0, %s64
    %s66 = sphi 0, %s64
    %s67 = sphi 0, %s66
    %s81 = sphi 0, %s67
    %s87 = sphi 0, %s89
    %s90 = sphi 0, %s87
    %s91 = sphi 0, %s90
    %s107 = sphi 0, %s91
  $region4: #{melanoma_net_forward.3} parent=0 // loop_header_branch
    %12 = sbr.rel (%p10) target = $region8
  $region5: #{melanoma_net_forward.3} parent=0 // loop_body
    %s14 = ssub.s32 %s9, 1
    %s15 = ssub.s32 %s9, 2
    %s16 = sadd.s32 %s9, 1
    %s17 = ssub.s32 %s9, %s16
    %p18 = scmp.eq.s32.totalorder %s17, 0
    %s20 = sadd.s32 %s19, 1
    %s21 = scalar_select %p18, %s19, %s20
    %p24 = pneg %p18
    %p25 = scmp.eq.s32.totalorder %s9, 1
    %p26 = por %p24, %p25
    %p27 = scmp.ne.s32.totalorder %s19, %s22
    %p28 = scmp.eq.s32.totalorder %s9, 0
    %p29 = por %p27, %p28
    %p30 = scmp.ne.s32.totalorder %s19, %s22
    %p31 = scmp.eq.s32.totalorder %s14, 1
    %p32 = por %p30, %p31
    %p33 = scmp.ne.s32.totalorder %s22, %s23
    %p34 = scmp.eq.s32.totalorder %s14, 0
    %p35 = por %p33, %p34
    %p36 = scmp.ne.s32.totalorder %s22, %s23
    %p37 = scmp.eq.s32.totalorder %s15, 1
    %p38 = por %p36, %p37
    %p40 = scmp.ne.s32.totalorder %s23, %s39
    %p41 = scmp.eq.s32.totalorder %s15, 0
    %p42 = por %p40, %p41
    %s44 = sadd.s32 %s43, 1
    %p47 = scmp.eq.s32.totalorder %s9, 1
    %p48 = scmp.ne.s32.totalorder %s43, %s45
    %p49 = scmp.eq.s32.totalorder %s9, 0
    %p50 = por %p48, %p49
    %p51 = scmp.ne.s32.totalorder %s43, %s45
    %p52 = scmp.eq.s32.totalorder %s14, 1
    %p53 = por %p51, %p52
    %p54 = scmp.ne.s32.totalorder %s45, %s46
    %p55 = scmp.eq.s32.totalorder %s14, 0
    %p56 = por %p54, %p55
    %p57 = scmp.ne.s32.totalorder %s45, %s46
    %p58 = scmp.eq.s32.totalorder %s15, 1
    %p59 = por %p57, %p58
    %p61 = scmp.ne.s32.totalorder %s46, %s60
    %p62 = scmp.eq.s32.totalorder %s15, 0
    %p63 = por %p61, %p62
    %s65 = sadd.s32 %s64, 1
    %p68 = scmp.eq.s32.totalorder %s9, 1
    %p69 = scmp.ne.s32.totalorder %s64, %s66
    %p70 = scmp.eq.s32.totalorder %s9, 0
    %p71 = por %p69, %p70
    %p72 = scmp.ne.s32.totalorder %s64, %s66
    %p73 = scmp.eq.s32.totalorder %s14, 1
    %p74 = por %p72, %p73
    %p75 = scmp.ne.s32.totalorder %s66, %s67
    %p76 = scmp.eq.s32.totalorder %s14, 0
    %p77 = por %p75, %p76
    %p78 = scmp.ne.s32.totalorder %s66, %s67
    %p79 = scmp.eq.s32.totalorder %s15, 1
    %p80 = por %p78, %p79
    %p82 = scmp.ne.s32.totalorder %s67, %s81
    %p83 = scmp.eq.s32.totalorder %s15, 0
    %p84 = por %p82, %p83
    %s85 = ssub.s32 %s9, %s16
    %p86 = scmp.eq.s32.totalorder %s85, 0
    %s88 = sadd.s32 %s87, 1
    %s89 = scalar_select %p86, %s87, %s88
    %p92 = pneg %p86
    %p93 = scmp.eq.s32.totalorder %s9, 1
    %p94 = por %p92, %p93
    %p95 = scmp.ne.s32.totalorder %s87, %s90
    %p96 = scmp.eq.s32.totalorder %s9, 0
    %p97 = por %p95, %p96
    %p98 = scmp.ne.s32.totalorder %s87, %s90
    %p99 = scmp.eq.s32.totalorder %s14, 1
    %p100 = por %p98, %p99
    %p101 = scmp.ne.s32.totalorder %s90, %s91
    %p102 = scmp.eq.s32.totalorder %s14, 0
    %p103 = por %p101, %p102
    %p104 = scmp.ne.s32.totalorder %s90, %s91
    %p105 = scmp.eq.s32.totalorder %s15, 1
    %p106 = por %p104, %p105
    %p108 = scmp.ne.s32.totalorder %s91, %s107
    %p109 = scmp.eq.s32.totalorder %s15, 0
    %p110 = por %p108, %p109
    %p111 = scmp.le.s32.totalorder 1, %s9
    %p112 = scmp.lt.s32.totalorder %s9, 3
    %p113 = pnand %p111, %p112
    %p114 = pneg %p113
    // Predicated region
    $region9: #{melanoma_net_forward.3} parent=5 // pred_check
      _
    $region10: #{melanoma_net_forward.3} parent=5 // pred_check_branch
      %116 = sbr.rel (%p113) target = $region12
    $region11: #{melanoma_net_forward.3} parent=5 // pred_region
      %s117 = ssub.s32 %s9, 1
      // Predicated region
      $region13: #{melanoma_net_forward.3} parent=11 // pred_check
        %p118 = pneg %p56
      $region14: #{melanoma_net_forward.3} parent=11 // pred_check_branch
        %120 = sbr.rel (%p118) target = $region16
      $region15: #{melanoma_net_forward.3} parent=11 // pred_region
        _
      $region16: #{melanoma_net_forward.3} parent=11 // pred_fallthru
        _
      // Predicated region
      $region17: #{melanoma_net_forward.3} parent=11 // pred_check
        %p121 = pneg %p77
      $region18: #{melanoma_net_forward.3} parent=11 // pred_check_branch
        %123 = sbr.rel (%p121) target = $region20
      $region19: #{melanoma_net_forward.3} parent=11 // pred_region
        _
      $region20: #{melanoma_net_forward.3} parent=11 // pred_fallthru
        _
    $region12: #{melanoma_net_forward.3} parent=5 // pred_fallthru
      _
    %p124 = scmp.lt.s32.totalorder %s9, 2
    // Predicated region
    $region21: #{melanoma_net_forward.3} parent=5 // pred_check
      %p125 = pneg %p124
    $region22: #{melanoma_net_forward.3} parent=5 // pred_check_branch
      %127 = sbr.rel (%p125) target = $region24
    $region23: #{melanoma_net_forward.3} parent=5 // pred_region
      // Predicated region
      $region25: #{melanoma_net_forward.3} parent=23 // pred_check
        %p128 = pneg %p29
      $region26: #{melanoma_net_forward.3} parent=23 // pred_check_branch
        %130 = sbr.rel (%p128) target = $region28
      $region27: #{melanoma_net_forward.3} parent=23 // pred_region
        %p131 = scmp.lt.s32.totalorder %s9, 1
        %s132 = scalar_select %p131, %s9, 1
        %s133 = smul.addr %s132, 54
        %s134 = smul.addr %s133, 4
        %s135 = scalar_lea.vmem %s0, %s134
      $region28: #{melanoma_net_forward.3} parent=23 // pred_fallthru
        _
    $region24: #{melanoma_net_forward.3} parent=5 // pred_fallthru
      _
    %p136 = scmp.le.s32.totalorder 1, %s9
    %p137 = scmp.lt.s32.totalorder %s9, 3
    %p138 = pnand %p136, %p137
    %p139 = pneg %p138
    // Predicated region
    $region29: #{melanoma_net_forward.3} parent=5 // pred_check
      _
    $region30: #{melanoma_net_forward.3} parent=5 // pred_check_branch
      %141 = sbr.rel (%p138) target = $region32
    $region31: #{melanoma_net_forward.3} parent=5 // pred_region
      %s142 = ssub.s32 %s9, 1
      %p143 = scmp.lt.s32.totalorder %s14, 1
      %s144 = scalar_select %p143, %s14, 1
      %s145 = smul.addr %s144, 54
      %s146 = smul.addr %s145, 4
      %s147 = scalar_lea.vmem %s0, %s146
      %p148 = pneg %p35
      %p149 = pneg %p32
      %p150 = pneg %p56
      %p151 = pneg %p53
      %p152 = pneg %p77
      %p153 = pneg %p74
      %p154 = pneg %p103
      %p155 = pneg %p100
      %p156 = scmp.lt.s32.totalorder %s14, 1
      %s157 = scalar_select %p156, %s14, 1
      %s158 = scalar_lea.vmem %s3, %s157
      %p159 = scmp.lt.s32.totalorder %s14, 1
      %s160 = scalar_select %p159, %s14, 1
      %s161 = smul.addr %s160, 54
      %s162 = smul.addr %s161, 4
      %s163 = scalar_lea.vmem %s0, %s162
      %p164 = scmp.lt.s32.totalorder %s14, 1
      %s165 = scalar_select %p164, %s14, 1
      %s166 = scalar_lea.vmem %s3, %s165
      %v168 = vld [vmem:[%s163] sm:$0xf]
      %v169 = vld [vmem:[%s163 + $0x4] sm:$0xf]
      %v170 = vld [vmem:[%s163 + $0xc] sm:$0xf]
      %v171 = vld [vmem:[%s163 + $0x10] sm:$0xf]
      %v172 = vld [vmem:[%s163 + $0x18] sm:$0xf]
      %v173 = vld [vmem:[%s163 + $0x1c] sm:$0xf]
      %v174 = vld [vmem:[%s163 + $0x24] sm:$0xf]
      %v175 = vld [vmem:[%s163 + $0x28] sm:$0xf]
      %v176 = vld [vmem:[%s163 + $0x30] sm:$0xf]
      %v177 = vld [vmem:[%s163 + $0x34] sm:$0xf]
      %v178 = vld [vmem:[%s163 + $0x3c] sm:$0xf]
      %v179 = vld [vmem:[%s163 + $0x40] sm:$0xf]
      %v180 = vld [vmem:[%s163 + $0x48] sm:$0xf]
      %v181 = vld [vmem:[%s163 + $0x4c] sm:$0xf]
      %v182 = vld [vmem:[%s163 + $0x54] sm:$0xf]
      %v183 = vld [vmem:[%s163 + $0x58] sm:$0xf]
      %v184 = vld [vmem:[%s163 + $0x60] sm:$0xf]
      %v185 = vld [vmem:[%s163 + $0x64] sm:$0xf]
      %v186 = vld [vmem:[%s163 + $0x6c] sm:$0xf]
      %v187 = vld [vmem:[%s163 + $0x70] sm:$0xf]
      %v188 = vld [vmem:[%s163 + $0x78] sm:$0xf]
      %v189 = vld [vmem:[%s163 + $0x7c] sm:$0xf]
      %v190 = vld [vmem:[%s163 + $0x84] sm:$0xf]
      %v191 = vld [vmem:[%s163 + $0x88] sm:$0xf]
      %v192 = vld [vmem:[%s163 + $0x90] sm:$0xf]
      %v193 = vld [vmem:[%s163 + $0x94] sm:$0xf]
      %v194 = vld [vmem:[%s163 + $0x9c] sm:$0xf]
      %v195 = vld [vmem:[%s163 + $0xa0] sm:$0xf]
      %v196 = vld [vmem:[%s163 + $0xa8] sm:$0xf]
      %v197 = vld [vmem:[%s163 + $0xac] sm:$0xf]
      %v198 = vld [vmem:[%s163 + $0xb4] sm:$0xf]
      %v199 = vld [vmem:[%s163 + $0xb8] sm:$0xf]
      %v200 = vld [vmem:[%s1] sm:$0x3]
      %v201 = vld [vmem:[%s163 + $0x8] sm:$0x1]
      %v202 = vld [vmem:[%s163 + $0x14] sm:$0x1]
      %v203 = vld [vmem:[%s163 + $0x20] sm:$0x1]
      %v204 = vld [vmem:[%s163 + $0x2c] sm:$0x1]
      %v205 = vld [vmem:[%s163 + $0x38] sm:$0x1]
      %v206 = vld [vmem:[%s163 + $0x44] sm:$0x1]
      %v207 = vld [vmem:[%s163 + $0x50] sm:$0x1]
      %v208 = vld [vmem:[%s163 + $0x5c] sm:$0x1]
      %v209 = vld [vmem:[%s163 + $0x68] sm:$0x1]
      %v210 = vld [vmem:[%s163 + $0x74] sm:$0x1]
      %v211 = vld [vmem:[%s163 + $0x80] sm:$0x1]
      %v212 = vld [vmem:[%s163 + $0x8c] sm:$0x1]
      %v213 = vld [vmem:[%s163 + $0x98] sm:$0x1]
      %v214 = vld [vmem:[%s163 + $0xa4] sm:$0x1]
      %v215 = vld [vmem:[%s163 + $0xb0] sm:$0x1]
      %v216 = vld [vmem:[%s163 + $0xbc] sm:$0x1]
      %vm217 = vsmask.f32 3328
      %vm218 = vsmask.f32 7440
      %vm219 = vmor %vm217, %vm218
      %v221 = vshrl.u32 %v168, 16
      %v223 = vrot.slane %v221, 4
      %v224 = vshll.u32 %v168, 16
      %v226 = vrot.slane %v224, 5
      %v227 = vor.u32 %v223, %v226
      %v228 = vrot.slane %v227, 4
      %v230 = vshll.u32 %v169, 16
      %v232 = vrot.slane %v230, 5
      %v233 = vsel %vm219, %v228, %v232
      %v234 = vshrl.u32 %v169, 16
      %v236 = vrot.slane %v234, 4
      %v237 = vor.u32 %v236, %v232
      %v238 = vrot.slane %v237, 4
      %v240 = vshll.u32 %v201, 16
      %v242 = vrot.slane %v240, 5
      %v243 = vsel %vm219, %v238, %v242
      %v245 = vshrl.u32 %v170, 16
      %v247 = vrot.slane %v245, 4
      %v248 = vshll.u32 %v170, 16
      %v250 = vrot.slane %v248, 5
      %v251 = vor.u32 %v247, %v250
      %v252 = vrot.slane %v251, 4
      %v254 = vshll.u32 %v171, 16
      %v256 = vrot.slane %v254, 5
      %v257 = vsel %vm219, %v252, %v256
      %v258 = vshrl.u32 %v171, 16
      %v260 = vrot.slane %v258, 4
      %v261 = vor.u32 %v260, %v256
      %v262 = vrot.slane %v261, 4
      %v264 = vshll.u32 %v202, 16
      %v266 = vrot.slane %v264, 5
      %v267 = vsel %vm219, %v262, %v266
      %v269 = vshrl.u32 %v172, 16
      %v271 = vrot.slane %v269, 4
      %v272 = vshll.u32 %v172, 16
      %v274 = vrot.slane %v272, 5
      %v275 = vor.u32 %v271, %v274
      %v276 = vrot.slane %v275, 4
      %v278 = vshll.u32 %v173, 16
      %v280 = vrot.slane %v278, 5
      %v281 = vsel %vm219, %v276, %v280
      %v282 = vshrl.u32 %v173, 16
      %v284 = vrot.slane %v282, 4
      %v285 = vor.u32 %v284, %v280
      %v286 = vrot.slane %v285, 4
      %v288 = vshll.u32 %v203, 16
      %v290 = vrot.slane %v288, 5
      %v291 = vsel %vm219, %v286, %v290
      %v293 = vshrl.u32 %v174, 16
      %v295 = vrot.slane %v293, 4
      %v296 = vshll.u32 %v174, 16
      %v298 = vrot.slane %v296, 5
      %v299 = vor.u32 %v295, %v298
      %v300 = vrot.slane %v299, 4
      %v302 = vshll.u32 %v175, 16
      %v304 = vrot.slane %v302, 5
      %v305 = vsel %vm219, %v300, %v304
      %v306 = vshrl.u32 %v175, 16
      %v308 = vrot.slane %v306, 4
      %v309 = vor.u32 %v308, %v304
      %v310 = vrot.slane %v309, 4
      %v312 = vshll.u32 %v204, 16
      %v314 = vrot.slane %v312, 5
      %v315 = vsel %vm219, %v310, %v314
      %v317 = vshrl.u32 %v176, 16
      %v319 = vrot.slane %v317, 4
      %v320 = vshll.u32 %v176, 16
      %v322 = vrot.slane %v320, 5
      %v323 = vor.u32 %v319, %v322
      %v324 = vrot.slane %v323, 4
      %v326 = vshll.u32 %v177, 16
      %v328 = vrot.slane %v326, 5
      %v329 = vsel %vm219, %v324, %v328
      %v330 = vshrl.u32 %v177, 16
      %v332 = vrot.slane %v330, 4
      %v333 = vor.u32 %v332, %v328
      %v334 = vrot.slane %v333, 4
      %v336 = vshll.u32 %v205, 16
      %v338 = vrot.slane %v336, 5
      %v339 = vsel %vm219, %v334, %v338
      %v341 = vshrl.u32 %v178, 16
      %v343 = vrot.slane %v341, 4
      %v344 = vshll.u32 %v178, 16
      %v346 = vrot.slane %v344, 5
      %v347 = vor.u32 %v343, %v346
      %v348 = vrot.slane %v347, 4
      %v350 = vshll.u32 %v179, 16
      %v352 = vrot.slane %v350, 5
      %v353 = vsel %vm219, %v348, %v352
      %v354 = vshrl.u32 %v179, 16
      %v356 = vrot.slane %v354, 4
      %v357 = vor.u32 %v356, %v352
      %v358 = vrot.slane %v357, 4
      %v360 = vshll.u32 %v206, 16
      %v362 = vrot.slane %v360, 5
      %v363 = vsel %vm219, %v358, %v362
      %v365 = vshrl.u32 %v180, 16
      %v367 = vrot.slane %v365, 4
      %v368 = vshll.u32 %v180, 16
      %v370 = vrot.slane %v368, 5
      %v371 = vor.u32 %v367, %v370
      %v372 = vrot.slane %v371, 4
      %v374 = vshll.u32 %v181, 16
      %v376 = vrot.slane %v374, 5
      %v377 = vsel %vm219, %v372, %v376
      %v378 = vshrl.u32 %v181, 16
      %v380 = vrot.slane %v378, 4
      %v381 = vor.u32 %v380, %v376
      %v382 = vrot.slane %v381, 4
      %v384 = vshll.u32 %v207, 16
      %v386 = vrot.slane %v384, 5
      %v387 = vsel %vm219, %v382, %v386
      %v389 = vshrl.u32 %v182, 16
      %v391 = vrot.slane %v389, 4
      %v392 = vshll.u32 %v182, 16
      %v394 = vrot.slane %v392, 5
      %v395 = vor.u32 %v391, %v394
      %v396 = vrot.slane %v395, 4
      %v398 = vshll.u32 %v183, 16
      %v400 = vrot.slane %v398, 5
      %v401 = vsel %vm219, %v396, %v400
      %v402 = vshrl.u32 %v183, 16
      %v404 = vrot.slane %v402, 4
      %v405 = vor.u32 %v404, %v400
      %v406 = vrot.slane %v405, 4
      %v408 = vshll.u32 %v208, 16
      %v410 = vrot.slane %v408, 5
      %v411 = vsel %vm219, %v406, %v410
      %v413 = vshrl.u32 %v184, 16
      %v415 = vrot.slane %v413, 4
      %v416 = vshll.u32 %v184, 16
      %v418 = vrot.slane %v416, 5
      %v419 = vor.u32 %v415, %v418
      %v420 = vrot.slane %v419, 4
      %v422 = vshll.u32 %v185, 16
      %v424 = vrot.slane %v422, 5
      %v425 = vsel %vm219, %v420, %v424
      %v426 = vshrl.u32 %v185, 16
      %v428 = vrot.slane %v426, 4
      %v429 = vor.u32 %v428, %v424
      %v430 = vrot.slane %v429, 4
      %v432 = vshll.u32 %v209, 16
      %v434 = vrot.slane %v432, 5
      %v435 = vsel %vm219, %v430, %v434
      %v437 = vshrl.u32 %v186, 16
      %v439 = vrot.slane %v437, 4
      %v440 = vshll.u32 %v186, 16
      %v442 = vrot.slane %v440, 5
      %v443 = vor.u32 %v439, %v442
      %v444 = vrot.slane %v443, 4
      %v446 = vshll.u32 %v187, 16
      %v448 = vrot.slane %v446, 5
      %v449 = vsel %vm219, %v444, %v448
      %v450 = vshrl.u32 %v187, 16
      %v452 = vrot.slane %v450, 4
      %v453 = vor.u32 %v452, %v448
      %v454 = vrot.slane %v453, 4
      %v456 = vshll.u32 %v210, 16
      %v458 = vrot.slane %v456, 5
      %v459 = vsel %vm219, %v454, %v458
      %v461 = vshrl.u32 %v188, 16
      %v463 = vrot.slane %v461, 4
      %v464 = vshll.u32 %v188, 16
      %v466 = vrot.slane %v464, 5
      %v467 = vor.u32 %v463, %v466
      %v468 = vrot.slane %v467, 4
      %v470 = vshll.u32 %v189, 16
      %v472 = vrot.slane %v470, 5
      %v473 = vsel %vm219, %v468, %v472
      %v474 = vshrl.u32 %v189, 16
      %v476 = vrot.slane %v474, 4
      %v477 = vor.u32 %v476, %v472
      %v478 = vrot.slane %v477, 4
      %v480 = vshll.u32 %v211, 16
      %v482 = vrot.slane %v480, 5
      %v483 = vsel %vm219, %v478, %v482
      %v485 = vshrl.u32 %v190, 16
      %v487 = vrot.slane %v485, 4
      %v488 = vshll.u32 %v190, 16
      %v490 = vrot.slane %v488, 5
      %v491 = vor.u32 %v487, %v490
      %v492 = vrot.slane %v491, 4
      %v494 = vshll.u32 %v191, 16
      %v496 = vrot.slane %v494, 5
      %v497 = vsel %vm219, %v492, %v496
      %v498 = vshrl.u32 %v191, 16
      %v500 = vrot.slane %v498, 4
      %v501 = vor.u32 %v500, %v496
      %v502 = vrot.slane %v501, 4
      %v504 = vshll.u32 %v212, 16
      %v506 = vrot.slane %v504, 5
      %v507 = vsel %vm219, %v502, %v506
      %v509 = vshrl.u32 %v192, 16
      %v511 = vrot.slane %v509, 4
      %v512 = vshll.u32 %v192, 16
      %v514 = vrot.slane %v512, 5
      %v515 = vor.u32 %v511, %v514
      %v516 = vrot.slane %v515, 4
      %v518 = vshll.u32 %v193, 16
      %v520 = vrot.slane %v518, 5
      %v521 = vsel %vm219, %v516, %v520
      %v522 = vshrl.u32 %v193, 16
      %v524 = vrot.slane %v522, 4
      %v525 = vor.u32 %v524, %v520
      %v526 = vrot.slane %v525, 4
      %v528 = vshll.u32 %v213, 16
      %v530 = vrot.slane %v528, 5
      %v531 = vsel %vm219, %v526, %v530
      %v533 = vshrl.u32 %v194, 16
      %v535 = vrot.slane %v533, 4
      %v536 = vshll.u32 %v194, 16
      %v538 = vrot.slane %v536, 5
      %v539 = vor.u32 %v535, %v538
      %v540 = vrot.slane %v539, 4
      %v542 = vshll.u32 %v195, 16
      %v544 = vrot.slane %v542, 5
      %v545 = vsel %vm219, %v540, %v544
      %v546 = vshrl.u32 %v195, 16
      %v548 = vrot.slane %v546, 4
      %v549 = vor.u32 %v548, %v544
      %v550 = vrot.slane %v549, 4
      %v552 = vshll.u32 %v214, 16
      %v554 = vrot.slane %v552, 5
      %v555 = vsel %vm219, %v550, %v554
      %v557 = vshrl.u32 %v196, 16
      %v559 = vrot.slane %v557, 4
      %v560 = vshll.u32 %v196, 16
      %v562 = vrot.slane %v560, 5
      %v563 = vor.u32 %v559, %v562
      %v564 = vrot.slane %v563, 4
      %v566 = vshll.u32 %v197, 16
      %v568 = vrot.slane %v566, 5
      %v569 = vsel %vm219, %v564, %v568
      %v570 = vshrl.u32 %v197, 16
      %v572 = vrot.slane %v570, 4
      %v573 = vor.u32 %v572, %v568
      %v574 = vrot.slane %v573, 4
      %v576 = vshll.u32 %v215, 16
      %v578 = vrot.slane %v576, 5
      %v579 = vsel %vm219, %v574, %v578
      %v581 = vshrl.u32 %v198, 16
      %v583 = vrot.slane %v581, 4
      %v584 = vshll.u32 %v198, 16
      %v586 = vrot.slane %v584, 5
      %v587 = vor.u32 %v583, %v586
      %v588 = vrot.slane %v587, 4
      %v590 = vshll.u32 %v199, 16
      %v592 = vrot.slane %v590, 5
      %v593 = vsel %vm219, %v588, %v592
      %v594 = vshrl.u32 %v199, 16
      %v596 = vrot.slane %v594, 4
      %v597 = vor.u32 %v596, %v592
      %v598 = vrot.slane %v597, 4
      %v600 = vshll.u32 %v216, 16
      %v602 = vrot.slane %v600, 5
      %v603 = vsel %vm219, %v598, %v602
      %s604 = scalar_lea.vmem %s1, 2
      %v605 = vld [vmem:[%s604] sm:$0x3]
      %v606 = vunpack.c.l.b16 %v233
      %v607 = vunpack.c.l.b16 %v243
      %v608 = vunpack.c.l.b16 %v257
      %v609 = vunpack.c.l.b16 %v267
      %v610 = vunpack.c.l.b16 %v281
      %v611 = vunpack.c.l.b16 %v291
      %v612 = vunpack.c.l.b16 %v305
      %v613 = vunpack.c.l.b16 %v315
      %v614 = vunpack.c.l.b16 %v329
      %v615 = vunpack.c.l.b16 %v339
      %v616 = vunpack.c.l.b16 %v353
      %v617 = vunpack.c.l.b16 %v363
      %v618 = vunpack.c.l.b16 %v377
      %v619 = vunpack.c.l.b16 %v387
      %v620 = vunpack.c.l.b16 %v401
      %v621 = vunpack.c.l.b16 %v411
      %v622 = vunpack.c.l.b16 %v425
      %v623 = vunpack.c.l.b16 %v435
      %v624 = vunpack.c.l.b16 %v449
      %v625 = vunpack.c.l.b16 %v459
      %v626 = vunpack.c.l.b16 %v473
      %v627 = vunpack.c.l.b16 %v483
      %v628 = vunpack.c.l.b16 %v497
      %v629 = vunpack.c.l.b16 %v507
      %v630 = vunpack.c.l.b16 %v521
      %v631 = vunpack.c.l.b16 %v531
      %v632 = vunpack.c.l.b16 %v545
      %v633 = vunpack.c.l.b16 %v555
      %v634 = vunpack.c.l.b16 %v569
      %v635 = vunpack.c.l.b16 %v579
      %v636 = vunpack.c.l.b16 %v593
      %v637 = vunpack.c.l.b16 %v603
      %v638 = vpack.c.b16 %v607, %v606
      %v639 = vpack.c.b16 %v609, %v608
      %v640 = vpack.c.b16 %v611, %v610
      %v641 = vpack.c.b16 %v613, %v612
      %v642 = vpack.c.b16 %v615, %v614
      %v643 = vpack.c.b16 %v617, %v616
      %v644 = vpack.c.b16 %v619, %v618
      %v645 = vpack.c.b16 %v621, %v620
      %v646 = vpack.c.b16 %v623, %v622
      %v647 = vpack.c.b16 %v625, %v624
      %v648 = vpack.c.b16 %v627, %v626
      %v649 = vpack.c.b16 %v629, %v628
      %v650 = vpack.c.b16 %v631, %v630
      %v651 = vpack.c.b16 %v633, %v632
      %v652 = vpack.c.b16 %v635, %v634
      %v653 = vpack.c.b16 %v637, %v636
      %vm654 = vcmask 31744
      %v656 = vsel %vm654, %v638, 0
      %v659 = vsel %vm654, %v639, 0
      %v662 = vsel %vm654, %v640, 0
      %v665 = vsel %vm654, %v641, 0
      %v668 = vsel %vm654, %v642, 0
      %v671 = vsel %vm654, %v643, 0
      %v674 = vsel %vm654, %v644, 0
      %v677 = vsel %vm654, %v645, 0
      %v680 = vsel %vm654, %v646, 0
      %v683 = vsel %vm654, %v647, 0
      %v686 = vsel %vm654, %v648, 0
      %v689 = vsel %vm654, %v649, 0
      %v692 = vsel %vm654, %v650, 0
      %v695 = vsel %vm654, %v651, 0
      %v698 = vsel %vm654, %v652, 0
      %v701 = vsel %vm654, %v653, 0
      %vm703 = vcmask 1041408
      %v705 = vsel %vm703, %v605, 0
      %707 = vmatprep.subr.bf16.mxu0 0
      %708 = vmatpush1.bf16.msra.mxu0 %v705
      %709 = vmatprep.subr.bf16.mxu0 0
      %710 = vmatpush1.bf16.msra.mxu0 0
      %711 = vmatprep.subr.bf16.mxu0 0
      %712 = vmatpush1.bf16.msra.mxu0 0
      %713 = vmatprep.subr.bf16.mxu0 0
      %714 = vmatpush1.bf16.msra.mxu0 0
      %715 = vmatprep.subr.bf16.mxu0 0
      %716 = vmatpush1.bf16.msra.mxu0 0
      %717 = vmatprep.subr.bf16.mxu0 0
      %718 = vmatpush1.bf16.msra.mxu0 0
      %719 = vmatprep.subr.bf16.mxu0 0
      %720 = vmatpush1.bf16.msra.mxu0 0
      %721 = vmatprep.subr.bf16.mxu0 0
      %722 = vmatpush1.bf16.msra.mxu0 0
      %723 = vmatprep.subr.bf16.mxu0 0
      %724 = vmatpush1.bf16.msra.mxu0 0
      %725 = vmatprep.subr.bf16.mxu0 0
      %726 = vmatpush1.bf16.msra.mxu0 0
      %727 = vmatprep.subr.bf16.mxu0 0
      %728 = vmatpush1.bf16.msra.mxu0 0
      %729 = vmatprep.subr.bf16.mxu0 0
      %730 = vmatpush1.bf16.msra.mxu0 0
      %731 = vmatprep.subr.bf16.mxu0 0
      %732 = vmatpush1.bf16.msra.mxu0 0
      %733 = vmatprep.subr.bf16.mxu0 0
      %734 = vmatpush1.bf16.msra.mxu0 0
      %735 = vmatprep.subr.bf16.mxu0 0
      %736 = vmatpush1.bf16.msra.mxu0 0
      %737 = vmatprep.subr.bf16.mxu0 0
      %738 = vmatpush1.bf16.msra.mxu0 0
      %739 = vmatprep.mubr.bf16.mxu0 0
      %740 = vmatmul.mubr.bf16.gmra.mrb[0].mxu0 %v656
      %v741 = vpop.f32.mrb[0].mxu0
      %v742 = vadd.f32 0.0, %v741
      %v743 = vpop.f32.mrb[0].mxu0
      %v744 = vpop.f32.mrb[0].mxu0
      %v745 = vadd.f32 0.0, %v744
      %v746 = vpop.f32.mrb[0].mxu0
      %747 = vmatprep.mubr.bf16.mxu0 0
      %748 = vmatmul.mubr.bf16.gmra.mrb[0].mxu0 %v659
      %v749 = vpop.f32.mrb[0].mxu0
      %v750 = vadd.f32 0.0, %v749
      %v751 = vpop.f32.mrb[0].mxu0
      %v752 = vpop.f32.mrb[0].mxu0
      %v753 = vadd.f32 0.0, %v752
      %v754 = vpop.f32.mrb[0].mxu0
      %755 = vmatprep.mubr.bf16.mxu0 0
      %756 = vmatmul.mubr.bf16.gmra.mrb[0].mxu0 %v662
      %v757 = vpop.f32.mrb[0].mxu0
      %v758 = vadd.f32 0.0, %v757
      %v759 = vpop.f32.mrb[0].mxu0
      %v760 = vpop.f32.mrb[0].mxu0
      %v761 = vadd.f32 0.0, %v760
      %v762 = vpop.f32.mrb[0].mxu0
      %763 = vmatprep.mubr.bf16.mxu0 0
      %764 = vmatmul.mubr.bf16.gmra.mrb[0].mxu0 %v665
      %v765 = vpop.f32.mrb[0].mxu0
      %v766 = vadd.f32 0.0, %v765
      %v767 = vpop.f32.mrb[0].mxu0
      %v768 = vpop.f32.mrb[0].mxu0
      %v769 = vadd.f32 0.0, %v768
      %v770 = vpop.f32.mrb[0].mxu0
      %771 = vmatprep.mubr.bf16.mxu0 0
      %772 = vmatmul.mubr.bf16.gmra.mrb[0].mxu0 %v668
      %v773 = vpop.f32.mrb[0].mxu0
      %v774 = vadd.f32 0.0, %v773
      %v775 = vpop.f32.mrb[0].mxu0
      %v776 = vpop.f32.mrb[0].mxu0
      %v777 = vadd.f32 0.0, %v776
      %v778 = vpop.f32.mrb[0].mxu0
      %779 = vmatprep.mubr.bf16.mxu0 0
      %780 = vmatmul.mubr.bf16.gmra.mrb[0].mxu0 %v671
      %v781 = vpop.f32.mrb[0].mxu0
      %v782 = vadd.f32 0.0, %v781
      %v783 = vpop.f32.mrb[0].mxu0
      %v784 = vpop.f32.mrb[0].mxu0
      %v785 = vadd.f32 0.0, %v784
      %v786 = vpop.f32.mrb[0].mxu0
      %787 = vmatprep.mubr.bf16.mxu0 0
      %788 = vmatmul.mubr.bf16.gmra.mrb[0].mxu0 %v674
      %v789 = vpop.f32.mrb[0].mxu0
      %v790 = vadd.f32 0.0, %v789
      %v791 = vpop.f32.mrb[0].mxu0
      %v792 = vpop.f32.mrb[0].mxu0
      %v793 = vadd.f32 0.0, %v792
      %v794 = vpop.f32.mrb[0].mxu0
      %795 = vmatprep.mubr.bf16.mxu0 0
      %796 = vmatmul.mubr.bf16.gmra.mrb[0].mxu0 %v677
      %v797 = vpop.f32.mrb[0].mxu0
      %v798 = vadd.f32 0.0, %v797
      %v799 = vpop.f32.mrb[0].mxu0
      %v800 = vpop.f32.mrb[0].mxu0
      %v801 = vadd.f32 0.0, %v800
      %v802 = vpop.f32.mrb[0].mxu0
      %803 = vmatprep.mubr.bf16.mxu0 0
      %804 = vmatmul.mubr.bf16.gmra.mrb[0].mxu0 %v680
      %v805 = vpop.f32.mrb[0].mxu0
      %v806 = vadd.f32 0.0, %v805
      %v807 = vpop.f32.mrb[0].mxu0
      %v808 = vpop.f32.mrb[0].mxu0
      %v809 = vadd.f32 0.0, %v808
      %v810 = vpop.f32.mrb[0].mxu0
      %811 = vmatprep.mubr.bf16.mxu0 0
      %812 = vmatmul.mubr.bf16.gmra.mrb[0].mxu0 %v683
      %v813 = vpop.f32.mrb[0].mxu0
      %v814 = vadd.f32 0.0, %v813
      %v815 = vpop.f32.mrb[0].mxu0
      %v816 = vpop.f32.mrb[0].mxu0
      %v817 = vadd.f32 0.0, %v816
      %v818 = vpop.f32.mrb[0].mxu0
      %819 = vmatprep.mubr.bf16.mxu0 0
      %820 = vmatmul.mubr.bf16.gmra.mrb[0].mxu0 %v686
      %v821 = vpop.f32.mrb[0].mxu0
      %v822 = vadd.f32 0.0, %v821
      %v823 = vpop.f32.mrb[0].mxu0
      %v824 = vpop.f32.mrb[0].mxu0
      %v825 = vadd.f32 0.0, %v824
      %v826 = vpop.f32.mrb[0].mxu0
      %827 = vmatprep.mubr.bf16.mxu0 0
      %828 = vmatmul.mubr.bf16.gmra.mrb[0].mxu0 %v689
      %v829 = vpop.f32.mrb[0].mxu0
      %v830 = vadd.f32 0.0, %v829
      %v831 = vpop.f32.mrb[0].mxu0
      %v832 = vpop.f32.mrb[0].mxu0
      %v833 = vadd.f32 0.0, %v832
      %v834 = vpop.f32.mrb[0].mxu0
      %835 = vmatprep.mubr.bf16.mxu0 0
      %836 = vmatmul.mubr.bf16.gmra.mrb[0].mxu0 %v692
      %v837 = vpop.f32.mrb[0].mxu0
      %v838 = vadd.f32 0.0, %v837
      %v839 = vpop.f32.mrb[0].mxu0
      %v840 = vpop.f32.mrb[0].mxu0
      %v841 = vadd.f32 0.0, %v840
      %v842 = vpop.f32.mrb[0].mxu0
      %843 = vmatprep.mubr.bf16.mxu0 0
      %844 = vmatmul.mubr.bf16.gmra.mrb[0].mxu0 %v695
      %v845 = vpop.f32.mrb[0].mxu0
      %v846 = vadd.f32 0.0, %v845
      %v847 = vpop.f32.mrb[0].mxu0
      %v848 = vpop.f32.mrb[0].mxu0
      %v849 = vadd.f32 0.0, %v848
      %v850 = vpop.f32.mrb[0].mxu0
      %851 = vmatprep.mubr.bf16.mxu0 0
      %852 = vmatmul.mubr.bf16.gmra.mrb[0].mxu0 %v698
      %v853 = vpop.f32.mrb[0].mxu0
      %v854 = vadd.f32 0.0, %v853
      %v855 = vpop.f32.mrb[0].mxu0
      %v856 = vpop.f32.mrb[0].mxu0
      %v857 = vadd.f32 0.0, %v856
      %v858 = vpop.f32.mrb[0].mxu0
      %859 = vmatprep.mubr.bf16.mxu0 0
      %860 = vmatmul.mubr.bf16.gmra.mrb[0].mxu0 %v701
      %v861 = vpop.f32.mrb[0].mxu0
      %v862 = vadd.f32 0.0, %v861
      %v863 = vpop.f32.mrb[0].mxu0
      %v864 = vpop.f32.mrb[0].mxu0
      %v865 = vadd.f32 0.0, %v864
      %v866 = vpop.f32.mrb[0].mxu0
      %867 = vdwg.mxu0
      %v900 = vunpack.c.l.b16 %v168
      %v901 = vunpack.c.l.b16 %v169
      %v902 = vunpack.c.l.b16 %v170
      %v903 = vunpack.c.l.b16 %v171
      %v904 = vunpack.c.l.b16 %v172
      %v905 = vunpack.c.l.b16 %v173
      %v906 = vunpack.c.l.b16 %v174
      %v907 = vunpack.c.l.b16 %v175
      %v908 = vunpack.c.l.b16 %v176
      %v909 = vunpack.c.l.b16 %v177
      %v910 = vunpack.c.l.b16 %v178
      %v911 = vunpack.c.l.b16 %v179
      %v912 = vunpack.c.l.b16 %v180
      %v913 = vunpack.c.l.b16 %v181
      %v914 = vunpack.c.l.b16 %v182
      %v915 = vunpack.c.l.b16 %v183
      %v916 = vunpack.c.l.b16 %v184
      %v917 = vunpack.c.l.b16 %v185
      %v918 = vunpack.c.l.b16 %v186
      %v919 = vunpack.c.l.b16 %v187
      %v920 = vunpack.c.l.b16 %v188
      %v921 = vunpack.c.l.b16 %v189
      %v922 = vunpack.c.l.b16 %v190
      %v923 = vunpack.c.l.b16 %v191
      %v924 = vunpack.c.l.b16 %v192
      %v925 = vunpack.c.l.b16 %v193
      %v926 = vunpack.c.l.b16 %v194
      %v927 = vunpack.c.l.b16 %v195
      %v928 = vunpack.c.l.b16 %v196
      %v929 = vunpack.c.l.b16 %v197
      %v930 = vunpack.c.l.b16 %v198
      %v931 = vunpack.c.l.b16 %v199
      %v932 = vpack.c.b16 %v901, %v900
      %v933 = vpack.c.b16 %v903, %v902
      %v934 = vpack.c.b16 %v905, %v904
      %v935 = vpack.c.b16 %v907, %v906
      %v936 = vpack.c.b16 %v909, %v908
      %v937 = vpack.c.b16 %v911, %v910
      %v938 = vpack.c.b16 %v913, %v912
      %v939 = vpack.c.b16 %v915, %v914
      %v940 = vpack.c.b16 %v917, %v916
      %v941 = vpack.c.b16 %v919, %v918
      %v942 = vpack.c.b16 %v921, %v920
      %v943 = vpack.c.b16 %v923, %v922
      %v944 = vpack.c.b16 %v925, %v924
      %v945 = vpack.c.b16 %v927, %v926
      %v946 = vpack.c.b16 %v929, %v928
      %v947 = vpack.c.b16 %v931, %v930
      %v949 = vsel %vm654, %v932, 0
      %v952 = vsel %vm654, %v933, 0
      %v955 = vsel %vm654, %v934, 0
      %v958 = vsel %vm654, %v935, 0
      %v961 = vsel %vm654, %v936, 0
      %v964 = vsel %vm654, %v937, 0
      %v967 = vsel %vm654, %v938, 0
      %v970 = vsel %vm654, %v939, 0
      %v973 = vsel %vm654, %v940, 0
      %v976 = vsel %vm654, %v941, 0
      %v979 = vsel %vm654, %v942, 0
      %v982 = vsel %vm654, %v943, 0
      %v985 = vsel %vm654, %v944, 0
      %v988 = vsel %vm654, %v945, 0
      %v991 = vsel %vm654, %v946, 0
      %v994 = vsel %vm654, %v947, 0
      %v997 = vsel %vm703, %v200, 0
      %999 = vmatprep.subr.bf16.mxu0 0
      %1000 = vmatpush1.bf16.msra.mxu0 %v997
      %1001 = vmatprep.subr.bf16.mxu0 0
      %1002 = vmatpush1.bf16.msra.mxu0 0
      %1003 = vmatprep.subr.bf16.mxu0 0
      %1004 = vmatpush1.bf16.msra.mxu0 0
      %1005 = vmatprep.subr.bf16.mxu0 0
      %1006 = vmatpush1.bf16.msra.mxu0 0
      %1007 = vmatprep.subr.bf16.mxu0 0
      %1008 = vmatpush1.bf16.msra.mxu0 0
      %1009 = vmatprep.subr.bf16.mxu0 0
      %1010 = vmatpush1.bf16.msra.mxu0 0
      %1011 = vmatprep.subr.bf16.mxu0 0
      %1012 = vmatpush1.bf16.msra.mxu0 0
      %1013 = vmatprep.subr.bf16.mxu0 0
      %1014 = vmatpush1.bf16.msra.mxu0 0
      %1015 = vmatprep.subr.bf16.mxu0 0
      %1016 = vmatpush1.bf16.msra.mxu0 0
      %1017 = vmatprep.subr.bf16.mxu0 0
      %1018 = vmatpush1.bf16.msra.mxu0 0
      %1019 = vmatprep.subr.bf16.mxu0 0
      %1020 = vmatpush1.bf16.msra.mxu0 0
      %1021 = vmatprep.subr.bf16.mxu0 0
      %1022 = vmatpush1.bf16.msra.mxu0 0
      %1023 = vmatprep.subr.bf16.mxu0 0
      %1024 = vmatpush1.bf16.msra.mxu0 0
      %1025 = vmatprep.subr.bf16.mxu0 0
      %1026 = vmatpush1.bf16.msra.mxu0 0
      %1027 = vmatprep.subr.bf16.mxu0 0
      %1028 = vmatpush1.bf16.msra.mxu0 0
      %1029 = vmatprep.subr.bf16.mxu0 0
      %1030 = vmatpush1.bf16.msra.mxu0 0
      %1031 = vmatprep.mubr.bf16.mxu0 0
      %1032 = vmatmul.mubr.bf16.gmra.mrb[0].mxu0 %v949
      %v1033 = vpop.f32.mrb[0].mxu0
      %v1034 = vadd.f32 %v742, %v1033
      %v1035 = vpop.f32.mrb[0].mxu0
      %v1036 = vpop.f32.mrb[0].mxu0
      %v1037 = vadd.f32 %v745, %v1036
      %v1038 = vpop.f32.mrb[0].mxu0
      %1039 = vmatprep.mubr.bf16.mxu0 0
      %1040 = vmatmul.mubr.bf16.gmra.mrb[0].mxu0 %v952
      %v1041 = vpop.f32.mrb[0].mxu0
      %v1042 = vadd.f32 %v750, %v1041
      %v1043 = vpop.f32.mrb[0].mxu0
      %v1044 = vpop.f32.mrb[0].mxu0
      %v1045 = vadd.f32 %v753, %v1044
      %v1046 = vpop.f32.mrb[0].mxu0
      %1047 = vmatprep.mubr.bf16.mxu0 0
      %1048 = vmatmul.mubr.bf16.gmra.mrb[0].mxu0 %v955
      %v1049 = vpop.f32.mrb[0].mxu0
      %v1050 = vadd.f32 %v758, %v1049
      %v1051 = vpop.f32.mrb[0].mxu0
      %v1052 = vpop.f32.mrb[0].mxu0
      %v1053 = vadd.f32 %v761, %v1052
      %v1054 = vpop.f32.mrb[0].mxu0
      %1055 = vmatprep.mubr.bf16.mxu0 0
      %1056 = vmatmul.mubr.bf16.gmra.mrb[0].mxu0 %v958
      %v1057 = vpop.f32.mrb[0].mxu0
      %v1058 = vadd.f32 %v766, %v1057
      %v1059 = vpop.f32.mrb[0].mxu0
      %v1060 = vpop.f32.mrb[0].mxu0
      %v1061 = vadd.f32 %v769, %v1060
      %v1062 = vpop.f32.mrb[0].mxu0
      %1063 = vmatprep.mubr.bf16.mxu0 0
      %1064 = vmatmul.mubr.bf16.gmra.mrb[0].mxu0 %v961
      %v1065 = vpop.f32.mrb[0].mxu0
      %v1066 = vadd.f32 %v774, %v1065
      %v1067 = vpop.f32.mrb[0].mxu0
      %v1068 = vpop.f32.mrb[0].mxu0
      %v1069 = vadd.f32 %v777, %v1068
      %v1070 = vpop.f32.mrb[0].mxu0
      %1071 = vmatprep.mubr.bf16.mxu0 0
      %1072 = vmatmul.mubr.bf16.gmra.mrb[0].mxu0 %v964
      %v1073 = vpop.f32.mrb[0].mxu0
      %v1074 = vadd.f32 %v782, %v1073
      %v1075 = vpop.f32.mrb[0].mxu0
      %v1076 = vpop.f32.mrb[0].mxu0
      %v1077 = vadd.f32 %v785, %v1076
      %v1078 = vpop.f32.mrb[0].mxu0
      %1079 = vmatprep.mubr.bf16.mxu0 0
      %1080 = vmatmul.mubr.bf16.gmra.mrb[0].mxu0 %v967
      %v1081 = vpop.f32.mrb[0].mxu0
      %v1082 = vadd.f32 %v790, %v1081
      %v1083 = vpop.f32.mrb[0].mxu0
      %v1084 = vpop.f32.mrb[0].mxu0
      %v1085 = vadd.f32 %v793, %v1084
      %v1086 = vpop.f32.mrb[0].mxu0
      %1087 = vmatprep.mubr.bf16.mxu0 0
      %1088 = vmatmul.mubr.bf16.gmra.mrb[0].mxu0 %v970
      %v1089 = vpop.f32.mrb[0].mxu0
      %v1090 = vadd.f32 %v798, %v1089
      %v1091 = vpop.f32.mrb[0].mxu0
      %v1092 = vpop.f32.mrb[0].mxu0
      %v1093 = vadd.f32 %v801, %v1092
      %v1094 = vpop.f32.mrb[0].mxu0
      %1095 = vmatprep.mubr.bf16.mxu0 0
      %1096 = vmatmul.mubr.bf16.gmra.mrb[0].mxu0 %v973
      %v1097 = vpop.f32.mrb[0].mxu0
      %v1098 = vadd.f32 %v806, %v1097
      %v1099 = vpop.f32.mrb[0].mxu0
      %v1100 = vpop.f32.mrb[0].mxu0
      %v1101 = vadd.f32 %v809, %v1100
      %v1102 = vpop.f32.mrb[0].mxu0
      %1103 = vmatprep.mubr.bf16.mxu0 0
      %1104 = vmatmul.mubr.bf16.gmra.mrb[0].mxu0 %v976
      %v1105 = vpop.f32.mrb[0].mxu0
      %v1106 = vadd.f32 %v814, %v1105
      %v1107 = vpop.f32.mrb[0].mxu0
      %v1108 = vpop.f32.mrb[0].mxu0
      %v1109 = vadd.f32 %v817, %v1108
      %v1110 = vpop.f32.mrb[0].mxu0
      %1111 = vmatprep.mubr.bf16.mxu0 0
      %1112 = vmatmul.mubr.bf16.gmra.mrb[0].mxu0 %v979
      %v1113 = vpop.f32.mrb[0].mxu0
      %v1114 = vadd.f32 %v822, %v1113
      %v1115 = vpop.f32.mrb[0].mxu0
      %v1116 = vpop.f32.mrb[0].mxu0
      %v1117 = vadd.f32 %v825, %v1116
      %v1118 = vpop.f32.mrb[0].mxu0
      %1119 = vmatprep.mubr.bf16.mxu0 0
      %1120 = vmatmul.mubr.bf16.gmra.mrb[0].mxu0 %v982
      %v1121 = vpop.f32.mrb[0].mxu0
      %v1122 = vadd.f32 %v830, %v1121
      %v1123 = vpop.f32.mrb[0].mxu0
      %v1124 = vpop.f32.mrb[0].mxu0
      %v1125 = vadd.f32 %v833, %v1124
      %v1126 = vpop.f32.mrb[0].mxu0
      %1127 = vmatprep.mubr.bf16.mxu0 0
      %1128 = vmatmul.mubr.bf16.gmra.mrb[0].mxu0 %v985
      %v1129 = vpop.f32.mrb[0].mxu0
      %v1130 = vadd.f32 %v838, %v1129
      %v1131 = vpop.f32.mrb[0].mxu0
      %v1132 = vpop.f32.mrb[0].mxu0
      %v1133 = vadd.f32 %v841, %v1132
      %v1134 = vpop.f32.mrb[0].mxu0
      %1135 = vmatprep.mubr.bf16.mxu0 0
      %1136 = vmatmul.mubr.bf16.gmra.mrb[0].mxu0 %v988
      %v1137 = vpop.f32.mrb[0].mxu0
      %v1138 = vadd.f32 %v846, %v1137
      %v1139 = vpop.f32.mrb[0].mxu0
      %v1140 = vpop.f32.mrb[0].mxu0
      %v1141 = vadd.f32 %v849, %v1140
      %v1142 = vpop.f32.mrb[0].mxu0
      %1143 = vmatprep.mubr.bf16.mxu0 0
      %1144 = vmatmul.mubr.bf16.gmra.mrb[0].mxu0 %v991
      %v1145 = vpop.f32.mrb[0].mxu0
      %v1146 = vadd.f32 %v854, %v1145
      %v1147 = vpop.f32.mrb[0].mxu0
      %v1148 = vpop.f32.mrb[0].mxu0
      %v1149 = vadd.f32 %v857, %v1148
      %v1150 = vpop.f32.mrb[0].mxu0
      %1151 = vmatprep.mubr.bf16.mxu0 0
      %1152 = vmatmul.mubr.bf16.gmra.mrb[0].mxu0 %v994
      %v1153 = vpop.f32.mrb[0].mxu0
      %v1154 = vadd.f32 %v862, %v1153
      %v1155 = vpop.f32.mrb[0].mxu0
      %v1156 = vpop.f32.mrb[0].mxu0
      %v1157 = vadd.f32 %v865, %v1156
      %v1158 = vpop.f32.mrb[0].mxu0
      %1159 = vdwg.mxu0
      %v1160 = vld [vmem:[%s163] sm:$0xe]
      %v1161 = vld [vmem:[%s163 + $0xc] sm:$0xe]
      %v1162 = vld [vmem:[%s163 + $0x18] sm:$0xe]
      %v1163 = vld [vmem:[%s163 + $0x24] sm:$0xe]
      %v1164 = vld [vmem:[%s163 + $0x30] sm:$0xe]
      %v1165 = vld [vmem:[%s163 + $0x3c] sm:$0xe]
      %v1166 = vld [vmem:[%s163 + $0x48] sm:$0xe]
      %v1167 = vld [vmem:[%s163 + $0x54] sm:$0xe]
      %v1168 = vld [vmem:[%s163 + $0x60] sm:$0xe]
      %v1169 = vld [vmem:[%s163 + $0x6c] sm:$0xe]
      %v1170 = vld [vmem:[%s163 + $0x78] sm:$0xe]
      %v1171 = vld [vmem:[%s163 + $0x84] sm:$0xe]
      %v1172 = vld [vmem:[%s163 + $0x90] sm:$0xe]
      %v1173 = vld [vmem:[%s163 + $0x9c] sm:$0xe]
      %v1174 = vld [vmem:[%s163 + $0xa8] sm:$0xe]
      %v1175 = vld [vmem:[%s163 + $0xb4] sm:$0xe]
      %vm1208 = vcmask 1042432
      %vm1209 = vcmask 1046532
      %vm1210 = vmor %vm1208, %vm1209
      %v1211 = vrot.slane %v1160, 5
      %v1212 = vrot.slane %v1211, 4
      %v1213 = vrot.slane %v169, 5
      %v1214 = vsel %vm1210, %v1212, %v1213
      %v1215 = vrot.slane %v1213, 4
      %v1216 = vrot.slane %v201, 5
      %v1217 = vsel %vm1210, %v1215, %v1216
      %v1218 = vrot.slane %v1161, 5
      %v1219 = vrot.slane %v1218, 4
      %v1220 = vrot.slane %v171, 5
      %v1221 = vsel %vm1210, %v1219, %v1220
      %v1222 = vrot.slane %v1220, 4
      %v1223 = vrot.slane %v202, 5
      %v1224 = vsel %vm1210, %v1222, %v1223
      %v1225 = vrot.slane %v1162, 5
      %v1226 = vrot.slane %v1225, 4
      %v1227 = vrot.slane %v173, 5
      %v1228 = vsel %vm1210, %v1226, %v1227
      %v1229 = vrot.slane %v1227, 4
      %v1230 = vrot.slane %v203, 5
      %v1231 = vsel %vm1210, %v1229, %v1230
      %v1232 = vrot.slane %v1163, 5
      %v1233 = vrot.slane %v1232, 4
      %v1234 = vrot.slane %v175, 5
      %v1235 = vsel %vm1210, %v1233, %v1234
      %v1236 = vrot.slane %v1234, 4
      %v1237 = vrot.slane %v204, 5
      %v1238 = vsel %vm1210, %v1236, %v1237
      %v1239 = vrot.slane %v1164, 5
      %v1240 = vrot.slane %v1239, 4
      %v1241 = vrot.slane %v177, 5
      %v1242 = vsel %vm1210, %v1240, %v1241
      %v1243 = vrot.slane %v1241, 4
      %v1244 = vrot.slane %v205, 5
      %v1245 = vsel %vm1210, %v1243, %v1244
      %v1246 = vrot.slane %v1165, 5
      %v1247 = vrot.slane %v1246, 4
      %v1248 = vrot.slane %v179, 5
      %v1249 = vsel %vm1210, %v1247, %v1248
      %v1250 = vrot.slane %v1248, 4
      %v1251 = vrot.slane %v206, 5
      %v1252 = vsel %vm1210, %v1250, %v1251
      %v1253 = vrot.slane %v1166, 5
      %v1254 = vrot.slane %v1253, 4
      %v1255 = vrot.slane %v181, 5
      %v1256 = vsel %vm1210, %v1254, %v1255
      %v1257 = vrot.slane %v1255, 4
      %v1258 = vrot.slane %v207, 5
      %v1259 = vsel %vm1210, %v1257, %v1258
      %v1260 = vrot.slane %v1167, 5
      %v1261 = vrot.slane %v1260, 4
      %v1262 = vrot.slane %v183, 5
      %v1263 = vsel %vm1210, %v1261, %v1262
      %v1264 = vrot.slane %v1262, 4
      %v1265 = vrot.slane %v208, 5
      %v1266 = vsel %vm1210, %v1264, %v1265
      %v1267 = vrot.slane %v1168, 5
      %v1268 = vrot.slane %v1267, 4
      %v1269 = vrot.slane %v185, 5
      %v1270 = vsel %vm1210, %v1268, %v1269
      %v1271 = vrot.slane %v1269, 4
      %v1272 = vrot.slane %v209, 5
      %v1273 = vsel %vm1210, %v1271, %v1272
      %v1274 = vrot.slane %v1169, 5
      %v1275 = vrot.slane %v1274, 4
      %v1276 = vrot.slane %v187, 5
      %v1277 = vsel %vm1210, %v1275, %v1276
      %v1278 = vrot.slane %v1276, 4
      %v1279 = vrot.slane %v210, 5
      %v1280 = vsel %vm1210, %v1278, %v1279
      %v1281 = vrot.slane %v1170, 5
      %v1282 = vrot.slane %v1281, 4
      %v1283 = vrot.slane %v189, 5
      %v1284 = vsel %vm1210, %v1282, %v1283
      %v1285 = vrot.slane %v1283, 4
      %v1286 = vrot.slane %v211, 5
      %v1287 = vsel %vm1210, %v1285, %v1286
      %v1288 = vrot.slane %v1171, 5
      %v1289 = vrot.slane %v1288, 4
      %v1290 = vrot.slane %v191, 5
      %v1291 = vsel %vm1210, %v1289, %v1290
      %v1292 = vrot.slane %v1290, 4
      %v1293 = vrot.slane %v212, 5
      %v1294 = vsel %vm1210, %v1292, %v1293
      %v1295 = vrot.slane %v1172, 5
      %v1296 = vrot.slane %v1295, 4
      %v1297 = vrot.slane %v193, 5
      %v1298 = vsel %vm1210, %v1296, %v1297
      %v1299 = vrot.slane %v1297, 4
      %v1300 = vrot.slane %v213, 5
      %v1301 = vsel %vm1210, %v1299, %v1300
      %v1302 = vrot.slane %v1173, 5
      %v1303 = vrot.slane %v1302, 4
      %v1304 = vrot.slane %v195, 5
      %v1305 = vsel %vm1210, %v1303, %v1304
      %v1306 = vrot.slane %v1304, 4
      %v1307 = vrot.slane %v214, 5
      %v1308 = vsel %vm1210, %v1306, %v1307
      %v1309 = vrot.slane %v1174, 5
      %v1310 = vrot.slane %v1309, 4
      %v1311 = vrot.slane %v197, 5
      %v1312 = vsel %vm1210, %v1310, %v1311
      %v1313 = vrot.slane %v1311, 4
      %v1314 = vrot.slane %v215, 5
      %v1315 = vsel %vm1210, %v1313, %v1314
      %v1316 = vrot.slane %v1175, 5
      %v1317 = vrot.slane %v1316, 4
      %v1318 = vrot.slane %v199, 5
      %v1319 = vsel %vm1210, %v1317, %v1318
      %v1320 = vrot.slane %v1318, 4
      %v1321 = vrot.slane %v216, 5
      %v1322 = vsel %vm1210, %v1320, %v1321
      %s1323 = scalar_lea.vmem %s1, 4
      %v1324 = vld [vmem:[%s1323] sm:$0x3]
      %v1325 = vunpack.c.l.b16 %v1214
      %v1326 = vunpack.c.l.b16 %v1217
      %v1327 = vunpack.c.l.b16 %v1221
      %v1328 = vunpack.c.l.b16 %v1224
      %v1329 = vunpack.c.l.b16 %v1228
      %v1330 = vunpack.c.l.b16 %v1231
      %v1331 = vunpack.c.l.b16 %v1235
      %v1332 = vunpack.c.l.b16 %v1238
      %v1333 = vunpack.c.l.b16 %v1242
      %v1334 = vunpack.c.l.b16 %v1245
      %v1335 = vunpack.c.l.b16 %v1249
      %v1336 = vunpack.c.l.b16 %v1252
      %v1337 = vunpack.c.l.b16 %v1256
      %v1338 = vunpack.c.l.b16 %v1259
      %v1339 = vunpack.c.l.b16 %v1263
      %v1340 = vunpack.c.l.b16 %v1266
      %v1341 = vunpack.c.l.b16 %v1270
      %v1342 = vunpack.c.l.b16 %v1273
      %v1343 = vunpack.c.l.b16 %v1277
      %v1344 = vunpack.c.l.b16 %v1280
      %v1345 = vunpack.c.l.b16 %v1284
      %v1346 = vunpack.c.l.b16 %v1287
      %v1347 = vunpack.c.l.b16 %v1291
      %v1348 = vunpack.c.l.b16 %v1294
      %v1349 = vunpack.c.l.b16 %v1298
      %v1350 = vunpack.c.l.b16 %v1301
      %v1351 = vunpack.c.l.b16 %v1305
      %v1352 = vunpack.c.l.b16 %v1308
      %v1353 = vunpack.c.l.b16 %v1312
      %v1354 = vunpack.c.l.b16 %v1315
      %v1355 = vunpack.c.l.b16 %v1319
      %v1356 = vunpack.c.l.b16 %v1322
      %v1357 = vpack.c.b16 %v1326, %v1325
      %v1358 = vpack.c.b16 %v1328, %v1327
      %v1359 = vpack.c.b16 %v1330, %v1329
      %v1360 = vpack.c.b16 %v1332, %v1331
      %v1361 = vpack.c.b16 %v1334, %v1333
      %v1362 = vpack.c.b16 %v1336, %v1335
      %v1363 = vpack.c.b16 %v1338, %v1337
      %v1364 = vpack.c.b16 %v1340, %v1339
      %v1365 = vpack.c.b16 %v1342, %v1341
      %v1366 = vpack.c.b16 %v1344, %v1343
      %v1367 = vpack.c.b16 %v1346, %v1345
      %v1368 = vpack.c.b16 %v1348, %v1347
      %v1369 = vpack.c.b16 %v1350, %v1349
      %v1370 = vpack.c.b16 %v1352, %v1351
      %v1371 = vpack.c.b16 %v1354, %v1353
      %v1372 = vpack.c.b16 %v1356, %v1355
      %v1374 = vsel %vm654, %v1357, 0
      %v1377 = vsel %vm654, %v1358, 0
      %v1380 = vsel %vm654, %v1359, 0
      %v1383 = vsel %vm654, %v1360, 0
      %v1386 = vsel %vm654, %v1361, 0
      %v1389 = vsel %vm654, %v1362, 0
      %v1392 = vsel %vm654, %v1363, 0
      %v1395 = vsel %vm654, %v1364, 0
      %v1398 = vsel %vm654, %v1365, 0
      %v1401 = vsel %vm654, %v1366, 0
      %v1404 = vsel %vm654, %v1367, 0
      %v1407 = vsel %vm654, %v1368, 0
      %v1410 = vsel %vm654, %v1369, 0
      %v1413 = vsel %vm654, %v1370, 0
      %v1416 = vsel %vm654, %v1371, 0
      %v1419 = vsel %vm654, %v1372, 0
      %v1422 = vsel %vm703, %v1324, 0
      %1424 = vmatprep.subr.bf16.mxu0 0
      %1425 = vmatpush1.bf16.msra.mxu0 %v1422
      %1426 = vmatprep.subr.bf16.mxu0 0
      %1427 = vmatpush1.bf16.msra.mxu0 0
      %1428 = vmatprep.subr.bf16.mxu0 0
      %1429 = vmatpush1.bf16.msra.mxu0 0
      %1430 = vmatprep.subr.bf16.mxu0 0
      %1431 = vmatpush1.bf16.msra.mxu0 0
      %1432 = vmatprep.subr.bf16.mxu0 0
      %1433 = vmatpush1.bf16.msra.mxu0 0
      %1434 = vmatprep.subr.bf16.mxu0 0
      %1435 = vmatpush1.bf16.msra.mxu0 0
      %1436 = vmatprep.subr.bf16.mxu0 0
      %1437 = vmatpush1.bf16.msra.mxu0 0
      %1438 = vmatprep.subr.bf16.mxu0 0
      %1439 = vmatpush1.bf16.msra.mxu0 0
      %1440 = vmatprep.subr.bf16.mxu0 0
      %1441 = vmatpush1.bf16.msra.mxu0 0
      %1442 = vmatprep.subr.bf16.mxu0 0
      %1443 = vmatpush1.bf16.msra.mxu0 0
      %1444 = vmatprep.subr.bf16.mxu0 0
      %1445 = vmatpush1.bf16.msra.mxu0 0
      %1446 = vmatprep.subr.bf16.mxu0 0
      %1447 = vmatpush1.bf16.msra.mxu0 0
      %1448 = vmatprep.subr.bf16.mxu0 0
      %1449 = vmatpush1.bf16.msra.mxu0 0
      %1450 = vmatprep.subr.bf16.mxu0 0
      %1451 = vmatpush1.bf16.msra.mxu0 0
      %1452 = vmatprep.subr.bf16.mxu0 0
      %1453 = vmatpush1.bf16.msra.mxu0 0
      %1454 = vmatprep.subr.bf16.mxu0 0
      %1455 = vmatpush1.bf16.msra.mxu0 0
      %1456 = vmatprep.mubr.bf16.mxu0 0
      %1457 = vmatmul.mubr.bf16.gmra.mrb[0].mxu0 %v1374
      %v1458 = vpop.f32.mrb[0].mxu0
      %v1459 = vadd.f32 0.0, %v1458
      %v1460 = vpop.f32.mrb[0].mxu0
      %v1461 = vpop.f32.mrb[0].mxu0
      %v1462 = vadd.f32 0.0, %v1461
      %v1463 = vpop.f32.mrb[0].mxu0
      %1464 = vmatprep.mubr.bf16.mxu0 0
      %1465 = vmatmul.mubr.bf16.gmra.mrb[0].mxu0 %v1377
      %v1466 = vpop.f32.mrb[0].mxu0
      %v1467 = vadd.f32 0.0, %v1466
      %v1468 = vpop.f32.mrb[0].mxu0
      %v1469 = vpop.f32.mrb[0].mxu0
      %v1470 = vadd.f32 0.0, %v1469
      %v1471 = vpop.f32.mrb[0].mxu0
      %1472 = vmatprep.mubr.bf16.mxu0 0
      %1473 = vmatmul.mubr.bf16.gmra.mrb[0].mxu0 %v1380
      %v1474 = vpop.f32.mrb[0].mxu0
      %v1475 = vadd.f32 0.0, %v1474
      %v1476 = vpop.f32.mrb[0].mxu0
      %v1477 = vpop.f32.mrb[0].mxu0
      %v1478 = vadd.f32 0.0, %v1477
      %v1479 = vpop.f32.mrb[0].mxu0
      %1480 = vmatprep.mubr.bf16.mxu0 0
      %1481 = vmatmul.mubr.bf16.gmra.mrb[0].mxu0 %v1383
      %v1482 = vpop.f32.mrb[0].mxu0
      %v1483 = vadd.f32 0.0, %v1482
      %v1484 = vpop.f32.mrb[0].mxu0
      %v1485 = vpop.f32.mrb[0].mxu0
      %v1486 = vadd.f32 0.0, %v1485
      %v1487 = vpop.f32.mrb[0].mxu0
      %1488 = vmatprep.mubr.bf16.mxu0 0
      %1489 = vmatmul.mubr.bf16.gmra.mrb[0].mxu0 %v1386
      %v1490 = vpop.f32.mrb[0].mxu0
      %v1491 = vadd.f32 0.0, %v1490
      %v1492 = vpop.f32.mrb[0].mxu0
      %v1493 = vpop.f32.mrb[0].mxu0
      %v1494 = vadd.f32 0.0, %v1493
      %v1495 = vpop.f32.mrb[0].mxu0
      %1496 = vmatprep.mubr.bf16.mxu0 0
      %1497 = vmatmul.mubr.bf16.gmra.mrb[0].mxu0 %v1389
      %v1498 = vpop.f32.mrb[0].mxu0
      %v1499 = vadd.f32 0.0, %v1498
      %v1500 = vpop.f32.mrb[0].mxu0
      %v1501 = vpop.f32.mrb[0].mxu0
      %v1502 = vadd.f32 0.0, %v1501
      %v1503 = vpop.f32.mrb[0].mxu0
      %1504 = vmatprep.mubr.bf16.mxu0 0
      %1505 = vmatmul.mubr.bf16.gmra.mrb[0].mxu0 %v1392
      %v1506 = vpop.f32.mrb[0].mxu0
      %v1507 = vadd.f32 0.0, %v1506
      %v1508 = vpop.f32.mrb[0].mxu0
      %v1509 = vpop.f32.mrb[0].mxu0
      %v1510 = vadd.f32 0.0, %v1509
      %v1511 = vpop.f32.mrb[0].mxu0
      %1512 = vmatprep.mubr.bf16.mxu0 0
      %1513 = vmatmul.mubr.bf16.gmra.mrb[0].mxu0 %v1395
      %v1514 = vpop.f32.mrb[0].mxu0
      %v1515 = vadd.f32 0.0, %v1514
      %v1516 = vpop.f32.mrb[0].mxu0
      %v1517 = vpop.f32.mrb[0].mxu0
      %v1518 = vadd.f32 0.0, %v1517
      %v1519 = vpop.f32.mrb[0].mxu0
      %1520 = vmatprep.mubr.bf16.mxu0 0
      %1521 = vmatmul.mubr.bf16.gmra.mrb[0].mxu0 %v1398
      %v1522 = vpop.f32.mrb[0].mxu0
      %v1523 = vadd.f32 0.0, %v1522
      %v1524 = vpop.f32.mrb[0].mxu0
      %v1525 = vpop.f32.mrb[0].mxu0
      %v1526 = vadd.f32 0.0, %v1525
      %v1527 = vpop.f32.mrb[0].mxu0
      %1528 = vmatprep.mubr.bf16.mxu0 0
      %1529 = vmatmul.mubr.bf16.gmra.mrb[0].mxu0 %v1401
      %v1530 = vpop.f32.mrb[0].mxu0
      %v1531 = vadd.f32 0.0, %v1530
      %v1532 = vpop.f32.mrb[0].mxu0
      %v1533 = vpop.f32.mrb[0].mxu0
      %v1534 = vadd.f32 0.0, %v1533
      %v1535 = vpop.f32.mrb[0].mxu0
      %1536 = vmatprep.mubr.bf16.mxu0 0
      %1537 = vmatmul.mubr.bf16.gmra.mrb[0].mxu0 %v1404
      %v1538 = vpop.f32.mrb[0].mxu0
      %v1539 = vadd.f32 0.0, %v1538
      %v1540 = vpop.f32.mrb[0].mxu0
      %v1541 = vpop.f32.mrb[0].mxu0
      %v1542 = vadd.f32 0.0, %v1541
      %v1543 = vpop.f32.mrb[0].mxu0
      %1544 = vmatprep.mubr.bf16.mxu0 0
      %1545 = vmatmul.mubr.bf16.gmra.mrb[0].mxu0 %v1407
      %v1546 = vpop.f32.mrb[0].mxu0
      %v1547 = vadd.f32 0.0, %v1546
      %v1548 = vpop.f32.mrb[0].mxu0
      %v1549 = vpop.f32.mrb[0].mxu0
      %v1550 = vadd.f32 0.0, %v1549
      %v1551 = vpop.f32.mrb[0].mxu0
      %1552 = vmatprep.mubr.bf16.mxu0 0
      %1553 = vmatmul.mubr.bf16.gmra.mrb[0].mxu0 %v1410
      %v1554 = vpop.f32.mrb[0].mxu0
      %v1555 = vadd.f32 0.0, %v1554
      %v1556 = vpop.f32.mrb[0].mxu0
      %v1557 = vpop.f32.mrb[0].mxu0
      %v1558 = vadd.f32 0.0, %v1557
      %v1559 = vpop.f32.mrb[0].mxu0
      %1560 = vmatprep.mubr.bf16.mxu0 0
      %1561 = vmatmul.mubr.bf16.gmra.mrb[0].mxu0 %v1413
      %v1562 = vpop.f32.mrb[0].mxu0
      %v1563 = vadd.f32 0.0, %v1562
      %v1564 = vpop.f32.mrb[0].mxu0
      %v1565 = vpop.f32.mrb[0].mxu0
      %v1566 = vadd.f32 0.0, %v1565
      %v1567 = vpop.f32.mrb[0].mxu0
      %1568 = vmatprep.mubr.bf16.mxu0 0
      %1569 = vmatmul.mubr.bf16.gmra.mrb[0].mxu0 %v1416
      %v1570 = vpop.f32.mrb[0].mxu0
      %v1571 = vadd.f32 0.0, %v1570
      %v1572 = vpop.f32.mrb[0].mxu0
      %v1573 = vpop.f32.mrb[0].mxu0
      %v1574 = vadd.f32 0.0, %v1573
      %v1575 = vpop.f32.mrb[0].mxu0
      %1576 = vmatprep.mubr.bf16.mxu0 0
      %1577 = vmatmul.mubr.bf16.gmra.mrb[0].mxu0 %v1419
      %v1578 = vpop.f32.mrb[0].mxu0
      %v1579 = vadd.f32 0.0, %v1578
      %v1580 = vpop.f32.mrb[0].mxu0
      %v1581 = vpop.f32.mrb[0].mxu0
      %v1582 = vadd.f32 0.0, %v1581
      %v1583 = vpop.f32.mrb[0].mxu0
      %1584 = vdwg.mxu0
      %v1585 = vadd.f32 %v1034, %v1459
      %v1586 = vadd.f32 %v1037, %v1462
      %v1587 = vadd.f32 %v1042, %v1467
      %v1588 = vadd.f32 %v1045, %v1470
      %v1589 = vadd.f32 %v1050, %v1475
      %v1590 = vadd.f32 %v1053, %v1478
      %v1591 = vadd.f32 %v1058, %v1483
      %v1592 = vadd.f32 %v1061, %v1486
      %v1593 = vadd.f32 %v1066, %v1491
      %v1594 = vadd.f32 %v1069, %v1494
      %v1595 = vadd.f32 %v1074, %v1499
      %v1596 = vadd.f32 %v1077, %v1502
      %v1597 = vadd.f32 %v1082, %v1507
      %v1598 = vadd.f32 %v1085, %v1510
      %v1599 = vadd.f32 %v1090, %v1515
      %v1600 = vadd.f32 %v1093, %v1518
      %v1601 = vadd.f32 %v1098, %v1523
      %v1602 = vadd.f32 %v1101, %v1526
      %v1603 = vadd.f32 %v1106, %v1531
      %v1604 = vadd.f32 %v1109, %v1534
      %v1605 = vadd.f32 %v1114, %v1539
      %v1606 = vadd.f32 %v1117, %v1542
      %v1607 = vadd.f32 %v1122, %v1547
      %v1608 = vadd.f32 %v1125, %v1550
      %v1609 = vadd.f32 %v1130, %v1555
      %v1610 = vadd.f32 %v1133, %v1558
      %v1611 = vadd.f32 %v1138, %v1563
      %v1612 = vadd.f32 %v1141, %v1566
      %v1613 = vadd.f32 %v1146, %v1571
      %v1614 = vadd.f32 %v1149, %v1574
      %v1615 = vadd.f32 %v1154, %v1579
      %v1616 = vadd.f32 %v1157, %v1582
      %s1617 = scalar_lea.vmem %s163, 12
      %v1618 = vld [vmem:[%s1617] sm:$0xf]
      %v1619 = vld [vmem:[%s1617 + $0x4] sm:$0xf]
      %v1620 = vld [vmem:[%s1617 + $0xc] sm:$0xf]
      %v1621 = vld [vmem:[%s1617 + $0x10] sm:$0xf]
      %v1622 = vld [vmem:[%s1617 + $0x18] sm:$0xf]
      %v1623 = vld [vmem:[%s1617 + $0x1c] sm:$0xf]
      %v1624 = vld [vmem:[%s1617 + $0x24] sm:$0xf]
      %v1625 = vld [vmem:[%s1617 + $0x28] sm:$0xf]
      %v1626 = vld [vmem:[%s1617 + $0x30] sm:$0xf]
      %v1627 = vld [vmem:[%s1617 + $0x34] sm:$0xf]
      %v1628 = vld [vmem:[%s1617 + $0x3c] sm:$0xf]
      %v1629 = vld [vmem:[%s1617 + $0x40] sm:$0xf]
      %v1630 = vld [vmem:[%s1617 + $0x48] sm:$0xf]
      %v1631 = vld [vmem:[%s1617 + $0x4c] sm:$0xf]
      %v1632 = vld [vmem:[%s1617 + $0x54] sm:$0xf]
      %v1633 = vld [vmem:[%s1617 + $0x58] sm:$0xf]
      %v1634 = vld [vmem:[%s1617 + $0x60] sm:$0xf]
      %v1635 = vld [vmem:[%s1617 + $0x64] sm:$0xf]
      %v1636 = vld [vmem:[%s1617 + $0x6c] sm:$0xf]
      %v1637 = vld [vmem:[%s1617 + $0x70] sm:$0xf]
      %v1638 = vld [vmem:[%s1617 + $0x78] sm:$0xf]
      %v1639 = vld [vmem:[%s1617 + $0x7c] sm:$0xf]
      %v1640 = vld [vmem:[%s1617 + $0x84] sm:$0xf]
      %v1641 = vld [vmem:[%s1617 + $0x88] sm:$0xf]
      %v1642 = vld [vmem:[%s1617 + $0x90] sm:$0xf]
      %v1643 = vld [vmem:[%s1617 + $0x94] sm:$0xf]
      %v1644 = vld [vmem:[%s1617 + $0x9c] sm:$0xf]
      %v1645 = vld [vmem:[%s1617 + $0xa0] sm:$0xf]
      %v1646 = vld [vmem:[%s1617 + $0xa8] sm:$0xf]
      %v1647 = vld [vmem:[%s1617 + $0xac] sm:$0xf]
      %v1648 = vld [vmem:[%s1617 + $0xb4] sm:$0xf]
      %v1649 = vld [vmem:[%s1617 + $0xb8] sm:$0xf]
      %s1650 = scalar_lea.vmem %s1, 6
      %v1651 = vld [vmem:[%s1650] sm:$0x3]
      %v1684 = vunpack.c.l.b16 %v1618
      %v1685 = vunpack.c.l.b16 %v1619
      %v1686 = vunpack.c.l.b16 %v1620
      %v1687 = vunpack.c.l.b16 %v1621
      %v1688 = vunpack.c.l.b16 %v1622
      %v1689 = vunpack.c.l.b16 %v1623
      %v1690 = vunpack.c.l.b16 %v1624
      %v1691 = vunpack.c.l.b16 %v1625
      %v1692 = vunpack.c.l.b16 %v1626
      %v1693 = vunpack.c.l.b16 %v1627
      %v1694 = vunpack.c.l.b16 %v1628
      %v1695 = vunpack.c.l.b16 %v1629
      %v1696 = vunpack.c.l.b16 %v1630
      %v1697 = vunpack.c.l.b16 %v1631
      %v1698 = vunpack.c.l.b16 %v1632
      %v1699 = vunpack.c.l.b16 %v1633
      %v1700 = vunpack.c.l.b16 %v1634
      %v1701 = vunpack.c.l.b16 %v1635
      %v1702 = vunpack.c.l.b16 %v1636
      %v1703 = vunpack.c.l.b16 %v1637
      %v1704 = vunpack.c.l.b16 %v1638
      %v1705 = vunpack.c.l.b16 %v1639
      %v1706 = vunpack.c.l.b16 %v1640
      %v1707 = vunpack.c.l.b16 %v1641
      %v1708 = vunpack.c.l.b16 %v1642
      %v1709 = vunpack.c.l.b16 %v1643
      %v1710 = vunpack.c.l.b16 %v1644
      %v1711 = vunpack.c.l.b16 %v1645
      %v1712 = vunpack.c.l.b16 %v1646
      %v1713 = vunpack.c.l.b16 %v1647
      %v1714 = vunpack.c.l.b16 %v1648
      %v1715 = vunpack.c.l.b16 %v1649
      %v1716 = vpack.c.b16 %v1685, %v1684
      %v1717 = vpack.c.b16 %v1687, %v1686
      %v1718 = vpack.c.b16 %v1689, %v1688
      %v1719 = vpack.c.b16 %v1691, %v1690
      %v1720 = vpack.c.b16 %v1693, %v1692
      %v1721 = vpack.c.b16 %v1695, %v1694
      %v1722 = vpack.c.b16 %v1697, %v1696
      %v1723 = vpack.c.b16 %v1699, %v1698
      %v1724 = vpack.c.b16 %v1701, %v1700
      %v1725 = vpack.c.b16 %v1703, %v1702
      %v1726 = vpack.c.b16 %v1705, %v1704
      %v1727 = vpack.c.b16 %v1707, %v1706
      %v1728 = vpack.c.b16 %v1709, %v1708
      %v1729 = vpack.c.b16 %v1711, %v1710
      %v1730 = vpack.c.b16 %v1713, %v1712
      %v1731 = vpack.c.b16 %v1715, %v1714
      %v1733 = vsel %vm654, %v1716, 0
      %v1736 = vsel %vm654, %v1717, 0
      %v1739 = vsel %vm654, %v1718, 0
      %v1742 = vsel %vm654, %v1719, 0
      %v1745 = vsel %vm654, %v1720, 0
      %v1748 = vsel %vm654, %v1721, 0
      %v1751 = vsel %vm654, %v1722, 0
      %v1754 = vsel %vm654, %v1723, 0
      %v1757 = vsel %vm654, %v1724, 0
      %v1760 = vsel %vm654, %v1725, 0
      %v1763 = vsel %vm654, %v1726, 0
      %v1766 = vsel %vm654, %v1727, 0
      %v1769 = vsel %vm654, %v1728, 0
      %v1772 = vsel %vm654, %v1729, 0
      %v1775 = vsel %vm654, %v1730, 0
      %v1778 = vsel %vm654, %v1731, 0
      %v1781 = vsel %vm703, %v1651, 0
      %1783 = vmatprep.subr.bf16.mxu0 0
      %1784 = vmatpush1.bf16.msra.mxu0 %v1781
      %1785 = vmatprep.subr.bf16.mxu0 0
      %1786 = vmatpush1.bf16.msra.mxu0 0
      %1787 = vmatprep.subr.bf16.mxu0 0
      %1788 = vmatpush1.bf16.msra.mxu0 0
      %1789 = vmatprep.subr.bf16.mxu0 0
      %1790 = vmatpush1.bf16.msra.mxu0 0
      %1791 = vmatprep.subr.bf16.mxu0 0
      %1792 = vmatpush1.bf16.msra.mxu0 0
      %1793 = vmatprep.subr.bf16.mxu0 0
      %1794 = vmatpush1.bf16.msra.mxu0 0
      %1795 = vmatprep.subr.bf16.mxu0 0
      %1796 = vmatpush1.bf16.msra.mxu0 0
      %1797 = vmatprep.subr.bf16.mxu0 0
      %1798 = vmatpush1.bf16.msra.mxu0 0
      %1799 = vmatprep.subr.bf16.mxu0 0
      %1800 = vmatpush1.bf16.msra.mxu0 0
      %1801 = vmatprep.subr.bf16.mxu0 0
      %1802 = vmatpush1.bf16.msra.mxu0 0
      %1803 = vmatprep.subr.bf16.mxu0 0
      %1804 = vmatpush1.bf16.msra.mxu0 0
      %1805 = vmatprep.subr.bf16.mxu0 0
      %1806 = vmatpush1.bf16.msra.mxu0 0
      %1807 = vmatprep.subr.bf16.mxu0 0
      %1808 = vmatpush1.bf16.msra.mxu0 0
      %1809 = vmatprep.subr.bf16.mxu0 0
      %1810 = vmatpush1.bf16.msra.mxu0 0
      %1811 = vmatprep.subr.bf16.mxu0 0
      %1812 = vmatpush1.bf16.msra.mxu0 0
      %1813 = vmatprep.subr.bf16.mxu0 0
      %1814 = vmatpush1.bf16.msra.mxu0 0
      %1815 = vmatprep.mubr.bf16.mxu0 0
      %1816 = vmatmul.mubr.bf16.gmra.mrb[0].mxu0 %v1733
      %v1817 = vpop.f32.mrb[0].mxu0
      %v1818 = vadd.f32 0.0, %v1817
      %v1819 = vpop.f32.mrb[0].mxu0
      %v1820 = vpop.f32.mrb[0].mxu0
      %v1821 = vadd.f32 0.0, %v1820
      %v1822 = vpop.f32.mrb[0].mxu0
      %1823 = vmatprep.mubr.bf16.mxu0 0
      %1824 = vmatmul.mubr.bf16.gmra.mrb[0].mxu0 %v1736
      %v1825 = vpop.f32.mrb[0].mxu0
      %v1826 = vadd.f32 0.0, %v1825
      %v1827 = vpop.f32.mrb[0].mxu0
      %v1828 = vpop.f32.mrb[0].mxu0
      %v1829 = vadd.f32 0.0, %v1828
      %v1830 = vpop.f32.mrb[0].mxu0
      %1831 = vmatprep.mubr.bf16.mxu0 0
      %1832 = vmatmul.mubr.bf16.gmra.mrb[0].mxu0 %v1739
      %v1833 = vpop.f32.mrb[0].mxu0
      %v1834 = vadd.f32 0.0, %v1833
      %v1835 = vpop.f32.mrb[0].mxu0
      %v1836 = vpop.f32.mrb[0].mxu0
      %v1837 = vadd.f32 0.0, %v1836
      %v1838 = vpop.f32.mrb[0].mxu0
      %1839 = vmatprep.mubr.bf16.mxu0 0
      %1840 = vmatmul.mubr.bf16.gmra.mrb[0].mxu0 %v1742
      %v1841 = vpop.f32.mrb[0].mxu0
      %v1842 = vadd.f32 0.0, %v1841
      %v1843 = vpop.f32.mrb[0].mxu0
      %v1844 = vpop.f32.mrb[0].mxu0
      %v1845 = vadd.f32 0.0, %v1844
      %v1846 = vpop.f32.mrb[0].mxu0
      %1847 = vmatprep.mubr.bf16.mxu0 0
      %1848 = vmatmul.mubr.bf16.gmra.mrb[0].mxu0 %v1745
      %v1849 = vpop.f32.mrb[0].mxu0
      %v1850 = vadd.f32 0.0, %v1849
      %v1851 = vpop.f32.mrb[0].mxu0
      %v1852 = vpop.f32.mrb[0].mxu0
      %v1853 = vadd.f32 0.0, %v1852
      %v1854 = vpop.f32.mrb[0].mxu0
      %1855 = vmatprep.mubr.bf16.mxu0 0
      %1856 = vmatmul.mubr.bf16.gmra.mrb[0].mxu0 %v1748
      %v1857 = vpop.f32.mrb[0].mxu0
      %v1858 = vadd.f32 0.0, %v1857
      %v1859 = vpop.f32.mrb[0].mxu0
      %v1860 = vpop.f32.mrb[0].mxu0
      %v1861 = vadd.f32 0.0, %v1860
      %v1862 = vpop.f32.mrb[0].mxu0
      %1863 = vmatprep.mubr.bf16.mxu0 0
      %1864 = vmatmul.mubr.bf16.gmra.mrb[0].mxu0 %v1751
      %v1865 = vpop.f32.mrb[0].mxu0
      %v1866 = vadd.f32 0.0, %v1865
      %v1867 = vpop.f32.mrb[0].mxu0
      %v1868 = vpop.f32.mrb[0].mxu0
      %v1869 = vadd.f32 0.0, %v1868
      %v1870 = vpop.f32.mrb[0].mxu0
      %1871 = vmatprep.mubr.bf16.mxu0 0
      %1872 = vmatmul.mubr.bf16.gmra.mrb[0].mxu0 %v1754
      %v1873 = vpop.f32.mrb[0].mxu0
      %v1874 = vadd.f32 0.0, %v1873
      %v1875 = vpop.f32.mrb[0].mxu0
      %v1876 = vpop.f32.mrb[0].mxu0
      %v1877 = vadd.f32 0.0, %v1876
      %v1878 = vpop.f32.mrb[0].mxu0
      %1879 = vmatprep.mubr.bf16.mxu0 0
      %1880 = vmatmul.mubr.bf16.gmra.mrb[0].mxu0 %v1757
      %v1881 = vpop.f32.mrb[0].mxu0
      %v1882 = vadd.f32 0.0, %v1881
      %v1883 = vpop.f32.mrb[0].mxu0
      %v1884 = vpop.f32.mrb[0].mxu0
      %v1885 = vadd.f32 0.0, %v1884
      %v1886 = vpop.f32.mrb[0].mxu0
      %1887 = vmatprep.mubr.bf16.mxu0 0
      %1888 = vmatmul.mubr.bf16.gmra.mrb[0].mxu0 %v1760
      %v1889 = vpop.f32.mrb[0].mxu0
      %v1890 = vadd.f32 0.0, %v1889
      %v1891 = vpop.f32.mrb[0].mxu0
      %v1892 = vpop.f32.mrb[0].mxu0
      %v1893 = vadd.f32 0.0, %v1892
      %v1894 = vpop.f32.mrb[0].mxu0
      %1895 = vmatprep.mubr.bf16.mxu0 0
      %1896 = vmatmul.mubr.bf16.gmra.mrb[0].mxu0 %v1763
      %v1897 = vpop.f32.mrb[0].mxu0
      %v1898 = vadd.f32 0.0, %v1897
      %v1899 = vpop.f32.mrb[0].mxu0
      %v1900 = vpop.f32.mrb[0].mxu0
      %v1901 = vadd.f32 0.0, %v1900
      %v1902 = vpop.f32.mrb[0].mxu0
      %1903 = vmatprep.mubr.bf16.mxu0 0
      %1904 = vmatmul.mubr.bf16.gmra.mrb[0].mxu0 %v1766
      %v1905 = vpop.f32.mrb[0].mxu0
      %v1906 = vadd.f32 0.0, %v1905
      %v1907 = vpop.f32.mrb[0].mxu0
      %v1908 = vpop.f32.mrb[0].mxu0
      %v1909 = vadd.f32 0.0, %v1908
      %v1910 = vpop.f32.mrb[0].mxu0
      %1911 = vmatprep.mubr.bf16.mxu0 0
      %1912 = vmatmul.mubr.bf16.gmra.mrb[0].mxu0 %v1769
      %v1913 = vpop.f32.mrb[0].mxu0
      %v1914 = vadd.f32 0.0, %v1913
      %v1915 = vpop.f32.mrb[0].mxu0
      %v1916 = vpop.f32.mrb[0].mxu0
      %v1917 = vadd.f32 0.0, %v1916
      %v1918 = vpop.f32.mrb[0].mxu0
      %1919 = vmatprep.mubr.bf16.mxu0 0
      %1920 = vmatmul.mubr.bf16.gmra.mrb[0].mxu0 %v1772
      %v1921 = vpop.f32.mrb[0].mxu0
      %v1922 = vadd.f32 0.0, %v1921
      %v1923 = vpop.f32.mrb[0].mxu0
      %v1924 = vpop.f32.mrb[0].mxu0
      %v1925 = vadd.f32 0.0, %v1924
      %v1926 = vpop.f32.mrb[0].mxu0
      %1927 = vmatprep.mubr.bf16.mxu0 0
      %1928 = vmatmul.mubr.bf16.gmra.mrb[0].mxu0 %v1775
      %v1929 = vpop.f32.mrb[0].mxu0
      %v1930 = vadd.f32 0.0, %v1929
      %v1931 = vpop.f32.mrb[0].mxu0
      %v1932 = vpop.f32.mrb[0].mxu0
      %v1933 = vadd.f32 0.0, %v1932
      %v1934 = vpop.f32.mrb[0].mxu0
      %1935 = vmatprep.mubr.bf16.mxu0 0
      %1936 = vmatmul.mubr.bf16.gmra.mrb[0].mxu0 %v1778
      %v1937 = vpop.f32.mrb[0].mxu0
      %v1938 = vadd.f32 0.0, %v1937
      %v1939 = vpop.f32.mrb[0].mxu0
      %v1940 = vpop.f32.mrb[0].mxu0
      %v1941 = vadd.f32 0.0, %v1940
      %v1942 = vpop.f32.mrb[0].mxu0
      %1943 = vdwg.mxu0
      %v1944 = vadd.f32 %v1585, %v1818
      %v1945 = vadd.f32 %v1586, %v1821
      %v1946 = vadd.f32 %v1587, %v1826
      %v1947 = vadd.f32 %v1588, %v1829
      %v1948 = vadd.f32 %v1589, %v1834
      %v1949 = vadd.f32 %v1590, %v1837
      %v1950 = vadd.f32 %v1591, %v1842
      %v1951 = vadd.f32 %v1592, %v1845
      %v1952 = vadd.f32 %v1593, %v1850
      %v1953 = vadd.f32 %v1594, %v1853
      %v1954 = vadd.f32 %v1595, %v1858
      %v1955 = vadd.f32 %v1596, %v1861
      %v1956 = vadd.f32 %v1597, %v1866
      %v1957 = vadd.f32 %v1598, %v1869
      %v1958 = vadd.f32 %v1599, %v1874
      %v1959 = vadd.f32 %v1600, %v1877
      %v1960 = vadd.f32 %v1601, %v1882
      %v1961 = vadd.f32 %v1602, %v1885
      %v1962 = vadd.f32 %v1603, %v1890
      %v1963 = vadd.f32 %v1604, %v1893
      %v1964 = vadd.f32 %v1605, %v1898
      %v1965 = vadd.f32 %v1606, %v1901
      %v1966 = vadd.f32 %v1607, %v1906
      %v1967 = vadd.f32 %v1608, %v1909
      %v1968 = vadd.f32 %v1609, %v1914
      %v1969 = vadd.f32 %v1610, %v1917
      %v1970 = vadd.f32 %v1611, %v1922
      %v1971 = vadd.f32 %v1612, %v1925
      %v1972 = vadd.f32 %v1613, %v1930
      %v1973 = vadd.f32 %v1614, %v1933
      %v1974 = vadd.f32 %v1615, %v1938
      %v1975 = vadd.f32 %v1616, %v1941
      %v1976 = vld [vmem:[%s1617] sm:$0xf]
      %v1977 = vld [vmem:[%s1617 + $0x4] sm:$0xf]
      %v1978 = vld [vmem:[%s1617 + $0x8] sm:$0x1]
      %v1979 = vld [vmem:[%s1617 + $0xc] sm:$0xf]
      %v1980 = vld [vmem:[%s1617 + $0x10] sm:$0xf]
      %v1981 = vld [vmem:[%s1617 + $0x14] sm:$0x1]
      %v1982 = vld [vmem:[%s1617 + $0x18] sm:$0xf]
      %v1983 = vld [vmem:[%s1617 + $0x1c] sm:$0xf]
      %v1984 = vld [vmem:[%s1617 + $0x20] sm:$0x1]
      %v1985 = vld [vmem:[%s1617 + $0x24] sm:$0xf]
      %v1986 = vld [vmem:[%s1617 + $0x28] sm:$0xf]
      %v1987 = vld [vmem:[%s1617 + $0x2c] sm:$0x1]
      %v1988 = vld [vmem:[%s1617 + $0x30] sm:$0xf]
      %v1989 = vld [vmem:[%s1617 + $0x34] sm:$0xf]
      %v1990 = vld [vmem:[%s1617 + $0x38] sm:$0x1]
      %v1991 = vld [vmem:[%s1617 + $0x3c] sm:$0xf]
      %v1992 = vld [vmem:[%s1617 + $0x40] sm:$0xf]
      %v1993 = vld [vmem:[%s1617 + $0x44] sm:$0x1]
      %v1994 = vld [vmem:[%s1617 + $0x48] sm:$0xf]
      %v1995 = vld [vmem:[%s1617 + $0x4c] sm:$0xf]
      %v1996 = vld [vmem:[%s1617 + $0x50] sm:$0x1]
      %v1997 = vld [vmem:[%s1617 + $0x54] sm:$0xf]
      %v1998 = vld [vmem:[%s1617 + $0x58] sm:$0xf]
      %v1999 = vld [vmem:[%s1617 + $0x5c] sm:$0x1]
      %v2000 = vld [vmem:[%s1617 + $0x60] sm:$0xf]
      %v2001 = vld [vmem:[%s1617 + $0x64] sm:$0xf]
      %v2002 = vld [vmem:[%s1617 + $0x68] sm:$0x1]
      %v2003 = vld [vmem:[%s1617 + $0x6c] sm:$0xf]
      %v2004 = vld [vmem:[%s1617 + $0x70] sm:$0xf]
      %v2005 = vld [vmem:[%s1617 + $0x74] sm:$0x1]
      %v2006 = vld [vmem:[%s1617 + $0x78] sm:$0xf]
      %v2007 = vld [vmem:[%s1617 + $0x7c] sm:$0xf]
      %v2008 = vld [vmem:[%s1617 + $0x80] sm:$0x1]
      %v2009 = vld [vmem:[%s1617 + $0x84] sm:$0xf]
      %v2010 = vld [vmem:[%s1617 + $0x88] sm:$0xf]
      %v2011 = vld [vmem:[%s1617 + $0x8c] sm:$0x1]
      %v2012 = vld [vmem:[%s1617 + $0x90] sm:$0xf]
      %v2013 = vld [vmem:[%s1617 + $0x94] sm:$0xf]
      %v2014 = vld [vmem:[%s1617 + $0x98] sm:$0x1]
      %v2015 = vld [vmem:[%s1617 + $0x9c] sm:$0xf]
      %v2016 = vld [vmem:[%s1617 + $0xa0] sm:$0xf]
      %v2017 = vld [vmem:[%s1617 + $0xa4] sm:$0x1]
      %v2018 = vld [vmem:[%s1617 + $0xa8] sm:$0xf]
      %v2019 = vld [vmem:[%s1617 + $0xac] sm:$0xf]
      %v2020 = vld [vmem:[%s1617 + $0xb0] sm:$0x1]
      %v2021 = vld [vmem:[%s1617 + $0xb4] sm:$0xf]
      %v2022 = vld [vmem:[%s1617 + $0xb8] sm:$0xf]
      %v2023 = vld [vmem:[%s1617 + $0xbc] sm:$0x1]
      %v2025 = vshrl.u32 %v1976, 16
      %v2027 = vrot.slane %v2025, 4
      %v2028 = vshll.u32 %v1976, 16
      %v2030 = vrot.slane %v2028, 5
      %v2031 = vor.u32 %v2027, %v2030
      %v2032 = vrot.slane %v2031, 4
      %v2034 = vshll.u32 %v1977, 16
      %v2036 = vrot.slane %v2034, 5
      %v2037 = vsel %vm219, %v2032, %v2036
      %v2038 = vshrl.u32 %v1977, 16
      %v2040 = vrot.slane %v2038, 4
      %v2041 = vor.u32 %v2040, %v2036
      %v2042 = vrot.slane %v2041, 4
      %v2044 = vshll.u32 %v1978, 16
      %v2046 = vrot.slane %v2044, 5
      %v2047 = vsel %vm219, %v2042, %v2046
      %v2049 = vshrl.u32 %v1979, 16
      %v2051 = vrot.slane %v2049, 4
      %v2052 = vshll.u32 %v1979, 16
      %v2054 = vrot.slane %v2052, 5
      %v2055 = vor.u32 %v2051, %v2054
      %v2056 = vrot.slane %v2055, 4
      %v2058 = vshll.u32 %v1980, 16
      %v2060 = vrot.slane %v2058, 5
      %v2061 = vsel %vm219, %v2056, %v2060
      %v2062 = vshrl.u32 %v1980, 16
      %v2064 = vrot.slane %v2062, 4
      %v2065 = vor.u32 %v2064, %v2060
      %v2066 = vrot.slane %v2065, 4
      %v2068 = vshll.u32 %v1981, 16
      %v2070 = vrot.slane %v2068, 5
      %v2071 = vsel %vm219, %v2066, %v2070
      %v2073 = vshrl.u32 %v1982, 16
      %v2075 = vrot.slane %v2073, 4
      %v2076 = vshll.u32 %v1982, 16
      %v2078 = vrot.slane %v2076, 5
      %v2079 = vor.u32 %v2075, %v2078
      %v2080 = vrot.slane %v2079, 4
      %v2082 = vshll.u32 %v1983, 16
      %v2084 = vrot.slane %v2082, 5
      %v2085 = vsel %vm219, %v2080, %v2084
      %v2086 = vshrl.u32 %v1983, 16
      %v2088 = vrot.slane %v2086, 4
      %v2089 = vor.u32 %v2088, %v2084
      %v2090 = vrot.slane %v2089, 4
      %v2092 = vshll.u32 %v1984, 16
      %v2094 = vrot.slane %v2092, 5
      %v2095 = vsel %vm219, %v2090, %v2094
      %v2097 = vshrl.u32 %v1985, 16
      %v2099 = vrot.slane %v2097, 4
      %v2100 = vshll.u32 %v1985, 16
      %v2102 = vrot.slane %v2100, 5
      %v2103 = vor.u32 %v2099, %v2102
      %v2104 = vrot.slane %v2103, 4
      %v2106 = vshll.u32 %v1986, 16
      %v2108 = vrot.slane %v2106, 5
      %v2109 = vsel %vm219, %v2104, %v2108
      %v2110 = vshrl.u32 %v1986, 16
      %v2112 = vrot.slane %v2110, 4
      %v2113 = vor.u32 %v2112, %v2108
      %v2114 = vrot.slane %v2113, 4
      %v2116 = vshll.u32 %v1987, 16
      %v2118 = vrot.slane %v2116, 5
      %v2119 = vsel %vm219, %v2114, %v2118
      %v2121 = vshrl.u32 %v1988, 16
      %v2123 = vrot.slane %v2121, 4
      %v2124 = vshll.u32 %v1988, 16
      %v2126 = vrot.slane %v2124, 5
      %v2127 = vor.u32 %v2123, %v2126
      %v2128 = vrot.slane %v2127, 4
      %v2130 = vshll.u32 %v1989, 16
      %v2132 = vrot.slane %v2130, 5
      %v2133 = vsel %vm219, %v2128, %v2132
      %v2134 = vshrl.u32 %v1989, 16
      %v2136 = vrot.slane %v2134, 4
      %v2137 = vor.u32 %v2136, %v2132
      %v2138 = vrot.slane %v2137, 4
      %v2140 = vshll.u32 %v1990, 16
      %v2142 = vrot.slane %v2140, 5
      %v2143 = vsel %vm219, %v2138, %v2142
      %v2145 = vshrl.u32 %v1991, 16
      %v2147 = vrot.slane %v2145, 4
      %v2148 = vshll.u32 %v1991, 16
      %v2150 = vrot.slane %v2148, 5
      %v2151 = vor.u32 %v2147, %v2150
      %v2152 = vrot.slane %v2151, 4
      %v2154 = vshll.u32 %v1992, 16
      %v2156 = vrot.slane %v2154, 5
      %v2157 = vsel %vm219, %v2152, %v2156
      %v2158 = vshrl.u32 %v1992, 16
      %v2160 = vrot.slane %v2158, 4
      %v2161 = vor.u32 %v2160, %v2156
      %v2162 = vrot.slane %v2161, 4
      %v2164 = vshll.u32 %v1993, 16
      %v2166 = vrot.slane %v2164, 5
      %v2167 = vsel %vm219, %v2162, %v2166
      %v2169 = vshrl.u32 %v1994, 16
      %v2171 = vrot.slane %v2169, 4
      %v2172 = vshll.u32 %v1994, 16
      %v2174 = vrot.slane %v2172, 5
      %v2175 = vor.u32 %v2171, %v2174
      %v2176 = vrot.slane %v2175, 4
      %v2178 = vshll.u32 %v1995, 16
      %v2180 = vrot.slane %v2178, 5
      %v2181 = vsel %vm219, %v2176, %v2180
      %v2182 = vshrl.u32 %v1995, 16
      %v2184 = vrot.slane %v2182, 4
      %v2185 = vor.u32 %v2184, %v2180
      %v2186 = vrot.slane %v2185, 4
      %v2188 = vshll.u32 %v1996, 16
      %v2190 = vrot.slane %v2188, 5
      %v2191 = vsel %vm219, %v2186, %v2190
      %v2193 = vshrl.u32 %v1997, 16
      %v2195 = vrot.slane %v2193, 4
      %v2196 = vshll.u32 %v1997, 16
      %v2198 = vrot.slane %v2196, 5
      %v2199 = vor.u32 %v2195, %v2198
      %v2200 = vrot.slane %v2199, 4
      %v2202 = vshll.u32 %v1998, 16
      %v2204 = vrot.slane %v2202, 5
      %v2205 = vsel %vm219, %v2200, %v2204
      %v2206 = vshrl.u32 %v1998, 16
      %v2208 = vrot.slane %v2206, 4
      %v2209 = vor.u32 %v2208, %v2204
      %v2210 = vrot.slane %v2209, 4
      %v2212 = vshll.u32 %v1999, 16
      %v2214 = vrot.slane %v2212, 5
      %v2215 = vsel %vm219, %v2210, %v2214
      %v2217 = vshrl.u32 %v2000, 16
      %v2219 = vrot.slane %v2217, 4
      %v2220 = vshll.u32 %v2000, 16
      %v2222 = vrot.slane %v2220, 5
      %v2223 = vor.u32 %v2219, %v2222
      %v2224 = vrot.slane %v2223, 4
      %v2226 = vshll.u32 %v2001, 16
      %v2228 = vrot.slane %v2226, 5
      %v2229 = vsel %vm219, %v2224, %v2228
      %v2230 = vshrl.u32 %v2001, 16
      %v2232 = vrot.slane %v2230, 4
      %v2233 = vor.u32 %v2232, %v2228
      %v2234 = vrot.slane %v2233, 4
      %v2236 = vshll.u32 %v2002, 16
      %v2238 = vrot.slane %v2236, 5
      %v2239 = vsel %vm219, %v2234, %v2238
      %v2241 = vshrl.u32 %v2003, 16
      %v2243 = vrot.slane %v2241, 4
      %v2244 = vshll.u32 %v2003, 16
      %v2246 = vrot.slane %v2244, 5
      %v2247 = vor.u32 %v2243, %v2246
      %v2248 = vrot.slane %v2247, 4
      %v2250 = vshll.u32 %v2004, 16
      %v2252 = vrot.slane %v2250, 5
      %v2253 = vsel %vm219, %v2248, %v2252
      %v2254 = vshrl.u32 %v2004, 16
      %v2256 = vrot.slane %v2254, 4
      %v2257 = vor.u32 %v2256, %v2252
      %v2258 = vrot.slane %v2257, 4
      %v2260 = vshll.u32 %v2005, 16
      %v2262 = vrot.slane %v2260, 5
      %v2263 = vsel %vm219, %v2258, %v2262
      %v2265 = vshrl.u32 %v2006, 16
      %v2267 = vrot.slane %v2265, 4
      %v2268 = vshll.u32 %v2006, 16
      %v2270 = vrot.slane %v2268, 5
      %v2271 = vor.u32 %v2267, %v2270
      %v2272 = vrot.slane %v2271, 4
      %v2274 = vshll.u32 %v2007, 16
      %v2276 = vrot.slane %v2274, 5
      %v2277 = vsel %vm219, %v2272, %v2276
      %v2278 = vshrl.u32 %v2007, 16
      %v2280 = vrot.slane %v2278, 4
      %v2281 = vor.u32 %v2280, %v2276
      %v2282 = vrot.slane %v2281, 4
      %v2284 = vshll.u32 %v2008, 16
      %v2286 = vrot.slane %v2284, 5
      %v2287 = vsel %vm219, %v2282, %v2286
      %v2289 = vshrl.u32 %v2009, 16
      %v2291 = vrot.slane %v2289, 4
      %v2292 = vshll.u32 %v2009, 16
      %v2294 = vrot.slane %v2292, 5
      %v2295 = vor.u32 %v2291, %v2294
      %v2296 = vrot.slane %v2295, 4
      %v2298 = vshll.u32 %v2010, 16
      %v2300 = vrot.slane %v2298, 5
      %v2301 = vsel %vm219, %v2296, %v2300
      %v2302 = vshrl.u32 %v2010, 16
      %v2304 = vrot.slane %v2302, 4
      %v2305 = vor.u32 %v2304, %v2300
      %v2306 = vrot.slane %v2305, 4
      %v2308 = vshll.u32 %v2011, 16
      %v2310 = vrot.slane %v2308, 5
      %v2311 = vsel %vm219, %v2306, %v2310
      %v2313 = vshrl.u32 %v2012, 16
      %v2315 = vrot.slane %v2313, 4
      %v2316 = vshll.u32 %v2012, 16
      %v2318 = vrot.slane %v2316, 5
      %v2319 = vor.u32 %v2315, %v2318
      %v2320 = vrot.slane %v2319, 4
      %v2322 = vshll.u32 %v2013, 16
      %v2324 = vrot.slane %v2322, 5
      %v2325 = vsel %vm219, %v2320, %v2324
      %v2326 = vshrl.u32 %v2013, 16
      %v2328 = vrot.slane %v2326, 4
      %v2329 = vor.u32 %v2328, %v2324
      %v2330 = vrot.slane %v2329, 4
      %v2332 = vshll.u32 %v2014, 16
      %v2334 = vrot.slane %v2332, 5
      %v2335 = vsel %vm219, %v2330, %v2334
      %v2337 = vshrl.u32 %v2015, 16
      %v2339 = vrot.slane %v2337, 4
      %v2340 = vshll.u32 %v2015, 16
      %v2342 = vrot.slane %v2340, 5
      %v2343 = vor.u32 %v2339, %v2342
      %v2344 = vrot.slane %v2343, 4
      %v2346 = vshll.u32 %v2016, 16
      %v2348 = vrot.slane %v2346, 5
      %v2349 = vsel %vm219, %v2344, %v2348
      %v2350 = vshrl.u32 %v2016, 16
      %v2352 = vrot.slane %v2350, 4
      %v2353 = vor.u32 %v2352, %v2348
      %v2354 = vrot.slane %v2353, 4
      %v2356 = vshll.u32 %v2017, 16
      %v2358 = vrot.slane %v2356, 5
      %v2359 = vsel %vm219, %v2354, %v2358
      %v2361 = vshrl.u32 %v2018, 16
      %v2363 = vrot.slane %v2361, 4
      %v2364 = vshll.u32 %v2018, 16
      %v2366 = vrot.slane %v2364, 5
      %v2367 = vor.u32 %v2363, %v2366
      %v2368 = vrot.slane %v2367, 4
      %v2370 = vshll.u32 %v2019, 16
      %v2372 = vrot.slane %v2370, 5
      %v2373 = vsel %vm219, %v2368, %v2372
      %v2374 = vshrl.u32 %v2019, 16
      %v2376 = vrot.slane %v2374, 4
      %v2377 = vor.u32 %v2376, %v2372
      %v2378 = vrot.slane %v2377, 4
      %v2380 = vshll.u32 %v2020, 16
      %v2382 = vrot.slane %v2380, 5
      %v2383 = vsel %vm219, %v2378, %v2382
      %v2385 = vshrl.u32 %v2021, 16
      %v2387 = vrot.slane %v2385, 4
      %v2388 = vshll.u32 %v2021, 16
      %v2390 = vrot.slane %v2388, 5
      %v2391 = vor.u32 %v2387, %v2390
      %v2392 = vrot.slane %v2391, 4
      %v2394 = vshll.u32 %v2022, 16
      %v2396 = vrot.slane %v2394, 5
      %v2397 = vsel %vm219, %v2392, %v2396
      %v2398 = vshrl.u32 %v2022, 16
      %v2400 = vrot.slane %v2398, 4
      %v2401 = vor.u32 %v2400, %v2396
      %v2402 = vrot.slane %v2401, 4
      %v2404 = vshll.u32 %v2023, 16
      %v2406 = vrot.slane %v2404, 5
      %v2407 = vsel %vm219, %v2402, %v2406
      %s2408 = scalar_lea.vmem %s1, 8
      %v2409 = vld [vmem:[%s2408] sm:$0x3]
      %v2410 = vunpack.c.l.b16 %v2037
      %v2411 = vunpack.c.l.b16 %v2047
      %v2412 = vunpack.c.l.b16 %v2061
      %v2413 = vunpack.c.l.b16 %v2071
      %v2414 = vunpack.c.l.b16 %v2085
      %v2415 = vunpack.c.l.b16 %v2095
      %v2416 = vunpack.c.l.b16 %v2109
      %v2417 = vunpack.c.l.b16 %v2119
      %v2418 = vunpack.c.l.b16 %v2133
      %v2419 = vunpack.c.l.b16 %v2143
      %v2420 = vunpack.c.l.b16 %v2157
      %v2421 = vunpack.c.l.b16 %v2167
      %v2422 = vunpack.c.l.b16 %v2181
      %v2423 = vunpack.c.l.b16 %v2191
      %v2424 = vunpack.c.l.b16 %v2205
      %v2425 = vunpack.c.l.b16 %v2215
      %v2426 = vunpack.c.l.b16 %v2229
      %v2427 = vunpack.c.l.b16 %v2239
      %v2428 = vunpack.c.l.b16 %v2253
      %v2429 = vunpack.c.l.b16 %v2263
      %v2430 = vunpack.c.l.b16 %v2277
      %v2431 = vunpack.c.l.b16 %v2287
      %v2432 = vunpack.c.l.b16 %v2301
      %v2433 = vunpack.c.l.b16 %v2311
      %v2434 = vunpack.c.l.b16 %v2325
      %v2435 = vunpack.c.l.b16 %v2335
      %v2436 = vunpack.c.l.b16 %v2349
      %v2437 = vunpack.c.l.b16 %v2359
      %v2438 = vunpack.c.l.b16 %v2373
      %v2439 = vunpack.c.l.b16 %v2383
      %v2440 = vunpack.c.l.b16 %v2397
      %v2441 = vunpack.c.l.b16 %v2407
      %v2442 = vpack.c.b16 %v2411, %v2410
      %v2443 = vpack.c.b16 %v2413, %v2412
      %v2444 = vpack.c.b16 %v2415, %v2414
      %v2445 = vpack.c.b16 %v2417, %v2416
      %v2446 = vpack.c.b16 %v2419, %v2418
      %v2447 = vpack.c.b16 %v2421, %v2420
      %v2448 = vpack.c.b16 %v2423, %v2422
      %v2449 = vpack.c.b16 %v2425, %v2424
      %v2450 = vpack.c.b16 %v2427, %v2426
      %v2451 = vpack.c.b16 %v2429, %v2428
      %v2452 = vpack.c.b16 %v2431, %v2430
      %v2453 = vpack.c.b16 %v2433, %v2432
      %v2454 = vpack.c.b16 %v2435, %v2434
      %v2455 = vpack.c.b16 %v2437, %v2436
      %v2456 = vpack.c.b16 %v2439, %v2438
      %v2457 = vpack.c.b16 %v2441, %v2440
      %v2459 = vsel %vm654, %v2442, 0
      %v2462 = vsel %vm654, %v2443, 0
      %v2465 = vsel %vm654, %v2444, 0
      %v2468 = vsel %vm654, %v2445, 0
      %v2471 = vsel %vm654, %v2446, 0
      %v2474 = vsel %vm654, %v2447, 0
      %v2477 = vsel %vm654, %v2448, 0
      %v2480 = vsel %vm654, %v2449, 0
      %v2483 = vsel %vm654, %v2450, 0
      %v2486 = vsel %vm654, %v2451, 0
      %v2489 = vsel %vm654, %v2452, 0
      %v2492 = vsel %vm654, %v2453, 0
      %v2495 = vsel %vm654, %v2454, 0
      %v2498 = vsel %vm654, %v2455, 0
      %v2501 = vsel %vm654, %v2456, 0
      %v2504 = vsel %vm654, %v2457, 0
      %v2507 = vsel %vm703, %v2409, 0
      %2509 = vmatprep.subr.bf16.mxu0 0
      %2510 = vmatpush1.bf16.msra.mxu0 %v2507
      %2511 = vmatprep.subr.bf16.mxu0 0
      %2512 = vmatpush1.bf16.msra.mxu0 0
      %2513 = vmatprep.subr.bf16.mxu0 0
      %2514 = vmatpush1.bf16.msra.mxu0 0
      %2515 = vmatprep.subr.bf16.mxu0 0
      %2516 = vmatpush1.bf16.msra.mxu0 0
      %2517 = vmatprep.subr.bf16.mxu0 0
      %2518 = vmatpush1.bf16.msra.mxu0 0
      %2519 = vmatprep.subr.bf16.mxu0 0
      %2520 = vmatpush1.bf16.msra.mxu0 0
      %2521 = vmatprep.subr.bf16.mxu0 0
      %2522 = vmatpush1.bf16.msra.mxu0 0
      %2523 = vmatprep.subr.bf16.mxu0 0
      %2524 = vmatpush1.bf16.msra.mxu0 0
      %2525 = vmatprep.subr.bf16.mxu0 0
      %2526 = vmatpush1.bf16.msra.mxu0 0
      %2527 = vmatprep.subr.bf16.mxu0 0
      %2528 = vmatpush1.bf16.msra.mxu0 0
      %2529 = vmatprep.subr.bf16.mxu0 0
      %2530 = vmatpush1.bf16.msra.mxu0 0
      %2531 = vmatprep.subr.bf16.mxu0 0
      %2532 = vmatpush1.bf16.msra.mxu0 0
      %2533 = vmatprep.subr.bf16.mxu0 0
      %2534 = vmatpush1.bf16.msra.mxu0 0
      %2535 = vmatprep.subr.bf16.mxu0 0
      %2536 = vmatpush1.bf16.msra.mxu0 0
      %2537 = vmatprep.subr.bf16.mxu0 0
      %2538 = vmatpush1.bf16.msra.mxu0 0
      %2539 = vmatprep.subr.bf16.mxu0 0
      %2540 = vmatpush1.bf16.msra.mxu0 0
      %2541 = vmatprep.mubr.bf16.mxu0 0
      %2542 = vmatmul.mubr.bf16.gmra.mrb[0].mxu0 %v2459
      %v2543 = vpop.f32.mrb[0].mxu0
      %v2544 = vadd.f32 0.0, %v2543
      %v2545 = vpop.f32.mrb[0].mxu0
      %v2546 = vpop.f32.mrb[0].mxu0
      %v2547 = vadd.f32 0.0, %v2546
      %v2548 = vpop.f32.mrb[0].mxu0
      %2549 = vmatprep.mubr.bf16.mxu0 0
      %2550 = vmatmul.mubr.bf16.gmra.mrb[0].mxu0 %v2462
      %v2551 = vpop.f32.mrb[0].mxu0
      %v2552 = vadd.f32 0.0, %v2551
      %v2553 = vpop.f32.mrb[0].mxu0
      %v2554 = vpop.f32.mrb[0].mxu0
      %v2555 = vadd.f32 0.0, %v2554
      %v2556 = vpop.f32.mrb[0].mxu0
      %2557 = vmatprep.mubr.bf16.mxu0 0
      %2558 = vmatmul.mubr.bf16.gmra.mrb[0].mxu0 %v2465
      %v2559 = vpop.f32.mrb[0].mxu0
      %v2560 = vadd.f32 0.0, %v2559
      %v2561 = vpop.f32.mrb[0].mxu0
      %v2562 = vpop.f32.mrb[0].mxu0
      %v2563 = vadd.f32 0.0, %v2562
      %v2564 = vpop.f32.mrb[0].mxu0
      %2565 = vmatprep.mubr.bf16.mxu0 0
      %2566 = vmatmul.mubr.bf16.gmra.mrb[0].mxu0 %v2468
      %v2567 = vpop.f32.mrb[0].mxu0
      %v2568 = vadd.f32 0.0, %v2567
      %v2569 = vpop.f32.mrb[0].mxu0
      %v2570 = vpop.f32.mrb[0].mxu0
      %v2571 = vadd.f32 0.0, %v2570
      %v2572 = vpop.f32.mrb[0].mxu0
      %2573 = vmatprep.mubr.bf16.mxu0 0
      %2574 = vmatmul.mubr.bf16.gmra.mrb[0].mxu0 %v2471
      %v2575 = vpop.f32.mrb[0].mxu0
      %v2576 = vadd.f32 0.0, %v2575
      %v2577 = vpop.f32.mrb[0].mxu0
      %v2578 = vpop.f32.mrb[0].mxu0
      %v2579 = vadd.f32 0.0, %v2578
      %v2580 = vpop.f32.mrb[0].mxu0
      %2581 = vmatprep.mubr.bf16.mxu0 0
      %2582 = vmatmul.mubr.bf16.gmra.mrb[0].mxu0 %v2474
      %v2583 = vpop.f32.mrb[0].mxu0
      %v2584 = vadd.f32 0.0, %v2583
      %v2585 = vpop.f32.mrb[0].mxu0
      %v2586 = vpop.f32.mrb[0].mxu0
      %v2587 = vadd.f32 0.0, %v2586
      %v2588 = vpop.f32.mrb[0].mxu0
      %2589 = vmatprep.mubr.bf16.mxu0 0
      %2590 = vmatmul.mubr.bf16.gmra.mrb[0].mxu0 %v2477
      %v2591 = vpop.f32.mrb[0].mxu0
      %v2592 = vadd.f32 0.0, %v2591
      %v2593 = vpop.f32.mrb[0].mxu0
      %v2594 = vpop.f32.mrb[0].mxu0
      %v2595 = vadd.f32 0.0, %v2594
      %v2596 = vpop.f32.mrb[0].mxu0
      %2597 = vmatprep.mubr.bf16.mxu0 0
      %2598 = vmatmul.mubr.bf16.gmra.mrb[0].mxu0 %v2480
      %v2599 = vpop.f32.mrb[0].mxu0
      %v2600 = vadd.f32 0.0, %v2599
      %v2601 = vpop.f32.mrb[0].mxu0
      %v2602 = vpop.f32.mrb[0].mxu0
      %v2603 = vadd.f32 0.0, %v2602
      %v2604 = vpop.f32.mrb[0].mxu0
      %2605 = vmatprep.mubr.bf16.mxu0 0
      %2606 = vmatmul.mubr.bf16.gmra.mrb[0].mxu0 %v2483
      %v2607 = vpop.f32.mrb[0].mxu0
      %v2608 = vadd.f32 0.0, %v2607
      %v2609 = vpop.f32.mrb[0].mxu0
      %v2610 = vpop.f32.mrb[0].mxu0
      %v2611 = vadd.f32 0.0, %v2610
      %v2612 = vpop.f32.mrb[0].mxu0
      %2613 = vmatprep.mubr.bf16.mxu0 0
      %2614 = vmatmul.mubr.bf16.gmra.mrb[0].mxu0 %v2486
      %v2615 = vpop.f32.mrb[0].mxu0
      %v2616 = vadd.f32 0.0, %v2615
      %v2617 = vpop.f32.mrb[0].mxu0
      %v2618 = vpop.f32.mrb[0].mxu0
      %v2619 = vadd.f32 0.0, %v2618
      %v2620 = vpop.f32.mrb[0].mxu0
      %2621 = vmatprep.mubr.bf16.mxu0 0
      %2622 = vmatmul.mubr.bf16.gmra.mrb[0].mxu0 %v2489
      %v2623 = vpop.f32.mrb[0].mxu0
      %v2624 = vadd.f32 0.0, %v2623
      %v2625 = vpop.f32.mrb[0].mxu0
      %v2626 = vpop.f32.mrb[0].mxu0
      %v2627 = vadd.f32 0.0, %v2626
      %v2628 = vpop.f32.mrb[0].mxu0
      %2629 = vmatprep.mubr.bf16.mxu0 0
      %2630 = vmatmul.mubr.bf16.gmra.mrb[0].mxu0 %v2492
      %v2631 = vpop.f32.mrb[0].mxu0
      %v2632 = vadd.f32 0.0, %v2631
      %v2633 = vpop.f32.mrb[0].mxu0
      %v2634 = vpop.f32.mrb[0].mxu0
      %v2635 = vadd.f32 0.0, %v2634
      %v2636 = vpop.f32.mrb[0].mxu0
      %2637 = vmatprep.mubr.bf16.mxu0 0
      %2638 = vmatmul.mubr.bf16.gmra.mrb[0].mxu0 %v2495
      %v2639 = vpop.f32.mrb[0].mxu0
      %v2640 = vadd.f32 0.0, %v2639
      %v2641 = vpop.f32.mrb[0].mxu0
      %v2642 = vpop.f32.mrb[0].mxu0
      %v2643 = vadd.f32 0.0, %v2642
      %v2644 = vpop.f32.mrb[0].mxu0
      %2645 = vmatprep.mubr.bf16.mxu0 0
      %2646 = vmatmul.mubr.bf16.gmra.mrb[0].mxu0 %v2498
      %v2647 = vpop.f32.mrb[0].mxu0
      %v2648 = vadd.f32 0.0, %v2647
      %v2649 = vpop.f32.mrb[0].mxu0
      %v2650 = vpop.f32.mrb[0].mxu0
      %v2651 = vadd.f32 0.0, %v2650
      %v2652 = vpop.f32.mrb[0].mxu0
      %2653 = vmatprep.mubr.bf16.mxu0 0
      %2654 = vmatmul.mubr.bf16.gmra.mrb[0].mxu0 %v2501
      %v2655 = vpop.f32.mrb[0].mxu0
      %v2656 = vadd.f32 0.0, %v2655
      %v2657 = vpop.f32.mrb[0].mxu0
      %v2658 = vpop.f32.mrb[0].mxu0
      %v2659 = vadd.f32 0.0, %v2658
      %v2660 = vpop.f32.mrb[0].mxu0
      %2661 = vmatprep.mubr.bf16.mxu0 0
      %2662 = vmatmul.mubr.bf16.gmra.mrb[0].mxu0 %v2504
      %v2663 = vpop.f32.mrb[0].mxu0
      %v2664 = vadd.f32 0.0, %v2663
      %v2665 = vpop.f32.mrb[0].mxu0
      %v2666 = vpop.f32.mrb[0].mxu0
      %v2667 = vadd.f32 0.0, %v2666
      %v2668 = vpop.f32.mrb[0].mxu0
      %2669 = vdwg.mxu0
      %v2670 = vadd.f32 %v1944, %v2544
      %v2671 = vadd.f32 %v1945, %v2547
      %v2672 = vadd.f32 %v1946, %v2552
      %v2673 = vadd.f32 %v1947, %v2555
      %v2674 = vadd.f32 %v1948, %v2560
      %v2675 = vadd.f32 %v1949, %v2563
      %v2676 = vadd.f32 %v1950, %v2568
      %v2677 = vadd.f32 %v1951, %v2571
      %v2678 = vadd.f32 %v1952, %v2576
      %v2679 = vadd.f32 %v1953, %v2579
      %v2680 = vadd.f32 %v1954, %v2584
      %v2681 = vadd.f32 %v1955, %v2587
      %v2682 = vadd.f32 %v1956, %v2592
      %v2683 = vadd.f32 %v1957, %v2595
      %v2684 = vadd.f32 %v1958, %v2600
      %v2685 = vadd.f32 %v1959, %v2603
      %v2686 = vadd.f32 %v1960, %v2608
      %v2687 = vadd.f32 %v1961, %v2611
      %v2688 = vadd.f32 %v1962, %v2616
      %v2689 = vadd.f32 %v1963, %v2619
      %v2690 = vadd.f32 %v1964, %v2624
      %v2691 = vadd.f32 %v1965, %v2627
      %v2692 = vadd.f32 %v1966, %v2632
      %v2693 = vadd.f32 %v1967, %v2635
      %v2694 = vadd.f32 %v1968, %v2640
      %v2695 = vadd.f32 %v1969, %v2643
      %v2696 = vadd.f32 %v1970, %v2648
      %v2697 = vadd.f32 %v1971, %v2651
      %v2698 = vadd.f32 %v1972, %v2656
      %v2699 = vadd.f32 %v1973, %v2659
      %v2700 = vadd.f32 %v1974, %v2664
      %v2701 = vadd.f32 %v1975, %v2667
      %v2702 = vld [vmem:[%s1617] sm:$0xe]
      %v2703 = vld [vmem:[%s1617 + $0xc] sm:$0xe]
      %v2704 = vld [vmem:[%s1617 + $0x18] sm:$0xe]
      %v2705 = vld [vmem:[%s1617 + $0x24] sm:$0xe]
      %v2706 = vld [vmem:[%s1617 + $0x30] sm:$0xe]
      %v2707 = vld [vmem:[%s1617 + $0x3c] sm:$0xe]
      %v2708 = vld [vmem:[%s1617 + $0x48] sm:$0xe]
      %v2709 = vld [vmem:[%s1617 + $0x54] sm:$0xe]
      %v2710 = vld [vmem:[%s1617 + $0x60] sm:$0xe]
      %v2711 = vld [vmem:[%s1617 + $0x6c] sm:$0xe]
      %v2712 = vld [vmem:[%s1617 + $0x78] sm:$0xe]
      %v2713 = vld [vmem:[%s1617 + $0x84] sm:$0xe]
      %v2714 = vld [vmem:[%s1617 + $0x90] sm:$0xe]
      %v2715 = vld [vmem:[%s1617 + $0x9c] sm:$0xe]
      %v2716 = vld [vmem:[%s1617 + $0xa8] sm:$0xe]
      %v2717 = vld [vmem:[%s1617 + $0xb4] sm:$0xe]
      %v2766 = vrot.slane %v2702, 5
      %v2767 = vrot.slane %v2766, 4
      %v2768 = vrot.slane %v1977, 5
      %v2769 = vsel %vm1210, %v2767, %v2768
      %v2770 = vrot.slane %v2768, 4
      %v2771 = vrot.slane %v1978, 5
      %v2772 = vsel %vm1210, %v2770, %v2771
      %v2773 = vrot.slane %v2703, 5
      %v2774 = vrot.slane %v2773, 4
      %v2775 = vrot.slane %v1980, 5
      %v2776 = vsel %vm1210, %v2774, %v2775
      %v2777 = vrot.slane %v2775, 4
      %v2778 = vrot.slane %v1981, 5
      %v2779 = vsel %vm1210, %v2777, %v2778
      %v2780 = vrot.slane %v2704, 5
      %v2781 = vrot.slane %v2780, 4
      %v2782 = vrot.slane %v1983, 5
      %v2783 = vsel %vm1210, %v2781, %v2782
      %v2784 = vrot.slane %v2782, 4
      %v2785 = vrot.slane %v1984, 5
      %v2786 = vsel %vm1210, %v2784, %v2785
      %v2787 = vrot.slane %v2705, 5
      %v2788 = vrot.slane %v2787, 4
      %v2789 = vrot.slane %v1986, 5
      %v2790 = vsel %vm1210, %v2788, %v2789
      %v2791 = vrot.slane %v2789, 4
      %v2792 = vrot.slane %v1987, 5
      %v2793 = vsel %vm1210, %v2791, %v2792
      %v2794 = vrot.slane %v2706, 5
      %v2795 = vrot.slane %v2794, 4
      %v2796 = vrot.slane %v1989, 5
      %v2797 = vsel %vm1210, %v2795, %v2796
      %v2798 = vrot.slane %v2796, 4
      %v2799 = vrot.slane %v1990, 5
      %v2800 = vsel %vm1210, %v2798, %v2799
      %v2801 = vrot.slane %v2707, 5
      %v2802 = vrot.slane %v2801, 4
      %v2803 = vrot.slane %v1992, 5
      %v2804 = vsel %vm1210, %v2802, %v2803
      %v2805 = vrot.slane %v2803, 4
      %v2806 = vrot.slane %v1993, 5
      %v2807 = vsel %vm1210, %v2805, %v2806
      %v2808 = vrot.slane %v2708, 5
      %v2809 = vrot.slane %v2808, 4
      %v2810 = vrot.slane %v1995, 5
      %v2811 = vsel %vm1210, %v2809, %v2810
      %v2812 = vrot.slane %v2810, 4
      %v2813 = vrot.slane %v1996, 5
      %v2814 = vsel %vm1210, %v2812, %v2813
      %v2815 = vrot.slane %v2709, 5
      %v2816 = vrot.slane %v2815, 4
      %v2817 = vrot.slane %v1998, 5
      %v2818 = vsel %vm1210, %v2816, %v2817
      %v2819 = vrot.slane %v2817, 4
      %v2820 = vrot.slane %v1999, 5
      %v2821 = vsel %vm1210, %v2819, %v2820
      %v2822 = vrot.slane %v2710, 5
      %v2823 = vrot.slane %v2822, 4
      %v2824 = vrot.slane %v2001, 5
      %v2825 = vsel %vm1210, %v2823, %v2824
      %v2826 = vrot.slane %v2824, 4
      %v2827 = vrot.slane %v2002, 5
      %v2828 = vsel %vm1210, %v2826, %v2827
      %v2829 = vrot.slane %v2711, 5
      %v2830 = vrot.slane %v2829, 4
      %v2831 = vrot.slane %v2004, 5
      %v2832 = vsel %vm1210, %v2830, %v2831
      %v2833 = vrot.slane %v2831, 4
      %v2834 = vrot.slane %v2005, 5
      %v2835 = vsel %vm1210, %v2833, %v2834
      %v2836 = vrot.slane %v2712, 5
      %v2837 = vrot.slane %v2836, 4
      %v2838 = vrot.slane %v2007, 5
      %v2839 = vsel %vm1210, %v2837, %v2838
      %v2840 = vrot.slane %v2838, 4
      %v2841 = vrot.slane %v2008, 5
      %v2842 = vsel %vm1210, %v2840, %v2841
      %v2843 = vrot.slane %v2713, 5
      %v2844 = vrot.slane %v2843, 4
      %v2845 = vrot.slane %v2010, 5
      %v2846 = vsel %vm1210, %v2844, %v2845
      %v2847 = vrot.slane %v2845, 4
      %v2848 = vrot.slane %v2011, 5
      %v2849 = vsel %vm1210, %v2847, %v2848
      %v2850 = vrot.slane %v2714, 5
      %v2851 = vrot.slane %v2850, 4
      %v2852 = vrot.slane %v2013, 5
      %v2853 = vsel %vm1210, %v2851, %v2852
      %v2854 = vrot.slane %v2852, 4
      %v2855 = vrot.slane %v2014, 5
      %v2856 = vsel %vm1210, %v2854, %v2855
      %v2857 = vrot.slane %v2715, 5
      %v2858 = vrot.slane %v2857, 4
      %v2859 = vrot.slane %v2016, 5
      %v2860 = vsel %vm1210, %v2858, %v2859
      %v2861 = vrot.slane %v2859, 4
      %v2862 = vrot.slane %v2017, 5
      %v2863 = vsel %vm1210, %v2861, %v2862
      %v2864 = vrot.slane %v2716, 5
      %v2865 = vrot.slane %v2864, 4
      %v2866 = vrot.slane %v2019, 5
      %v2867 = vsel %vm1210, %v2865, %v2866
      %v2868 = vrot.slane %v2866, 4
      %v2869 = vrot.slane %v2020, 5
      %v2870 = vsel %vm1210, %v2868, %v2869
      %v2871 = vrot.slane %v2717, 5
      %v2872 = vrot.slane %v2871, 4
      %v2873 = vrot.slane %v2022, 5
      %v2874 = vsel %vm1210, %v2872, %v2873
      %v2875 = vrot.slane %v2873, 4
      %v2876 = vrot.slane %v2023, 5
      %v2877 = vsel %vm1210, %v2875, %v2876
      %s2878 = scalar_lea.vmem %s1, 10
      %v2879 = vld [vmem:[%s2878] sm:$0x3]
      %v2880 = vunpack.c.l.b16 %v2769
      %v2881 = vunpack.c.l.b16 %v2772
      %v2882 = vunpack.c.l.b16 %v2776
      %v2883 = vunpack.c.l.b16 %v2779
      %v2884 = vunpack.c.l.b16 %v2783
      %v2885 = vunpack.c.l.b16 %v2786
      %v2886 = vunpack.c.l.b16 %v2790
      %v2887 = vunpack.c.l.b16 %v2793
      %v2888 = vunpack.c.l.b16 %v2797
      %v2889 = vunpack.c.l.b16 %v2800
      %v2890 = vunpack.c.l.b16 %v2804
      %v2891 = vunpack.c.l.b16 %v2807
      %v2892 = vunpack.c.l.b16 %v2811
      %v2893 = vunpack.c.l.b16 %v2814
      %v2894 = vunpack.c.l.b16 %v2818
      %v2895 = vunpack.c.l.b16 %v2821
      %v2896 = vunpack.c.l.b16 %v2825
      %v2897 = vunpack.c.l.b16 %v2828
      %v2898 = vunpack.c.l.b16 %v2832
      %v2899 = vunpack.c.l.b16 %v2835
      %v2900 = vunpack.c.l.b16 %v2839
      %v2901 = vunpack.c.l.b16 %v2842
      %v2902 = vunpack.c.l.b16 %v2846
      %v2903 = vunpack.c.l.b16 %v2849
      %v2904 = vunpack.c.l.b16 %v2853
      %v2905 = vunpack.c.l.b16 %v2856
      %v2906 = vunpack.c.l.b16 %v2860
      %v2907 = vunpack.c.l.b16 %v2863
      %v2908 = vunpack.c.l.b16 %v2867
      %v2909 = vunpack.c.l.b16 %v2870
      %v2910 = vunpack.c.l.b16 %v2874
      %v2911 = vunpack.c.l.b16 %v2877
      %v2912 = vpack.c.b16 %v2881, %v2880
      %v2913 = vpack.c.b16 %v2883, %v2882
      %v2914 = vpack.c.b16 %v2885, %v2884
      %v2915 = vpack.c.b16 %v2887, %v2886
      %v2916 = vpack.c.b16 %v2889, %v2888
      %v2917 = vpack.c.b16 %v2891, %v2890
      %v2918 = vpack.c.b16 %v2893, %v2892
      %v2919 = vpack.c.b16 %v2895, %v2894
      %v2920 = vpack.c.b16 %v2897, %v2896
      %v2921 = vpack.c.b16 %v2899, %v2898
      %v2922 = vpack.c.b16 %v2901, %v2900
      %v2923 = vpack.c.b16 %v2903, %v2902
      %v2924 = vpack.c.b16 %v2905, %v2904
      %v2925 = vpack.c.b16 %v2907, %v2906
      %v2926 = vpack.c.b16 %v2909, %v2908
      %v2927 = vpack.c.b16 %v2911, %v2910
      %v2929 = vsel %vm654, %v2912, 0
      %v2932 = vsel %vm654, %v2913, 0
      %v2935 = vsel %vm654, %v2914, 0
      %v2938 = vsel %vm654, %v2915, 0
      %v2941 = vsel %vm654, %v2916, 0
      %v2944 = vsel %vm654, %v2917, 0
      %v2947 = vsel %vm654, %v2918, 0
      %v2950 = vsel %vm654, %v2919, 0
      %v2953 = vsel %vm654, %v2920, 0
      %v2956 = vsel %vm654, %v2921, 0
      %v2959 = vsel %vm654, %v2922, 0
      %v2962 = vsel %vm654, %v2923, 0
      %v2965 = vsel %vm654, %v2924, 0
      %v2968 = vsel %vm654, %v2925, 0
      %v2971 = vsel %vm654, %v2926, 0
      %v2974 = vsel %vm654, %v2927, 0
      %v2977 = vsel %vm703, %v2879, 0
      %2979 = vmatprep.subr.bf16.mxu0 0
      %2980 = vmatpush1.bf16.msra.mxu0 %v2977
      %2981 = vmatprep.subr.bf16.mxu0 0
      %2982 = vmatpush1.bf16.msra.mxu0 0
      %2983 = vmatprep.subr.bf16.mxu0 0
      %2984 = vmatpush1.bf16.msra.mxu0 0
      %2985 = vmatprep.subr.bf16.mxu0 0
      %2986 = vmatpush1.bf16.msra.mxu0 0
      %2987 = vmatprep.subr.bf16.mxu0 0
      %2988 = vmatpush1.bf16.msra.mxu0 0
      %2989 = vmatprep.subr.bf16.mxu0 0
      %2990 = vmatpush1.bf16.msra.mxu0 0
      %2991 = vmatprep.subr.bf16.mxu0 0
      %2992 = vmatpush1.bf16.msra.mxu0 0
      %2993 = vmatprep.subr.bf16.mxu0 0
      %2994 = vmatpush1.bf16.msra.mxu0 0
      %2995 = vmatprep.subr.bf16.mxu0 0
      %2996 = vmatpush1.bf16.msra.mxu0 0
      %2997 = vmatprep.subr.bf16.mxu0 0
      %2998 = vmatpush1.bf16.msra.mxu0 0
      %2999 = vmatprep.subr.bf16.mxu0 0
      %3000 = vmatpush1.bf16.msra.mxu0 0
      %3001 = vmatprep.subr.bf16.mxu0 0
      %3002 = vmatpush1.bf16.msra.mxu0 0
      %3003 = vmatprep.subr.bf16.mxu0 0
      %3004 = vmatpush1.bf16.msra.mxu0 0
      %3005 = vmatprep.subr.bf16.mxu0 0
      %3006 = vmatpush1.bf16.msra.mxu0 0
      %3007 = vmatprep.subr.bf16.mxu0 0
      %3008 = vmatpush1.bf16.msra.mxu0 0
      %3009 = vmatprep.subr.bf16.mxu0 0
      %3010 = vmatpush1.bf16.msra.mxu0 0
      %3011 = vmatprep.mubr.bf16.mxu0 0
      %3012 = vmatmul.mubr.bf16.gmra.mrb[0].mxu0 %v2929
      %v3013 = vpop.f32.mrb[0].mxu0
      %v3014 = vadd.f32 0.0, %v3013
      %v3015 = vpop.f32.mrb[0].mxu0
      %v3016 = vpop.f32.mrb[0].mxu0
      %v3017 = vadd.f32 0.0, %v3016
      %v3018 = vpop.f32.mrb[0].mxu0
      %3019 = vmatprep.mubr.bf16.mxu0 0
      %3020 = vmatmul.mubr.bf16.gmra.mrb[0].mxu0 %v2932
      %v3021 = vpop.f32.mrb[0].mxu0
      %v3022 = vadd.f32 0.0, %v3021
      %v3023 = vpop.f32.mrb[0].mxu0
      %v3024 = vpop.f32.mrb[0].mxu0
      %v3025 = vadd.f32 0.0, %v3024
      %v3026 = vpop.f32.mrb[0].mxu0
      %3027 = vmatprep.mubr.bf16.mxu0 0
      %3028 = vmatmul.mubr.bf16.gmra.mrb[0].mxu0 %v2935
      %v3029 = vpop.f32.mrb[0].mxu0
      %v3030 = vadd.f32 0.0, %v3029
      %v3031 = vpop.f32.mrb[0].mxu0
      %v3032 = vpop.f32.mrb[0].mxu0
      %v3033 = vadd.f32 0.0, %v3032
      %v3034 = vpop.f32.mrb[0].mxu0
      %3035 = vmatprep.mubr.bf16.mxu0 0
      %3036 = vmatmul.mubr.bf16.gmra.mrb[0].mxu0 %v2938
      %v3037 = vpop.f32.mrb[0].mxu0
      %v3038 = vadd.f32 0.0, %v3037
      %v3039 = vpop.f32.mrb[0].mxu0
      %v3040 = vpop.f32.mrb[0].mxu0
      %v3041 = vadd.f32 0.0, %v3040
      %v3042 = vpop.f32.mrb[0].mxu0
      %3043 = vmatprep.mubr.bf16.mxu0 0
      %3044 = vmatmul.mubr.bf16.gmra.mrb[0].mxu0 %v2941
      %v3045 = vpop.f32.mrb[0].mxu0
      %v3046 = vadd.f32 0.0, %v3045
      %v3047 = vpop.f32.mrb[0].mxu0
      %v3048 = vpop.f32.mrb[0].mxu0
      %v3049 = vadd.f32 0.0, %v3048
      %v3050 = vpop.f32.mrb[0].mxu0
      %3051 = vmatprep.mubr.bf16.mxu0 0
      %3052 = vmatmul.mubr.bf16.gmra.mrb[0].mxu0 %v2944
      %v3053 = vpop.f32.mrb[0].mxu0
      %v3054 = vadd.f32 0.0, %v3053
      %v3055 = vpop.f32.mrb[0].mxu0
      %v3056 = vpop.f32.mrb[0].mxu0
      %v3057 = vadd.f32 0.0, %v3056
      %v3058 = vpop.f32.mrb[0].mxu0
      %3059 = vmatprep.mubr.bf16.mxu0 0
      %3060 = vmatmul.mubr.bf16.gmra.mrb[0].mxu0 %v2947
      %v3061 = vpop.f32.mrb[0].mxu0
      %v3062 = vadd.f32 0.0, %v3061
      %v3063 = vpop.f32.mrb[0].mxu0
      %v3064 = vpop.f32.mrb[0].mxu0
      %v3065 = vadd.f32 0.0, %v3064
      %v3066 = vpop.f32.mrb[0].mxu0
      %3067 = vmatprep.mubr.bf16.mxu0 0
      %3068 = vmatmul.mubr.bf16.gmra.mrb[0].mxu0 %v2950
      %v3069 = vpop.f32.mrb[0].mxu0
      %v3070 = vadd.f32 0.0, %v3069
      %v3071 = vpop.f32.mrb[0].mxu0
      %v3072 = vpop.f32.mrb[0].mxu0
      %v3073 = vadd.f32 0.0, %v3072
      %v3074 = vpop.f32.mrb[0].mxu0
      %3075 = vmatprep.mubr.bf16.mxu0 0
      %3076 = vmatmul.mubr.bf16.gmra.mrb[0].mxu0 %v2953
      %v3077 = vpop.f32.mrb[0].mxu0
      %v3078 = vadd.f32 0.0, %v3077
      %v3079 = vpop.f32.mrb[0].mxu0
      %v3080 = vpop.f32.mrb[0].mxu0
      %v3081 = vadd.f32 0.0, %v3080
      %v3082 = vpop.f32.mrb[0].mxu0
      %3083 = vmatprep.mubr.bf16.mxu0 0
      %3084 = vmatmul.mubr.bf16.gmra.mrb[0].mxu0 %v2956
      %v3085 = vpop.f32.mrb[0].mxu0
      %v3086 = vadd.f32 0.0, %v3085
      %v3087 = vpop.f32.mrb[0].mxu0
      %v3088 = vpop.f32.mrb[0].mxu0
      %v3089 = vadd.f32 0.0, %v3088
      %v3090 = vpop.f32.mrb[0].mxu0
      %3091 = vmatprep.mubr.bf16.mxu0 0
      %3092 = vmatmul.mubr.bf16.gmra.mrb[0].mxu0 %v2959
      %v3093 = vpop.f32.mrb[0].mxu0
      %v3094 = vadd.f32 0.0, %v3093
      %v3095 = vpop.f32.mrb[0].mxu0
      %v3096 = vpop.f32.mrb[0].mxu0
      %v3097 = vadd.f32 0.0, %v3096
      %v3098 = vpop.f32.mrb[0].mxu0
      %3099 = vmatprep.mubr.bf16.mxu0 0
      %3100 = vmatmul.mubr.bf16.gmra.mrb[0].mxu0 %v2962
      %v3101 = vpop.f32.mrb[0].mxu0
      %v3102 = vadd.f32 0.0, %v3101
      %v3103 = vpop.f32.mrb[0].mxu0
      %v3104 = vpop.f32.mrb[0].mxu0
      %v3105 = vadd.f32 0.0, %v3104
      %v3106 = vpop.f32.mrb[0].mxu0
      %3107 = vmatprep.mubr.bf16.mxu0 0
      %3108 = vmatmul.mubr.bf16.gmra.mrb[0].mxu0 %v2965
      %v3109 = vpop.f32.mrb[0].mxu0
      %v3110 = vadd.f32 0.0, %v3109
      %v3111 = vpop.f32.mrb[0].mxu0
      %v3112 = vpop.f32.mrb[0].mxu0
      %v3113 = vadd.f32 0.0, %v3112
      %v3114 = vpop.f32.mrb[0].mxu0
      %3115 = vmatprep.mubr.bf16.mxu0 0
      %3116 = vmatmul.mubr.bf16.gmra.mrb[0].mxu0 %v2968
      %v3117 = vpop.f32.mrb[0].mxu0
      %v3118 = vadd.f32 0.0, %v3117
      %v3119 = vpop.f32.mrb[0].mxu0
      %v3120 = vpop.f32.mrb[0].mxu0
      %v3121 = vadd.f32 0.0, %v3120
      %v3122 = vpop.f32.mrb[0].mxu0
      %3123 = vmatprep.mubr.bf16.mxu0 0
      %3124 = vmatmul.mubr.bf16.gmra.mrb[0].mxu0 %v2971
      %v3125 = vpop.f32.mrb[0].mxu0
      %v3126 = vadd.f32 0.0, %v3125
      %v3127 = vpop.f32.mrb[0].mxu0
      %v3128 = vpop.f32.mrb[0].mxu0
      %v3129 = vadd.f32 0.0, %v3128
      %v3130 = vpop.f32.mrb[0].mxu0
      %3131 = vmatprep.mubr.bf16.mxu0 0
      %3132 = vmatmul.mubr.bf16.gmra.mrb[0].mxu0 %v2974
      %v3133 = vpop.f32.mrb[0].mxu0
      %v3134 = vadd.f32 0.0, %v3133
      %v3135 = vpop.f32.mrb[0].mxu0
      %v3136 = vpop.f32.mrb[0].mxu0
      %v3137 = vadd.f32 0.0, %v3136
      %v3138 = vpop.f32.mrb[0].mxu0
      %3139 = vdwg.mxu0
      %v3140 = vadd.f32 %v2670, %v3014
      %v3141 = vadd.f32 %v2671, %v3017
      %v3142 = vadd.f32 %v2672, %v3022
      %v3143 = vadd.f32 %v2673, %v3025
      %v3144 = vadd.f32 %v2674, %v3030
      %v3145 = vadd.f32 %v2675, %v3033
      %v3146 = vadd.f32 %v2676, %v3038
      %v3147 = vadd.f32 %v2677, %v3041
      %v3148 = vadd.f32 %v2678, %v3046
      %v3149 = vadd.f32 %v2679, %v3049
      %v3150 = vadd.f32 %v2680, %v3054
      %v3151 = vadd.f32 %v2681, %v3057
      %v3152 = vadd.f32 %v2682, %v3062
      %v3153 = vadd.f32 %v2683, %v3065
      %v3154 = vadd.f32 %v2684, %v3070
      %v3155 = vadd.f32 %v2685, %v3073
      %v3156 = vadd.f32 %v2686, %v3078
      %v3157 = vadd.f32 %v2687, %v3081
      %v3158 = vadd.f32 %v2688, %v3086
      %v3159 = vadd.f32 %v2689, %v3089
      %v3160 = vadd.f32 %v2690, %v3094
      %v3161 = vadd.f32 %v2691, %v3097
      %v3162 = vadd.f32 %v2692, %v3102
      %v3163 = vadd.f32 %v2693, %v3105
      %v3164 = vadd.f32 %v2694, %v3110
      %v3165 = vadd.f32 %v2695, %v3113
      %v3166 = vadd.f32 %v2696, %v3118
      %v3167 = vadd.f32 %v2697, %v3121
      %v3168 = vadd.f32 %v2698, %v3126
      %v3169 = vadd.f32 %v2699, %v3129
      %v3170 = vadd.f32 %v2700, %v3134
      %v3171 = vadd.f32 %v2701, %v3137
      %s3172 = scalar_lea.vmem %s163, 24
      %v3173 = vld [vmem:[%s3172] sm:$0xf]
      %v3174 = vld [vmem:[%s3172 + $0x4] sm:$0xf]
      %v3175 = vld [vmem:[%s3172 + $0xc] sm:$0xf]
      %v3176 = vld [vmem:[%s3172 + $0x10] sm:$0xf]
      %v3177 = vld [vmem:[%s3172 + $0x18] sm:$0xf]
      %v3178 = vld [vmem:[%s3172 + $0x1c] sm:$0xf]
      %v3179 = vld [vmem:[%s3172 + $0x24] sm:$0xf]
      %v3180 = vld [vmem:[%s3172 + $0x28] sm:$0xf]
      %v3181 = vld [vmem:[%s3172 + $0x30] sm:$0xf]
      %v3182 = vld [vmem:[%s3172 + $0x34] sm:$0xf]
      %v3183 = vld [vmem:[%s3172 + $0x3c] sm:$0xf]
      %v3184 = vld [vmem:[%s3172 + $0x40] sm:$0xf]
      %v3185 = vld [vmem:[%s3172 + $0x48] sm:$0xf]
      %v3186 = vld [vmem:[%s3172 + $0x4c] sm:$0xf]
      %v3187 = vld [vmem:[%s3172 + $0x54] sm:$0xf]
      %v3188 = vld [vmem:[%s3172 + $0x58] sm:$0xf]
      %v3189 = vld [vmem:[%s3172 + $0x60] sm:$0xf]
      %v3190 = vld [vmem:[%s3172 + $0x64] sm:$0xf]
      %v3191 = vld [vmem:[%s3172 + $0x6c] sm:$0xf]
      %v3192 = vld [vmem:[%s3172 + $0x70] sm:$0xf]
      %v3193 = vld [vmem:[%s3172 + $0x78] sm:$0xf]
      %v3194 = vld [vmem:[%s3172 + $0x7c] sm:$0xf]
      %v3195 = vld [vmem:[%s3172 + $0x84] sm:$0xf]
      %v3196 = vld [vmem:[%s3172 + $0x88] sm:$0xf]
      %v3197 = vld [vmem:[%s3172 + $0x90] sm:$0xf]
      %v3198 = vld [vmem:[%s3172 + $0x94] sm:$0xf]
      %v3199 = vld [vmem:[%s3172 + $0x9c] sm:$0xf]
      %v3200 = vld [vmem:[%s3172 + $0xa0] sm:$0xf]
      %v3201 = vld [vmem:[%s3172 + $0xa8] sm:$0xf]
      %v3202 = vld [vmem:[%s3172 + $0xac] sm:$0xf]
      %v3203 = vld [vmem:[%s3172 + $0xb4] sm:$0xf]
      %v3204 = vld [vmem:[%s3172 + $0xb8] sm:$0xf]
      %s3205 = scalar_lea.vmem %s1, 12
      %v3206 = vld [vmem:[%s3205] sm:$0x3]
      %v3239 = vunpack.c.l.b16 %v3173
      %v3240 = vunpack.c.l.b16 %v3174
      %v3241 = vunpack.c.l.b16 %v3175
      %v3242 = vunpack.c.l.b16 %v3176
      %v3243 = vunpack.c.l.b16 %v3177
      %v3244 = vunpack.c.l.b16 %v3178
      %v3245 = vunpack.c.l.b16 %v3179
      %v3246 = vunpack.c.l.b16 %v3180
      %v3247 = vunpack.c.l.b16 %v3181
      %v3248 = vunpack.c.l.b16 %v3182
      %v3249 = vunpack.c.l.b16 %v3183
      %v3250 = vunpack.c.l.b16 %v3184
      %v3251 = vunpack.c.l.b16 %v3185
      %v3252 = vunpack.c.l.b16 %v3186
      %v3253 = vunpack.c.l.b16 %v3187
      %v3254 = vunpack.c.l.b16 %v3188
      %v3255 = vunpack.c.l.b16 %v3189
      %v3256 = vunpack.c.l.b16 %v3190
      %v3257 = vunpack.c.l.b16 %v3191
      %v3258 = vunpack.c.l.b16 %v3192
      %v3259 = vunpack.c.l.b16 %v3193
      %v3260 = vunpack.c.l.b16 %v3194
      %v3261 = vunpack.c.l.b16 %v3195
      %v3262 = vunpack.c.l.b16 %v3196
      %v3263 = vunpack.c.l.b16 %v3197
      %v3264 = vunpack.c.l.b16 %v3198
      %v3265 = vunpack.c.l.b16 %v3199
      %v3266 = vunpack.c.l.b16 %v3200
      %v3267 = vunpack.c.l.b16 %v3201
      %v3268 = vunpack.c.l.b16 %v3202
      %v3269 = vunpack.c.l.b16 %v3203
      %v3270 = vunpack.c.l.b16 %v3204
      %v3271 = vpack.c.b16 %v3240, %v3239
      %v3272 = vpack.c.b16 %v3242, %v3241
      %v3273 = vpack.c.b16 %v3244, %v3243
      %v3274 = vpack.c.b16 %v3246, %v3245
      %v3275 = vpack.c.b16 %v3248, %v3247
      %v3276 = vpack.c.b16 %v3250, %v3249
      %v3277 = vpack.c.b16 %v3252, %v3251
      %v3278 = vpack.c.b16 %v3254, %v3253
      %v3279 = vpack.c.b16 %v3256, %v3255
      %v3280 = vpack.c.b16 %v3258, %v3257
      %v3281 = vpack.c.b16 %v3260, %v3259
      %v3282 = vpack.c.b16 %v3262, %v3261
      %v3283 = vpack.c.b16 %v3264, %v3263
      %v3284 = vpack.c.b16 %v3266, %v3265
      %v3285 = vpack.c.b16 %v3268, %v3267
      %v3286 = vpack.c.b16 %v3270, %v3269
      %v3288 = vsel %vm654, %v3271, 0
      %v3291 = vsel %vm654, %v3272, 0
      %v3294 = vsel %vm654, %v3273, 0
      %v3297 = vsel %vm654, %v3274, 0
      %v3300 = vsel %vm654, %v3275, 0
      %v3303 = vsel %vm654, %v3276, 0
      %v3306 = vsel %vm654, %v3277, 0
      %v3309 = vsel %vm654, %v3278, 0
      %v3312 = vsel %vm654, %v3279, 0
      %v3315 = vsel %vm654, %v3280, 0
      %v3318 = vsel %vm654, %v3281, 0
      %v3321 = vsel %vm654, %v3282, 0
      %v3324 = vsel %vm654, %v3283, 0
      %v3327 = vsel %vm654, %v3284, 0
      %v3330 = vsel %vm654, %v3285, 0
      %v3333 = vsel %vm654, %v3286, 0
      %v3336 = vsel %vm703, %v3206, 0
      %3338 = vmatprep.subr.bf16.mxu0 0
      %3339 = vmatpush1.bf16.msra.mxu0 %v3336
      %3340 = vmatprep.subr.bf16.mxu0 0
      %3341 = vmatpush1.bf16.msra.mxu0 0
      %3342 = vmatprep.subr.bf16.mxu0 0
      %3343 = vmatpush1.bf16.msra.mxu0 0
      %3344 = vmatprep.subr.bf16.mxu0 0
      %3345 = vmatpush1.bf16.msra.mxu0 0
      %3346 = vmatprep.subr.bf16.mxu0 0
      %3347 = vmatpush1.bf16.msra.mxu0 0
      %3348 = vmatprep.subr.bf16.mxu0 0
      %3349 = vmatpush1.bf16.msra.mxu0 0
      %3350 = vmatprep.subr.bf16.mxu0 0
      %3351 = vmatpush1.bf16.msra.mxu0 0
      %3352 = vmatprep.subr.bf16.mxu0 0
      %3353 = vmatpush1.bf16.msra.mxu0 0
      %3354 = vmatprep.subr.bf16.mxu0 0
      %3355 = vmatpush1.bf16.msra.mxu0 0
      %3356 = vmatprep.subr.bf16.mxu0 0
      %3357 = vmatpush1.bf16.msra.mxu0 0
      %3358 = vmatprep.subr.bf16.mxu0 0
      %3359 = vmatpush1.bf16.msra.mxu0 0
      %3360 = vmatprep.subr.bf16.mxu0 0
      %3361 = vmatpush1.bf16.msra.mxu0 0
      %3362 = vmatprep.subr.bf16.mxu0 0
      %3363 = vmatpush1.bf16.msra.mxu0 0
      %3364 = vmatprep.subr.bf16.mxu0 0
      %3365 = vmatpush1.bf16.msra.mxu0 0
      %3366 = vmatprep.subr.bf16.mxu0 0
      %3367 = vmatpush1.bf16.msra.mxu0 0
      %3368 = vmatprep.subr.bf16.mxu0 0
      %3369 = vmatpush1.bf16.msra.mxu0 0
      %3370 = vmatprep.mubr.bf16.mxu0 0
      %3371 = vmatmul.mubr.bf16.gmra.mrb[0].mxu0 %v3288
      %v3372 = vpop.f32.mrb[0].mxu0
      %v3373 = vadd.f32 0.0, %v3372
      %v3374 = vpop.f32.mrb[0].mxu0
      %v3375 = vpop.f32.mrb[0].mxu0
      %v3376 = vadd.f32 0.0, %v3375
      %v3377 = vpop.f32.mrb[0].mxu0
      %3378 = vmatprep.mubr.bf16.mxu0 0
      %3379 = vmatmul.mubr.bf16.gmra.mrb[0].mxu0 %v3291
      %v3380 = vpop.f32.mrb[0].mxu0
      %v3381 = vadd.f32 0.0, %v3380
      %v3382 = vpop.f32.mrb[0].mxu0
      %v3383 = vpop.f32.mrb[0].mxu0
      %v3384 = vadd.f32 0.0, %v3383
      %v3385 = vpop.f32.mrb[0].mxu0
      %3386 = vmatprep.mubr.bf16.mxu0 0
      %3387 = vmatmul.mubr.bf16.gmra.mrb[0].mxu0 %v3294
      %v3388 = vpop.f32.mrb[0].mxu0
      %v3389 = vadd.f32 0.0, %v3388
      %v3390 = vpop.f32.mrb[0].mxu0
      %v3391 = vpop.f32.mrb[0].mxu0
      %v3392 = vadd.f32 0.0, %v3391
      %v3393 = vpop.f32.mrb[0].mxu0
      %3394 = vmatprep.mubr.bf16.mxu0 0
      %3395 = vmatmul.mubr.bf16.gmra.mrb[0].mxu0 %v3297
      %v3396 = vpop.f32.mrb[0].mxu0
      %v3397 = vadd.f32 0.0, %v3396
      %v3398 = vpop.f32.mrb[0].mxu0
      %v3399 = vpop.f32.mrb[0].mxu0
      %v3400 = vadd.f32 0.0, %v3399
      %v3401 = vpop.f32.mrb[0].mxu0
      %3402 = vmatprep.mubr.bf16.mxu0 0
      %3403 = vmatmul.mubr.bf16.gmra.mrb[0].mxu0 %v3300
      %v3404 = vpop.f32.mrb[0].mxu0
      %v3405 = vadd.f32 0.0, %v3404
      %v3406 = vpop.f32.mrb[0].mxu0
      %v3407 = vpop.f32.mrb[0].mxu0
      %v3408 = vadd.f32 0.0, %v3407
      %v3409 = vpop.f32.mrb[0].mxu0
      %3410 = vmatprep.mubr.bf16.mxu0 0
      %3411 = vmatmul.mubr.bf16.gmra.mrb[0].mxu0 %v3303
      %v3412 = vpop.f32.mrb[0].mxu0
      %v3413 = vadd.f32 0.0, %v3412
      %v3414 = vpop.f32.mrb[0].mxu0
      %v3415 = vpop.f32.mrb[0].mxu0
      %v3416 = vadd.f32 0.0, %v3415
      %v3417 = vpop.f32.mrb[0].mxu0
      %3418 = vmatprep.mubr.bf16.mxu0 0
      %3419 = vmatmul.mubr.bf16.gmra.mrb[0].mxu0 %v3306
      %v3420 = vpop.f32.mrb[0].mxu0
      %v3421 = vadd.f32 0.0, %v3420
      %v3422 = vpop.f32.mrb[0].mxu0
      %v3423 = vpop.f32.mrb[0].mxu0
      %v3424 = vadd.f32 0.0, %v3423
      %v3425 = vpop.f32.mrb[0].mxu0
      %3426 = vmatprep.mubr.bf16.mxu0 0
      %3427 = vmatmul.mubr.bf16.gmra.mrb[0].mxu0 %v3309
      %v3428 = vpop.f32.mrb[0].mxu0
      %v3429 = vadd.f32 0.0, %v3428
      %v3430 = vpop.f32.mrb[0].mxu0
      %v3431 = vpop.f32.mrb[0].mxu0
      %v3432 = vadd.f32 0.0, %v3431
      %v3433 = vpop.f32.mrb[0].mxu0
      %3434 = vmatprep.mubr.bf16.mxu0 0
      %3435 = vmatmul.mubr.bf16.gmra.mrb[0].mxu0 %v3312
      %v3436 = vpop.f32.mrb[0].mxu0
      %v3437 = vadd.f32 0.0, %v3436
      %v3438 = vpop.f32.mrb[0].mxu0
      %v3439 = vpop.f32.mrb[0].mxu0
      %v3440 = vadd.f32 0.0, %v3439
      %v3441 = vpop.f32.mrb[0].mxu0
      %3442 = vmatprep.mubr.bf16.mxu0 0
      %3443 = vmatmul.mubr.bf16.gmra.mrb[0].mxu0 %v3315
      %v3444 = vpop.f32.mrb[0].mxu0
      %v3445 = vadd.f32 0.0, %v3444
      %v3446 = vpop.f32.mrb[0].mxu0
      %v3447 = vpop.f32.mrb[0].mxu0
      %v3448 = vadd.f32 0.0, %v3447
      %v3449 = vpop.f32.mrb[0].mxu0
      %3450 = vmatprep.mubr.bf16.mxu0 0
      %3451 = vmatmul.mubr.bf16.gmra.mrb[0].mxu0 %v3318
      %v3452 = vpop.f32.mrb[0].mxu0
      %v3453 = vadd.f32 0.0, %v3452
      %v3454 = vpop.f32.mrb[0].mxu0
      %v3455 = vpop.f32.mrb[0].mxu0
      %v3456 = vadd.f32 0.0, %v3455
      %v3457 = vpop.f32.mrb[0].mxu0
      %3458 = vmatprep.mubr.bf16.mxu0 0
      %3459 = vmatmul.mubr.bf16.gmra.mrb[0].mxu0 %v3321
      %v3460 = vpop.f32.mrb[0].mxu0
      %v3461 = vadd.f32 0.0, %v3460
      %v3462 = vpop.f32.mrb[0].mxu0
      %v3463 = vpop.f32.mrb[0].mxu0
      %v3464 = vadd.f32 0.0, %v3463
      %v3465 = vpop.f32.mrb[0].mxu0
      %3466 = vmatprep.mubr.bf16.mxu0 0
      %3467 = vmatmul.mubr.bf16.gmra.mrb[0].mxu0 %v3324
      %v3468 = vpop.f32.mrb[0].mxu0
      %v3469 = vadd.f32 0.0, %v3468
      %v3470 = vpop.f32.mrb[0].mxu0
      %v3471 = vpop.f32.mrb[0].mxu0
      %v3472 = vadd.f32 0.0, %v3471
      %v3473 = vpop.f32.mrb[0].mxu0
      %3474 = vmatprep.mubr.bf16.mxu0 0
      %3475 = vmatmul.mubr.bf16.gmra.mrb[0].mxu0 %v3327
      %v3476 = vpop.f32.mrb[0].mxu0
      %v3477 = vadd.f32 0.0, %v3476
      %v3478 = vpop.f32.mrb[0].mxu0
      %v3479 = vpop.f32.mrb[0].mxu0
      %v3480 = vadd.f32 0.0, %v3479
      %v3481 = vpop.f32.mrb[0].mxu0
      %3482 = vmatprep.mubr.bf16.mxu0 0
      %3483 = vmatmul.mubr.bf16.gmra.mrb[0].mxu0 %v3330
      %v3484 = vpop.f32.mrb[0].mxu0
      %v3485 = vadd.f32 0.0, %v3484
      %v3486 = vpop.f32.mrb[0].mxu0
      %v3487 = vpop.f32.mrb[0].mxu0
      %v3488 = vadd.f32 0.0, %v3487
      %v3489 = vpop.f32.mrb[0].mxu0
      %3490 = vmatprep.mubr.bf16.mxu0 0
      %3491 = vmatmul.mubr.bf16.gmra.mrb[0].mxu0 %v3333
      %v3492 = vpop.f32.mrb[0].mxu0
      %v3493 = vadd.f32 0.0, %v3492
      %v3494 = vpop.f32.mrb[0].mxu0
      %v3495 = vpop.f32.mrb[0].mxu0
      %v3496 = vadd.f32 0.0, %v3495
      %v3497 = vpop.f32.mrb[0].mxu0
      %3498 = vdwg.mxu0
      %v3499 = vadd.f32 %v3140, %v3373
      %v3500 = vadd.f32 %v3141, %v3376
      %v3501 = vadd.f32 %v3142, %v3381
      %v3502 = vadd.f32 %v3143, %v3384
      %v3503 = vadd.f32 %v3144, %v3389
      %v3504 = vadd.f32 %v3145, %v3392
      %v3505 = vadd.f32 %v3146, %v3397
      %v3506 = vadd.f32 %v3147, %v3400
      %v3507 = vadd.f32 %v3148, %v3405
      %v3508 = vadd.f32 %v3149, %v3408
      %v3509 = vadd.f32 %v3150, %v3413
      %v3510 = vadd.f32 %v3151, %v3416
      %v3511 = vadd.f32 %v3152, %v3421
      %v3512 = vadd.f32 %v3153, %v3424
      %v3513 = vadd.f32 %v3154, %v3429
      %v3514 = vadd.f32 %v3155, %v3432
      %v3515 = vadd.f32 %v3156, %v3437
      %v3516 = vadd.f32 %v3157, %v3440
      %v3517 = vadd.f32 %v3158, %v3445
      %v3518 = vadd.f32 %v3159, %v3448
      %v3519 = vadd.f32 %v3160, %v3453
      %v3520 = vadd.f32 %v3161, %v3456
      %v3521 = vadd.f32 %v3162, %v3461
      %v3522 = vadd.f32 %v3163, %v3464
      %v3523 = vadd.f32 %v3164, %v3469
      %v3524 = vadd.f32 %v3165, %v3472
      %v3525 = vadd.f32 %v3166, %v3477
      %v3526 = vadd.f32 %v3167, %v3480
      %v3527 = vadd.f32 %v3168, %v3485
      %v3528 = vadd.f32 %v3169, %v3488
      %v3529 = vadd.f32 %v3170, %v3493
      %v3530 = vadd.f32 %v3171, %v3496
      %v3531 = vld [vmem:[%s3172] sm:$0xf]
      %v3532 = vld [vmem:[%s3172 + $0x4] sm:$0xf]
      %v3533 = vld [vmem:[%s3172 + $0x8] sm:$0x1]
      %v3534 = vld [vmem:[%s3172 + $0xc] sm:$0xf]
      %v3535 = vld [vmem:[%s3172 + $0x10] sm:$0xf]
      %v3536 = vld [vmem:[%s3172 + $0x14] sm:$0x1]
      %v3537 = vld [vmem:[%s3172 + $0x18] sm:$0xf]
      %v3538 = vld [vmem:[%s3172 + $0x1c] sm:$0xf]
      %v3539 = vld [vmem:[%s3172 + $0x20] sm:$0x1]
      %v3540 = vld [vmem:[%s3172 + $0x24] sm:$0xf]
      %v3541 = vld [vmem:[%s3172 + $0x28] sm:$0xf]
      %v3542 = vld [vmem:[%s3172 + $0x2c] sm:$0x1]
      %v3543 = vld [vmem:[%s3172 + $0x30] sm:$0xf]
      %v3544 = vld [vmem:[%s3172 + $0x34] sm:$0xf]
      %v3545 = vld [vmem:[%s3172 + $0x38] sm:$0x1]
      %v3546 = vld [vmem:[%s3172 + $0x3c] sm:$0xf]
      %v3547 = vld [vmem:[%s3172 + $0x40] sm:$0xf]
      %v3548 = vld [vmem:[%s3172 + $0x44] sm:$0x1]
      %v3549 = vld [vmem:[%s3172 + $0x48] sm:$0xf]
      %v3550 = vld [vmem:[%s3172 + $0x4c] sm:$0xf]
      %v3551 = vld [vmem:[%s3172 + $0x50] sm:$0x1]
      %v3552 = vld [vmem:[%s3172 + $0x54] sm:$0xf]
      %v3553 = vld [vmem:[%s3172 + $0x58] sm:$0xf]
      %v3554 = vld [vmem:[%s3172 + $0x5c] sm:$0x1]
      %v3555 = vld [vmem:[%s3172 + $0x60] sm:$0xf]
      %v3556 = vld [vmem:[%s3172 + $0x64] sm:$0xf]
      %v3557 = vld [vmem:[%s3172 + $0x68] sm:$0x1]
      %v3558 = vld [vmem:[%s3172 + $0x6c] sm:$0xf]
      %v3559 = vld [vmem:[%s3172 + $0x70] sm:$0xf]
      %v3560 = vld [vmem:[%s3172 + $0x74] sm:$0x1]
      %v3561 = vld [vmem:[%s3172 + $0x78] sm:$0xf]
      %v3562 = vld [vmem:[%s3172 + $0x7c] sm:$0xf]
      %v3563 = vld [vmem:[%s3172 + $0x80] sm:$0x1]
      %v3564 = vld [vmem:[%s3172 + $0x84] sm:$0xf]
      %v3565 = vld [vmem:[%s3172 + $0x88] sm:$0xf]
      %v3566 = vld [vmem:[%s3172 + $0x8c] sm:$0x1]
      %v3567 = vld [vmem:[%s3172 + $0x90] sm:$0xf]
      %v3568 = vld [vmem:[%s3172 + $0x94] sm:$0xf]
      %v3569 = vld [vmem:[%s3172 + $0x98] sm:$0x1]
      %v3570 = vld [vmem:[%s3172 + $0x9c] sm:$0xf]
      %v3571 = vld [vmem:[%s3172 + $0xa0] sm:$0xf]
      %v3572 = vld [vmem:[%s3172 + $0xa4] sm:$0x1]
      %v3573 = vld [vmem:[%s3172 + $0xa8] sm:$0xf]
      %v3574 = vld [vmem:[%s3172 + $0xac] sm:$0xf]
      %v3575 = vld [vmem:[%s3172 + $0xb0] sm:$0x1]
      %v3576 = vld [vmem:[%s3172 + $0xb4] sm:$0xf]
      %v3577 = vld [vmem:[%s3172 + $0xb8] sm:$0xf]
      %v3578 = vld [vmem:[%s3172 + $0xbc] sm:$0x1]
      %v3580 = vshrl.u32 %v3531, 16
      %v3582 = vrot.slane %v3580, 4
      %v3583 = vshll.u32 %v3531, 16
      %v3585 = vrot.slane %v3583, 5
      %v3586 = vor.u32 %v3582, %v3585
      %v3587 = vrot.slane %v3586, 4
      %v3589 = vshll.u32 %v3532, 16
      %v3591 = vrot.slane %v3589, 5
      %v3592 = vsel %vm219, %v3587, %v3591
      %v3593 = vshrl.u32 %v3532, 16
      %v3595 = vrot.slane %v3593, 4
      %v3596 = vor.u32 %v3595, %v3591
      %v3597 = vrot.slane %v3596, 4
      %v3599 = vshll.u32 %v3533, 16
      %v3601 = vrot.slane %v3599, 5
      %v3602 = vsel %vm219, %v3597, %v3601
      %v3604 = vshrl.u32 %v3534, 16
      %v3606 = vrot.slane %v3604, 4
      %v3607 = vshll.u32 %v3534, 16
      %v3609 = vrot.slane %v3607, 5
      %v3610 = vor.u32 %v3606, %v3609
      %v3611 = vrot.slane %v3610, 4
      %v3613 = vshll.u32 %v3535, 16
      %v3615 = vrot.slane %v3613, 5
      %v3616 = vsel %vm219, %v3611, %v3615
      %v3617 = vshrl.u32 %v3535, 16
      %v3619 = vrot.slane %v3617, 4
      %v3620 = vor.u32 %v3619, %v3615
      %v3621 = vrot.slane %v3620, 4
      %v3623 = vshll.u32 %v3536, 16
      %v3625 = vrot.slane %v3623, 5
      %v3626 = vsel %vm219, %v3621, %v3625
      %v3628 = vshrl.u32 %v3537, 16
      %v3630 = vrot.slane %v3628, 4
      %v3631 = vshll.u32 %v3537, 16
      %v3633 = vrot.slane %v3631, 5
      %v3634 = vor.u32 %v3630, %v3633
      %v3635 = vrot.slane %v3634, 4
      %v3637 = vshll.u32 %v3538, 16
      %v3639 = vrot.slane %v3637, 5
      %v3640 = vsel %vm219, %v3635, %v3639
      %v3641 = vshrl.u32 %v3538, 16
      %v3643 = vrot.slane %v3641, 4
      %v3644 = vor.u32 %v3643, %v3639
      %v3645 = vrot.slane %v3644, 4
      %v3647 = vshll.u32 %v3539, 16
      %v3649 = vrot.slane %v3647, 5
      %v3650 = vsel %vm219, %v3645, %v3649
      %v3652 = vshrl.u32 %v3540, 16
      %v3654 = vrot.slane %v3652, 4
      %v3655 = vshll.u32 %v3540, 16
      %v3657 = vrot.slane %v3655, 5
      %v3658 = vor.u32 %v3654, %v3657
      %v3659 = vrot.slane %v3658, 4
      %v3661 = vshll.u32 %v3541, 16
      %v3663 = vrot.slane %v3661, 5
      %v3664 = vsel %vm219, %v3659, %v3663
      %v3665 = vshrl.u32 %v3541, 16
      %v3667 = vrot.slane %v3665, 4
      %v3668 = vor.u32 %v3667, %v3663
      %v3669 = vrot.slane %v3668, 4
      %v3671 = vshll.u32 %v3542, 16
      %v3673 = vrot.slane %v3671, 5
      %v3674 = vsel %vm219, %v3669, %v3673
      %v3676 = vshrl.u32 %v3543, 16
      %v3678 = vrot.slane %v3676, 4
      %v3679 = vshll.u32 %v3543, 16
      %v3681 = vrot.slane %v3679, 5
      %v3682 = vor.u32 %v3678, %v3681
      %v3683 = vrot.slane %v3682, 4
      %v3685 = vshll.u32 %v3544, 16
      %v3687 = vrot.slane %v3685, 5
      %v3688 = vsel %vm219, %v3683, %v3687
      %v3689 = vshrl.u32 %v3544, 16
      %v3691 = vrot.slane %v3689, 4
      %v3692 = vor.u32 %v3691, %v3687
      %v3693 = vrot.slane %v3692, 4
      %v3695 = vshll.u32 %v3545, 16
      %v3697 = vrot.slane %v3695, 5
      %v3698 = vsel %vm219, %v3693, %v3697
      %v3700 = vshrl.u32 %v3546, 16
      %v3702 = vrot.slane %v3700, 4
      %v3703 = vshll.u32 %v3546, 16
      %v3705 = vrot.slane %v3703, 5
      %v3706 = vor.u32 %v3702, %v3705
      %v3707 = vrot.slane %v3706, 4
      %v3709 = vshll.u32 %v3547, 16
      %v3711 = vrot.slane %v3709, 5
      %v3712 = vsel %vm219, %v3707, %v3711
      %v3713 = vshrl.u32 %v3547, 16
      %v3715 = vrot.slane %v3713, 4
      %v3716 = vor.u32 %v3715, %v3711
      %v3717 = vrot.slane %v3716, 4
      %v3719 = vshll.u32 %v3548, 16
      %v3721 = vrot.slane %v3719, 5
      %v3722 = vsel %vm219, %v3717, %v3721
      %v3724 = vshrl.u32 %v3549, 16
      %v3726 = vrot.slane %v3724, 4
      %v3727 = vshll.u32 %v3549, 16
      %v3729 = vrot.slane %v3727, 5
      %v3730 = vor.u32 %v3726, %v3729
      %v3731 = vrot.slane %v3730, 4
      %v3733 = vshll.u32 %v3550, 16
      %v3735 = vrot.slane %v3733, 5
      %v3736 = vsel %vm219, %v3731, %v3735
      %v3737 = vshrl.u32 %v3550, 16
      %v3739 = vrot.slane %v3737, 4
      %v3740 = vor.u32 %v3739, %v3735
      %v3741 = vrot.slane %v3740, 4
      %v3743 = vshll.u32 %v3551, 16
      %v3745 = vrot.slane %v3743, 5
      %v3746 = vsel %vm219, %v3741, %v3745
      %v3748 = vshrl.u32 %v3552, 16
      %v3750 = vrot.slane %v3748, 4
      %v3751 = vshll.u32 %v3552, 16
      %v3753 = vrot.slane %v3751, 5
      %v3754 = vor.u32 %v3750, %v3753
      %v3755 = vrot.slane %v3754, 4
      %v3757 = vshll.u32 %v3553, 16
      %v3759 = vrot.slane %v3757, 5
      %v3760 = vsel %vm219, %v3755, %v3759
      %v3761 = vshrl.u32 %v3553, 16
      %v3763 = vrot.slane %v3761, 4
      %v3764 = vor.u32 %v3763, %v3759
      %v3765 = vrot.slane %v3764, 4
      %v3767 = vshll.u32 %v3554, 16
      %v3769 = vrot.slane %v3767, 5
      %v3770 = vsel %vm219, %v3765, %v3769
      %v3772 = vshrl.u32 %v3555, 16
      %v3774 = vrot.slane %v3772, 4
      %v3775 = vshll.u32 %v3555, 16
      %v3777 = vrot.slane %v3775, 5
      %v3778 = vor.u32 %v3774, %v3777
      %v3779 = vrot.slane %v3778, 4
      %v3781 = vshll.u32 %v3556, 16
      %v3783 = vrot.slane %v3781, 5
      %v3784 = vsel %vm219, %v3779, %v3783
      %v3785 = vshrl.u32 %v3556, 16
      %v3787 = vrot.slane %v3785, 4
      %v3788 = vor.u32 %v3787, %v3783
      %v3789 = vrot.slane %v3788, 4
      %v3791 = vshll.u32 %v3557, 16
      %v3793 = vrot.slane %v3791, 5
      %v3794 = vsel %vm219, %v3789, %v3793
      %v3796 = vshrl.u32 %v3558, 16
      %v3798 = vrot.slane %v3796, 4
      %v3799 = vshll.u32 %v3558, 16
      %v3801 = vrot.slane %v3799, 5
      %v3802 = vor.u32 %v3798, %v3801
      %v3803 = vrot.slane %v3802, 4
      %v3805 = vshll.u32 %v3559, 16
      %v3807 = vrot.slane %v3805, 5
      %v3808 = vsel %vm219, %v3803, %v3807
      %v3809 = vshrl.u32 %v3559, 16
      %v3811 = vrot.slane %v3809, 4
      %v3812 = vor.u32 %v3811, %v3807
      %v3813 = vrot.slane %v3812, 4
      %v3815 = vshll.u32 %v3560, 16
      %v3817 = vrot.slane %v3815, 5
      %v3818 = vsel %vm219, %v3813, %v3817
      %v3820 = vshrl.u32 %v3561, 16
      %v3822 = vrot.slane %v3820, 4
      %v3823 = vshll.u32 %v3561, 16
      %v3825 = vrot.slane %v3823, 5
      %v3826 = vor.u32 %v3822, %v3825
      %v3827 = vrot.slane %v3826, 4
      %v3829 = vshll.u32 %v3562, 16
      %v3831 = vrot.slane %v3829, 5
      %v3832 = vsel %vm219, %v3827, %v3831
      %v3833 = vshrl.u32 %v3562, 16
      %v3835 = vrot.slane %v3833, 4
      %v3836 = vor.u32 %v3835, %v3831
      %v3837 = vrot.slane %v3836, 4
      %v3839 = vshll.u32 %v3563, 16
      %v3841 = vrot.slane %v3839, 5
      %v3842 = vsel %vm219, %v3837, %v3841
      %v3844 = vshrl.u32 %v3564, 16
      %v3846 = vrot.slane %v3844, 4
      %v3847 = vshll.u32 %v3564, 16
      %v3849 = vrot.slane %v3847, 5
      %v3850 = vor.u32 %v3846, %v3849
      %v3851 = vrot.slane %v3850, 4
      %v3853 = vshll.u32 %v3565, 16
      %v3855 = vrot.slane %v3853, 5
      %v3856 = vsel %vm219, %v3851, %v3855
      %v3857 = vshrl.u32 %v3565, 16
      %v3859 = vrot.slane %v3857, 4
      %v3860 = vor.u32 %v3859, %v3855
      %v3861 = vrot.slane %v3860, 4
      %v3863 = vshll.u32 %v3566, 16
      %v3865 = vrot.slane %v3863, 5
      %v3866 = vsel %vm219, %v3861, %v3865
      %v3868 = vshrl.u32 %v3567, 16
      %v3870 = vrot.slane %v3868, 4
      %v3871 = vshll.u32 %v3567, 16
      %v3873 = vrot.slane %v3871, 5
      %v3874 = vor.u32 %v3870, %v3873
      %v3875 = vrot.slane %v3874, 4
      %v3877 = vshll.u32 %v3568, 16
      %v3879 = vrot.slane %v3877, 5
      %v3880 = vsel %vm219, %v3875, %v3879
      %v3881 = vshrl.u32 %v3568, 16
      %v3883 = vrot.slane %v3881, 4
      %v3884 = vor.u32 %v3883, %v3879
      %v3885 = vrot.slane %v3884, 4
      %v3887 = vshll.u32 %v3569, 16
      %v3889 = vrot.slane %v3887, 5
      %v3890 = vsel %vm219, %v3885, %v3889
      %v3892 = vshrl.u32 %v3570, 16
      %v3894 = vrot.slane %v3892, 4
      %v3895 = vshll.u32 %v3570, 16
      %v3897 = vrot.slane %v3895, 5
      %v3898 = vor.u32 %v3894, %v3897
      %v3899 = vrot.slane %v3898, 4
      %v3901 = vshll.u32 %v3571, 16
      %v3903 = vrot.slane %v3901, 5
      %v3904 = vsel %vm219, %v3899, %v3903
      %v3905 = vshrl.u32 %v3571, 16
      %v3907 = vrot.slane %v3905, 4
      %v3908 = vor.u32 %v3907, %v3903
      %v3909 = vrot.slane %v3908, 4
      %v3911 = vshll.u32 %v3572, 16
      %v3913 = vrot.slane %v3911, 5
      %v3914 = vsel %vm219, %v3909, %v3913
      %v3916 = vshrl.u32 %v3573, 16
      %v3918 = vrot.slane %v3916, 4
      %v3919 = vshll.u32 %v3573, 16
      %v3921 = vrot.slane %v3919, 5
      %v3922 = vor.u32 %v3918, %v3921
      %v3923 = vrot.slane %v3922, 4
      %v3925 = vshll.u32 %v3574, 16
      %v3927 = vrot.slane %v3925, 5
      %v3928 = vsel %vm219, %v3923, %v3927
      %v3929 = vshrl.u32 %v3574, 16
      %v3931 = vrot.slane %v3929, 4
      %v3932 = vor.u32 %v3931, %v3927
      %v3933 = vrot.slane %v3932, 4
      %v3935 = vshll.u32 %v3575, 16
      %v3937 = vrot.slane %v3935, 5
      %v3938 = vsel %vm219, %v3933, %v3937
      %v3940 = vshrl.u32 %v3576, 16
      %v3942 = vrot.slane %v3940, 4
      %v3943 = vshll.u32 %v3576, 16
      %v3945 = vrot.slane %v3943, 5
      %v3946 = vor.u32 %v3942, %v3945
      %v3947 = vrot.slane %v3946, 4
      %v3949 = vshll.u32 %v3577, 16
      %v3951 = vrot.slane %v3949, 5
      %v3952 = vsel %vm219, %v3947, %v3951
      %v3953 = vshrl.u32 %v3577, 16
      %v3955 = vrot.slane %v3953, 4
      %v3956 = vor.u32 %v3955, %v3951
      %v3957 = vrot.slane %v3956, 4
      %v3959 = vshll.u32 %v3578, 16
      %v3961 = vrot.slane %v3959, 5
      %v3962 = vsel %vm219, %v3957, %v3961
      %s3963 = scalar_lea.vmem %s1, 14
      %v3964 = vld [vmem:[%s3963] sm:$0x3]
      %v3965 = vunpack.c.l.b16 %v3592
      %v3966 = vunpack.c.l.b16 %v3602
      %v3967 = vunpack.c.l.b16 %v3616
      %v3968 = vunpack.c.l.b16 %v3626
      %v3969 = vunpack.c.l.b16 %v3640
      %v3970 = vunpack.c.l.b16 %v3650
      %v3971 = vunpack.c.l.b16 %v3664
      %v3972 = vunpack.c.l.b16 %v3674
      %v3973 = vunpack.c.l.b16 %v3688
      %v3974 = vunpack.c.l.b16 %v3698
      %v3975 = vunpack.c.l.b16 %v3712
      %v3976 = vunpack.c.l.b16 %v3722
      %v3977 = vunpack.c.l.b16 %v3736
      %v3978 = vunpack.c.l.b16 %v3746
      %v3979 = vunpack.c.l.b16 %v3760
      %v3980 = vunpack.c.l.b16 %v3770
      %v3981 = vunpack.c.l.b16 %v3784
      %v3982 = vunpack.c.l.b16 %v3794
      %v3983 = vunpack.c.l.b16 %v3808
      %v3984 = vunpack.c.l.b16 %v3818
      %v3985 = vunpack.c.l.b16 %v3832
      %v3986 = vunpack.c.l.b16 %v3842
      %v3987 = vunpack.c.l.b16 %v3856
      %v3988 = vunpack.c.l.b16 %v3866
      %v3989 = vunpack.c.l.b16 %v3880
      %v3990 = vunpack.c.l.b16 %v3890
      %v3991 = vunpack.c.l.b16 %v3904
      %v3992 = vunpack.c.l.b16 %v3914
      %v3993 = vunpack.c.l.b16 %v3928
      %v3994 = vunpack.c.l.b16 %v3938
      %v3995 = vunpack.c.l.b16 %v3952
      %v3996 = vunpack.c.l.b16 %v3962
      %v3997 = vpack.c.b16 %v3966, %v3965
      %v3998 = vpack.c.b16 %v3968, %v3967
      %v3999 = vpack.c.b16 %v3970, %v3969
      %v4000 = vpack.c.b16 %v3972, %v3971
      %v4001 = vpack.c.b16 %v3974, %v3973
      %v4002 = vpack.c.b16 %v3976, %v3975
      %v4003 = vpack.c.b16 %v3978, %v3977
      %v4004 = vpack.c.b16 %v3980, %v3979
      %v4005 = vpack.c.b16 %v3982, %v3981
      %v4006 = vpack.c.b16 %v3984, %v3983
      %v4007 = vpack.c.b16 %v3986, %v3985
      %v4008 = vpack.c.b16 %v3988, %v3987
      %v4009 = vpack.c.b16 %v3990, %v3989
      %v4010 = vpack.c.b16 %v3992, %v3991
      %v4011 = vpack.c.b16 %v3994, %v3993
      %v4012 = vpack.c.b16 %v3996, %v3995
      %v4014 = vsel %vm654, %v3997, 0
      %v4017 = vsel %vm654, %v3998, 0
      %v4020 = vsel %vm654, %v3999, 0
      %v4023 = vsel %vm654, %v4000, 0
      %v4026 = vsel %vm654, %v4001, 0
      %v4029 = vsel %vm654, %v4002, 0
      %v4032 = vsel %vm654, %v4003, 0
      %v4035 = vsel %vm654, %v4004, 0
      %v4038 = vsel %vm654, %v4005, 0
      %v4041 = vsel %vm654, %v4006, 0
      %v4044 = vsel %vm654, %v4007, 0
      %v4047 = vsel %vm654, %v4008, 0
      %v4050 = vsel %vm654, %v4009, 0
      %v4053 = vsel %vm654, %v4010, 0
      %v4056 = vsel %vm654, %v4011, 0
      %v4059 = vsel %vm654, %v4012, 0
      %v4062 = vsel %vm703, %v3964, 0
      %4064 = vmatprep.subr.bf16.mxu0 0
      %4065 = vmatpush1.bf16.msra.mxu0 %v4062
      %4066 = vmatprep.subr.bf16.mxu0 0
      %4067 = vmatpush1.bf16.msra.mxu0 0
      %4068 = vmatprep.subr.bf16.mxu0 0
      %4069 = vmatpush1.bf16.msra.mxu0 0
      %4070 = vmatprep.subr.bf16.mxu0 0
      %4071 = vmatpush1.bf16.msra.mxu0 0
      %4072 = vmatprep.subr.bf16.mxu0 0
      %4073 = vmatpush1.bf16.msra.mxu0 0
      %4074 = vmatprep.subr.bf16.mxu0 0
      %4075 = vmatpush1.bf16.msra.mxu0 0
      %4076 = vmatprep.subr.bf16.mxu0 0
      %4077 = vmatpush1.bf16.msra.mxu0 0
      %4078 = vmatprep.subr.bf16.mxu0 0
      %4079 = vmatpush1.bf16.msra.mxu0 0
      %4080 = vmatprep.subr.bf16.mxu0 0
      %4081 = vmatpush1.bf16.msra.mxu0 0
      %4082 = vmatprep.subr.bf16.mxu0 0
      %4083 = vmatpush1.bf16.msra.mxu0 0
      %4084 = vmatprep.subr.bf16.mxu0 0
      %4085 = vmatpush1.bf16.msra.mxu0 0
      %4086 = vmatprep.subr.bf16.mxu0 0
      %4087 = vmatpush1.bf16.msra.mxu0 0
      %4088 = vmatprep.subr.bf16.mxu0 0
      %4089 = vmatpush1.bf16.msra.mxu0 0
      %4090 = vmatprep.subr.bf16.mxu0 0
      %4091 = vmatpush1.bf16.msra.mxu0 0
      %4092 = vmatprep.subr.bf16.mxu0 0
      %4093 = vmatpush1.bf16.msra.mxu0 0
      %4094 = vmatprep.subr.bf16.mxu0 0
      %4095 = vmatpush1.bf16.msra.mxu0 0
      %4096 = vmatprep.mubr.bf16.mxu0 0
      %4097 = vmatmul.mubr.bf16.gmra.mrb[0].mxu0 %v4014
      %v4098 = vpop.f32.mrb[0].mxu0
      %v4099 = vadd.f32 0.0, %v4098
      %v4100 = vpop.f32.mrb[0].mxu0
      %v4101 = vpop.f32.mrb[0].mxu0
      %v4102 = vadd.f32 0.0, %v4101
      %v4103 = vpop.f32.mrb[0].mxu0
      %4104 = vmatprep.mubr.bf16.mxu0 0
      %4105 = vmatmul.mubr.bf16.gmra.mrb[0].mxu0 %v4017
      %v4106 = vpop.f32.mrb[0].mxu0
      %v4107 = vadd.f32 0.0, %v4106
      %v4108 = vpop.f32.mrb[0].mxu0
      %v4109 = vpop.f32.mrb[0].mxu0
      %v4110 = vadd.f32 0.0, %v4109
      %v4111 = vpop.f32.mrb[0].mxu0
      %4112 = vmatprep.mubr.bf16.mxu0 0
      %4113 = vmatmul.mubr.bf16.gmra.mrb[0].mxu0 %v4020
      %v4114 = vpop.f32.mrb[0].mxu0
      %v4115 = vadd.f32 0.0, %v4114
      %v4116 = vpop.f32.mrb[0].mxu0
      %v4117 = vpop.f32.mrb[0].mxu0
      %v4118 = vadd.f32 0.0, %v4117
      %v4119 = vpop.f32.mrb[0].mxu0
      %4120 = vmatprep.mubr.bf16.mxu0 0
      %4121 = vmatmul.mubr.bf16.gmra.mrb[0].mxu0 %v4023
      %v4122 = vpop.f32.mrb[0].mxu0
      %v4123 = vadd.f32 0.0, %v4122
      %v4124 = vpop.f32.mrb[0].mxu0
      %v4125 = vpop.f32.mrb[0].mxu0
      %v4126 = vadd.f32 0.0, %v4125
      %v4127 = vpop.f32.mrb[0].mxu0
      %4128 = vmatprep.mubr.bf16.mxu0 0
      %4129 = vmatmul.mubr.bf16.gmra.mrb[0].mxu0 %v4026
      %v4130 = vpop.f32.mrb[0].mxu0
      %v4131 = vadd.f32 0.0, %v4130
      %v4132 = vpop.f32.mrb[0].mxu0
      %v4133 = vpop.f32.mrb[0].mxu0
      %v4134 = vadd.f32 0.0, %v4133
      %v4135 = vpop.f32.mrb[0].mxu0
      %4136 = vmatprep.mubr.bf16.mxu0 0
      %4137 = vmatmul.mubr.bf16.gmra.mrb[0].mxu0 %v4029
      %v4138 = vpop.f32.mrb[0].mxu0
      %v4139 = vadd.f32 0.0, %v4138
      %v4140 = vpop.f32.mrb[0].mxu0
      %v4141 = vpop.f32.mrb[0].mxu0
      %v4142 = vadd.f32 0.0, %v4141
      %v4143 = vpop.f32.mrb[0].mxu0
      %4144 = vmatprep.mubr.bf16.mxu0 0
      %4145 = vmatmul.mubr.bf16.gmra.mrb[0].mxu0 %v4032
      %v4146 = vpop.f32.mrb[0].mxu0
      %v4147 = vadd.f32 0.0, %v4146
      %v4148 = vpop.f32.mrb[0].mxu0
      %v4149 = vpop.f32.mrb[0].mxu0
      %v4150 = vadd.f32 0.0, %v4149
      %v4151 = vpop.f32.mrb[0].mxu0
      %4152 = vmatprep.mubr.bf16.mxu0 0
      %4153 = vmatmul.mubr.bf16.gmra.mrb[0].mxu0 %v4035
      %v4154 = vpop.f32.mrb[0].mxu0
      %v4155 = vadd.f32 0.0, %v4154
      %v4156 = vpop.f32.mrb[0].mxu0
      %v4157 = vpop.f32.mrb[0].mxu0
      %v4158 = vadd.f32 0.0, %v4157
      %v4159 = vpop.f32.mrb[0].mxu0
      %4160 = vmatprep.mubr.bf16.mxu0 0
      %4161 = vmatmul.mubr.bf16.gmra.mrb[0].mxu0 %v4038
      %v4162 = vpop.f32.mrb[0].mxu0
      %v4163 = vadd.f32 0.0, %v4162
      %v4164 = vpop.f32.mrb[0].mxu0
      %v4165 = vpop.f32.mrb[0].mxu0
      %v4166 = vadd.f32 0.0, %v4165
      %v4167 = vpop.f32.mrb[0].mxu0
      %4168 = vmatprep.mubr.bf16.mxu0 0
      %4169 = vmatmul.mubr.bf16.gmra.mrb[0].mxu0 %v4041
      %v4170 = vpop.f32.mrb[0].mxu0
      %v4171 = vadd.f32 0.0, %v4170
      %v4172 = vpop.f32.mrb[0].mxu0
      %v4173 = vpop.f32.mrb[0].mxu0
      %v4174 = vadd.f32 0.0, %v4173
      %v4175 = vpop.f32.mrb[0].mxu0
      %4176 = vmatprep.mubr.bf16.mxu0 0
      %4177 = vmatmul.mubr.bf16.gmra.mrb[0].mxu0 %v4044
      %v4178 = vpop.f32.mrb[0].mxu0
      %v4179 = vadd.f32 0.0, %v4178
      %v4180 = vpop.f32.mrb[0].mxu0
      %v4181 = vpop.f32.mrb[0].mxu0
      %v4182 = vadd.f32 0.0, %v4181
      %v4183 = vpop.f32.mrb[0].mxu0
      %4184 = vmatprep.mubr.bf16.mxu0 0
      %4185 = vmatmul.mubr.bf16.gmra.mrb[0].mxu0 %v4047
      %v4186 = vpop.f32.mrb[0].mxu0
      %v4187 = vadd.f32 0.0, %v4186
      %v4188 = vpop.f32.mrb[0].mxu0
      %v4189 = vpop.f32.mrb[0].mxu0
      %v4190 = vadd.f32 0.0, %v4189
      %v4191 = vpop.f32.mrb[0].mxu0
      %4192 = vmatprep.mubr.bf16.mxu0 0
      %4193 = vmatmul.mubr.bf16.gmra.mrb[0].mxu0 %v4050
      %v4194 = vpop.f32.mrb[0].mxu0
      %v4195 = vadd.f32 0.0, %v4194
      %v4196 = vpop.f32.mrb[0].mxu0
      %v4197 = vpop.f32.mrb[0].mxu0
      %v4198 = vadd.f32 0.0, %v4197
      %v4199 = vpop.f32.mrb[0].mxu0
      %4200 = vmatprep.mubr.bf16.mxu0 0
      %4201 = vmatmul.mubr.bf16.gmra.mrb[0].mxu0 %v4053
      %v4202 = vpop.f32.mrb[0].mxu0
      %v4203 = vadd.f32 0.0, %v4202
      %v4204 = vpop.f32.mrb[0].mxu0
      %v4205 = vpop.f32.mrb[0].mxu0
      %v4206 = vadd.f32 0.0, %v4205
      %v4207 = vpop.f32.mrb[0].mxu0
      %4208 = vmatprep.mubr.bf16.mxu0 0
      %4209 = vmatmul.mubr.bf16.gmra.mrb[0].mxu0 %v4056
      %v4210 = vpop.f32.mrb[0].mxu0
      %v4211 = vadd.f32 0.0, %v4210
      %v4212 = vpop.f32.mrb[0].mxu0
      %v4213 = vpop.f32.mrb[0].mxu0
      %v4214 = vadd.f32 0.0, %v4213
      %v4215 = vpop.f32.mrb[0].mxu0
      %4216 = vmatprep.mubr.bf16.mxu0 0
      %4217 = vmatmul.mubr.bf16.gmra.mrb[0].mxu0 %v4059
      %v4218 = vpop.f32.mrb[0].mxu0
      %v4219 = vadd.f32 0.0, %v4218
      %v4220 = vpop.f32.mrb[0].mxu0
      %v4221 = vpop.f32.mrb[0].mxu0
      %v4222 = vadd.f32 0.0, %v4221
      %v4223 = vpop.f32.mrb[0].mxu0
      %4224 = vdwg.mxu0
      %v4225 = vadd.f32 %v3499, %v4099
      %v4226 = vadd.f32 %v3500, %v4102
      %v4227 = vadd.f32 %v3501, %v4107
      %v4228 = vadd.f32 %v3502, %v4110
      %v4229 = vadd.f32 %v3503, %v4115
      %v4230 = vadd.f32 %v3504, %v4118
      %v4231 = vadd.f32 %v3505, %v4123
      %v4232 = vadd.f32 %v3506, %v4126
      %v4233 = vadd.f32 %v3507, %v4131
      %v4234 = vadd.f32 %v3508, %v4134
      %v4235 = vadd.f32 %v3509, %v4139
      %v4236 = vadd.f32 %v3510, %v4142
      %v4237 = vadd.f32 %v3511, %v4147
      %v4238 = vadd.f32 %v3512, %v4150
      %v4239 = vadd.f32 %v3513, %v4155
      %v4240 = vadd.f32 %v3514, %v4158
      %v4241 = vadd.f32 %v3515, %v4163
      %v4242 = vadd.f32 %v3516, %v4166
      %v4243 = vadd.f32 %v3517, %v4171
      %v4244 = vadd.f32 %v3518, %v4174
      %v4245 = vadd.f32 %v3519, %v4179
      %v4246 = vadd.f32 %v3520, %v4182
      %v4247 = vadd.f32 %v3521, %v4187
      %v4248 = vadd.f32 %v3522, %v4190
      %v4249 = vadd.f32 %v3523, %v4195
      %v4250 = vadd.f32 %v3524, %v4198
      %v4251 = vadd.f32 %v3525, %v4203
      %v4252 = vadd.f32 %v3526, %v4206
      %v4253 = vadd.f32 %v3527, %v4211
      %v4254 = vadd.f32 %v3528, %v4214
      %v4255 = vadd.f32 %v3529, %v4219
      %v4256 = vadd.f32 %v3530, %v4222
      %v4257 = vld [vmem:[%s3172] sm:$0xe]
      %v4258 = vld [vmem:[%s3172 + $0xc] sm:$0xe]
      %v4259 = vld [vmem:[%s3172 + $0x18] sm:$0xe]
      %v4260 = vld [vmem:[%s3172 + $0x24] sm:$0xe]
      %v4261 = vld [vmem:[%s3172 + $0x30] sm:$0xe]
      %v4262 = vld [vmem:[%s3172 + $0x3c] sm:$0xe]
      %v4263 = vld [vmem:[%s3172 + $0x48] sm:$0xe]
      %v4264 = vld [vmem:[%s3172 + $0x54] sm:$0xe]
      %v4265 = vld [vmem:[%s3172 + $0x60] sm:$0xe]
      %v4266 = vld [vmem:[%s3172 + $0x6c] sm:$0xe]
      %v4267 = vld [vmem:[%s3172 + $0x78] sm:$0xe]
      %v4268 = vld [vmem:[%s3172 + $0x84] sm:$0xe]
      %v4269 = vld [vmem:[%s3172 + $0x90] sm:$0xe]
      %v4270 = vld [vmem:[%s3172 + $0x9c] sm:$0xe]
      %v4271 = vld [vmem:[%s3172 + $0xa8] sm:$0xe]
      %v4272 = vld [vmem:[%s3172 + $0xb4] sm:$0xe]
      %v4321 = vrot.slane %v4257, 5
      %v4322 = vrot.slane %v4321, 4
      %v4323 = vrot.slane %v3532, 5
      %v4324 = vsel %vm1210, %v4322, %v4323
      %v4325 = vrot.slane %v4323, 4
      %v4326 = vrot.slane %v3533, 5
      %v4327 = vsel %vm1210, %v4325, %v4326
      %v4328 = vrot.slane %v4258, 5
      %v4329 = vrot.slane %v4328, 4
      %v4330 = vrot.slane %v3535, 5
      %v4331 = vsel %vm1210, %v4329, %v4330
      %v4332 = vrot.slane %v4330, 4
      %v4333 = vrot.slane %v3536, 5
      %v4334 = vsel %vm1210, %v4332, %v4333
      %v4335 = vrot.slane %v4259, 5
      %v4336 = vrot.slane %v4335, 4
      %v4337 = vrot.slane %v3538, 5
      %v4338 = vsel %vm1210, %v4336, %v4337
      %v4339 = vrot.slane %v4337, 4
      %v4340 = vrot.slane %v3539, 5
      %v4341 = vsel %vm1210, %v4339, %v4340
      %v4342 = vrot.slane %v4260, 5
      %v4343 = vrot.slane %v4342, 4
      %v4344 = vrot.slane %v3541, 5
      %v4345 = vsel %vm1210, %v4343, %v4344
      %v4346 = vrot.slane %v4344, 4
      %v4347 = vrot.slane %v3542, 5
      %v4348 = vsel %vm1210, %v4346, %v4347
      %v4349 = vrot.slane %v4261, 5
      %v4350 = vrot.slane %v4349, 4
      %v4351 = vrot.slane %v3544, 5
      %v4352 = vsel %vm1210, %v4350, %v4351
      %v4353 = vrot.slane %v4351, 4
      %v4354 = vrot.slane %v3545, 5
      %v4355 = vsel %vm1210, %v4353, %v4354
      %v4356 = vrot.slane %v4262, 5
      %v4357 = vrot.slane %v4356, 4
      %v4358 = vrot.slane %v3547, 5
      %v4359 = vsel %vm1210, %v4357, %v4358
      %v4360 = vrot.slane %v4358, 4
      %v4361 = vrot.slane %v3548, 5
      %v4362 = vsel %vm1210, %v4360, %v4361
      %v4363 = vrot.slane %v4263, 5
      %v4364 = vrot.slane %v4363, 4
      %v4365 = vrot.slane %v3550, 5
      %v4366 = vsel %vm1210, %v4364, %v4365
      %v4367 = vrot.slane %v4365, 4
      %v4368 = vrot.slane %v3551, 5
      %v4369 = vsel %vm1210, %v4367, %v4368
      %v4370 = vrot.slane %v4264, 5
      %v4371 = vrot.slane %v4370, 4
      %v4372 = vrot.slane %v3553, 5
      %v4373 = vsel %vm1210, %v4371, %v4372
      %v4374 = vrot.slane %v4372, 4
      %v4375 = vrot.slane %v3554, 5
      %v4376 = vsel %vm1210, %v4374, %v4375
      %v4377 = vrot.slane %v4265, 5
      %v4378 = vrot.slane %v4377, 4
      %v4379 = vrot.slane %v3556, 5
      %v4380 = vsel %vm1210, %v4378, %v4379
      %v4381 = vrot.slane %v4379, 4
      %v4382 = vrot.slane %v3557, 5
      %v4383 = vsel %vm1210, %v4381, %v4382
      %v4384 = vrot.slane %v4266, 5
      %v4385 = vrot.slane %v4384, 4
      %v4386 = vrot.slane %v3559, 5
      %v4387 = vsel %vm1210, %v4385, %v4386
      %v4388 = vrot.slane %v4386, 4
      %v4389 = vrot.slane %v3560, 5
      %v4390 = vsel %vm1210, %v4388, %v4389
      %v4391 = vrot.slane %v4267, 5
      %v4392 = vrot.slane %v4391, 4
      %v4393 = vrot.slane %v3562, 5
      %v4394 = vsel %vm1210, %v4392, %v4393
      %v4395 = vrot.slane %v4393, 4
      %v4396 = vrot.slane %v3563, 5
      %v4397 = vsel %vm1210, %v4395, %v4396
      %v4398 = vrot.slane %v4268, 5
      %v4399 = vrot.slane %v4398, 4
      %v4400 = vrot.slane %v3565, 5
      %v4401 = vsel %vm1210, %v4399, %v4400
      %v4402 = vrot.slane %v4400, 4
      %v4403 = vrot.slane %v3566, 5
      %v4404 = vsel %vm1210, %v4402, %v4403
      %v4405 = vrot.slane %v4269, 5
      %v4406 = vrot.slane %v4405, 4
      %v4407 = vrot.slane %v3568, 5
      %v4408 = vsel %vm1210, %v4406, %v4407
      %v4409 = vrot.slane %v4407, 4
      %v4410 = vrot.slane %v3569, 5
      %v4411 = vsel %vm1210, %v4409, %v4410
      %v4412 = vrot.slane %v4270, 5
      %v4413 = vrot.slane %v4412, 4
      %v4414 = vrot.slane %v3571, 5
      %v4415 = vsel %vm1210, %v4413, %v4414
      %v4416 = vrot.slane %v4414, 4
      %v4417 = vrot.slane %v3572, 5
      %v4418 = vsel %vm1210, %v4416, %v4417
      %v4419 = vrot.slane %v4271, 5
      %v4420 = vrot.slane %v4419, 4
      %v4421 = vrot.slane %v3574, 5
      %v4422 = vsel %vm1210, %v4420, %v4421
      %v4423 = vrot.slane %v4421, 4
      %v4424 = vrot.slane %v3575, 5
      %v4425 = vsel %vm1210, %v4423, %v4424
      %v4426 = vrot.slane %v4272, 5
      %v4427 = vrot.slane %v4426, 4
      %v4428 = vrot.slane %v3577, 5
      %v4429 = vsel %vm1210, %v4427, %v4428
      %v4430 = vrot.slane %v4428, 4
      %v4431 = vrot.slane %v3578, 5
      %v4432 = vsel %vm1210, %v4430, %v4431
      %s4433 = scalar_lea.vmem %s1, 16
      %v4434 = vld [vmem:[%s4433] sm:$0x3]
      %v4435 = vunpack.c.l.b16 %v4324
      %v4436 = vunpack.c.l.b16 %v4327
      %v4437 = vunpack.c.l.b16 %v4331
      %v4438 = vunpack.c.l.b16 %v4334
      %v4439 = vunpack.c.l.b16 %v4338
      %v4440 = vunpack.c.l.b16 %v4341
      %v4441 = vunpack.c.l.b16 %v4345
      %v4442 = vunpack.c.l.b16 %v4348
      %v4443 = vunpack.c.l.b16 %v4352
      %v4444 = vunpack.c.l.b16 %v4355
      %v4445 = vunpack.c.l.b16 %v4359
      %v4446 = vunpack.c.l.b16 %v4362
      %v4447 = vunpack.c.l.b16 %v4366
      %v4448 = vunpack.c.l.b16 %v4369
      %v4449 = vunpack.c.l.b16 %v4373
      %v4450 = vunpack.c.l.b16 %v4376
      %v4451 = vunpack.c.l.b16 %v4380
      %v4452 = vunpack.c.l.b16 %v4383
      %v4453 = vunpack.c.l.b16 %v4387
      %v4454 = vunpack.c.l.b16 %v4390
      %v4455 = vunpack.c.l.b16 %v4394
      %v4456 = vunpack.c.l.b16 %v4397
      %v4457 = vunpack.c.l.b16 %v4401
      %v4458 = vunpack.c.l.b16 %v4404
      %v4459 = vunpack.c.l.b16 %v4408
      %v4460 = vunpack.c.l.b16 %v4411
      %v4461 = vunpack.c.l.b16 %v4415
      %v4462 = vunpack.c.l.b16 %v4418
      %v4463 = vunpack.c.l.b16 %v4422
      %v4464 = vunpack.c.l.b16 %v4425
      %v4465 = vunpack.c.l.b16 %v4429
      %v4466 = vunpack.c.l.b16 %v4432
      %v4467 = vpack.c.b16 %v4436, %v4435
      %v4468 = vpack.c.b16 %v4438, %v4437
      %v4469 = vpack.c.b16 %v4440, %v4439
      %v4470 = vpack.c.b16 %v4442, %v4441
      %v4471 = vpack.c.b16 %v4444, %v4443
      %v4472 = vpack.c.b16 %v4446, %v4445
      %v4473 = vpack.c.b16 %v4448, %v4447
      %v4474 = vpack.c.b16 %v4450, %v4449
      %v4475 = vpack.c.b16 %v4452, %v4451
      %v4476 = vpack.c.b16 %v4454, %v4453
      %v4477 = vpack.c.b16 %v4456, %v4455
      %v4478 = vpack.c.b16 %v4458, %v4457
      %v4479 = vpack.c.b16 %v4460, %v4459
      %v4480 = vpack.c.b16 %v4462, %v4461
      %v4481 = vpack.c.b16 %v4464, %v4463
      %v4482 = vpack.c.b16 %v4466, %v4465
      %v4484 = vsel %vm654, %v4467, 0
      %v4487 = vsel %vm654, %v4468, 0
      %v4490 = vsel %vm654, %v4469, 0
      %v4493 = vsel %vm654, %v4470, 0
      %v4496 = vsel %vm654, %v4471, 0
      %v4499 = vsel %vm654, %v4472, 0
      %v4502 = vsel %vm654, %v4473, 0
      %v4505 = vsel %vm654, %v4474, 0
      %v4508 = vsel %vm654, %v4475, 0
      %v4511 = vsel %vm654, %v4476, 0
      %v4514 = vsel %vm654, %v4477, 0
      %v4517 = vsel %vm654, %v4478, 0
      %v4520 = vsel %vm654, %v4479, 0
      %v4523 = vsel %vm654, %v4480, 0
      %v4526 = vsel %vm654, %v4481, 0
      %v4529 = vsel %vm654, %v4482, 0
      %v4532 = vsel %vm703, %v4434, 0
      %4534 = vmatprep.subr.bf16.mxu0 0
      %4535 = vmatpush1.bf16.msra.mxu0 %v4532
      %4536 = vmatprep.subr.bf16.mxu0 0
      %4537 = vmatpush1.bf16.msra.mxu0 0
      %4538 = vmatprep.subr.bf16.mxu0 0
      %4539 = vmatpush1.bf16.msra.mxu0 0
      %4540 = vmatprep.subr.bf16.mxu0 0
      %4541 = vmatpush1.bf16.msra.mxu0 0
      %4542 = vmatprep.subr.bf16.mxu0 0
      %4543 = vmatpush1.bf16.msra.mxu0 0
      %4544 = vmatprep.subr.bf16.mxu0 0
      %4545 = vmatpush1.bf16.msra.mxu0 0
      %4546 = vmatprep.subr.bf16.mxu0 0
      %4547 = vmatpush1.bf16.msra.mxu0 0
      %4548 = vmatprep.subr.bf16.mxu0 0
      %4549 = vmatpush1.bf16.msra.mxu0 0
      %4550 = vmatprep.subr.bf16.mxu0 0
      %4551 = vmatpush1.bf16.msra.mxu0 0
      %4552 = vmatprep.subr.bf16.mxu0 0
      %4553 = vmatpush1.bf16.msra.mxu0 0
      %4554 = vmatprep.subr.bf16.mxu0 0
      %4555 = vmatpush1.bf16.msra.mxu0 0
      %4556 = vmatprep.subr.bf16.mxu0 0
      %4557 = vmatpush1.bf16.msra.mxu0 0
      %4558 = vmatprep.subr.bf16.mxu0 0
      %4559 = vmatpush1.bf16.msra.mxu0 0
      %4560 = vmatprep.subr.bf16.mxu0 0
      %4561 = vmatpush1.bf16.msra.mxu0 0
      %4562 = vmatprep.subr.bf16.mxu0 0
      %4563 = vmatpush1.bf16.msra.mxu0 0
      %4564 = vmatprep.subr.bf16.mxu0 0
      %4565 = vmatpush1.bf16.msra.mxu0 0
      %4566 = vmatprep.mubr.bf16.mxu0 0
      %4567 = vmatmul.mubr.bf16.gmra.mrb[0].mxu0 %v4484
      %v4568 = vpop.f32.mrb[0].mxu0
      %v4569 = vadd.f32 0.0, %v4568
      %v4570 = vpop.f32.mrb[0].mxu0
      %v4571 = vpop.f32.mrb[0].mxu0
      %v4572 = vadd.f32 0.0, %v4571
      %v4573 = vpop.f32.mrb[0].mxu0
      %4574 = vmatprep.mubr.bf16.mxu0 0
      %4575 = vmatmul.mubr.bf16.gmra.mrb[0].mxu0 %v4487
      %v4576 = vpop.f32.mrb[0].mxu0
      %v4577 = vadd.f32 0.0, %v4576
      %v4578 = vpop.f32.mrb[0].mxu0
      %v4579 = vpop.f32.mrb[0].mxu0
      %v4580 = vadd.f32 0.0, %v4579
      %v4581 = vpop.f32.mrb[0].mxu0
      %4582 = vmatprep.mubr.bf16.mxu0 0
      %4583 = vmatmul.mubr.bf16.gmra.mrb[0].mxu0 %v4490
      %v4584 = vpop.f32.mrb[0].mxu0
      %v4585 = vadd.f32 0.0, %v4584
      %v4586 = vpop.f32.mrb[0].mxu0
      %v4587 = vpop.f32.mrb[0].mxu0
      %v4588 = vadd.f32 0.0, %v4587
      %v4589 = vpop.f32.mrb[0].mxu0
      %4590 = vmatprep.mubr.bf16.mxu0 0
      %4591 = vmatmul.mubr.bf16.gmra.mrb[0].mxu0 %v4493
      %v4592 = vpop.f32.mrb[0].mxu0
      %v4593 = vadd.f32 0.0, %v4592
      %v4594 = vpop.f32.mrb[0].mxu0
      %v4595 = vpop.f32.mrb[0].mxu0
      %v4596 = vadd.f32 0.0, %v4595
      %v4597 = vpop.f32.mrb[0].mxu0
      %4598 = vmatprep.mubr.bf16.mxu0 0
      %4599 = vmatmul.mubr.bf16.gmra.mrb[0].mxu0 %v4496
      %v4600 = vpop.f32.mrb[0].mxu0
      %v4601 = vadd.f32 0.0, %v4600
      %v4602 = vpop.f32.mrb[0].mxu0
      %v4603 = vpop.f32.mrb[0].mxu0
      %v4604 = vadd.f32 0.0, %v4603
      %v4605 = vpop.f32.mrb[0].mxu0
      %4606 = vmatprep.mubr.bf16.mxu0 0
      %4607 = vmatmul.mubr.bf16.gmra.mrb[0].mxu0 %v4499
      %v4608 = vpop.f32.mrb[0].mxu0
      %v4609 = vadd.f32 0.0, %v4608
      %v4610 = vpop.f32.mrb[0].mxu0
      %v4611 = vpop.f32.mrb[0].mxu0
      %v4612 = vadd.f32 0.0, %v4611
      %v4613 = vpop.f32.mrb[0].mxu0
      %4614 = vmatprep.mubr.bf16.mxu0 0
      %4615 = vmatmul.mubr.bf16.gmra.mrb[0].mxu0 %v4502
      %v4616 = vpop.f32.mrb[0].mxu0
      %v4617 = vadd.f32 0.0, %v4616
      %v4618 = vpop.f32.mrb[0].mxu0
      %v4619 = vpop.f32.mrb[0].mxu0
      %v4620 = vadd.f32 0.0, %v4619
      %v4621 = vpop.f32.mrb[0].mxu0
      %4622 = vmatprep.mubr.bf16.mxu0 0
      %4623 = vmatmul.mubr.bf16.gmra.mrb[0].mxu0 %v4505
      %v4624 = vpop.f32.mrb[0].mxu0
      %v4625 = vadd.f32 0.0, %v4624
      %v4626 = vpop.f32.mrb[0].mxu0
      %v4627 = vpop.f32.mrb[0].mxu0
      %v4628 = vadd.f32 0.0, %v4627
      %v4629 = vpop.f32.mrb[0].mxu0
      %4630 = vmatprep.mubr.bf16.mxu0 0
      %4631 = vmatmul.mubr.bf16.gmra.mrb[0].mxu0 %v4508
      %v4632 = vpop.f32.mrb[0].mxu0
      %v4633 = vadd.f32 0.0, %v4632
      %v4634 = vpop.f32.mrb[0].mxu0
      %v4635 = vpop.f32.mrb[0].mxu0
      %v4636 = vadd.f32 0.0, %v4635
      %v4637 = vpop.f32.mrb[0].mxu0
      %4638 = vmatprep.mubr.bf16.mxu0 0
      %4639 = vmatmul.mubr.bf16.gmra.mrb[0].mxu0 %v4511
      %v4640 = vpop.f32.mrb[0].mxu0
      %v4641 = vadd.f32 0.0, %v4640
      %v4642 = vpop.f32.mrb[0].mxu0
      %v4643 = vpop.f32.mrb[0].mxu0
      %v4644 = vadd.f32 0.0, %v4643
      %v4645 = vpop.f32.mrb[0].mxu0
      %4646 = vmatprep.mubr.bf16.mxu0 0
      %4647 = vmatmul.mubr.bf16.gmra.mrb[0].mxu0 %v4514
      %v4648 = vpop.f32.mrb[0].mxu0
      %v4649 = vadd.f32 0.0, %v4648
      %v4650 = vpop.f32.mrb[0].mxu0
      %v4651 = vpop.f32.mrb[0].mxu0
      %v4652 = vadd.f32 0.0, %v4651
      %v4653 = vpop.f32.mrb[0].mxu0
      %4654 = vmatprep.mubr.bf16.mxu0 0
      %4655 = vmatmul.mubr.bf16.gmra.mrb[0].mxu0 %v4517
      %v4656 = vpop.f32.mrb[0].mxu0
      %v4657 = vadd.f32 0.0, %v4656
      %v4658 = vpop.f32.mrb[0].mxu0
      %v4659 = vpop.f32.mrb[0].mxu0
      %v4660 = vadd.f32 0.0, %v4659
      %v4661 = vpop.f32.mrb[0].mxu0
      %4662 = vmatprep.mubr.bf16.mxu0 0
      %4663 = vmatmul.mubr.bf16.gmra.mrb[0].mxu0 %v4520
      %v4664 = vpop.f32.mrb[0].mxu0
      %v4665 = vadd.f32 0.0, %v4664
      %v4666 = vpop.f32.mrb[0].mxu0
      %v4667 = vpop.f32.mrb[0].mxu0
      %v4668 = vadd.f32 0.0, %v4667
      %v4669 = vpop.f32.mrb[0].mxu0
      %4670 = vmatprep.mubr.bf16.mxu0 0
      %4671 = vmatmul.mubr.bf16.gmra.mrb[0].mxu0 %v4523
      %v4672 = vpop.f32.mrb[0].mxu0
      %v4673 = vadd.f32 0.0, %v4672
      %v4674 = vpop.f32.mrb[0].mxu0
      %v4675 = vpop.f32.mrb[0].mxu0
      %v4676 = vadd.f32 0.0, %v4675
      %v4677 = vpop.f32.mrb[0].mxu0
      %4678 = vmatprep.mubr.bf16.mxu0 0
      %4679 = vmatmul.mubr.bf16.gmra.mrb[0].mxu0 %v4526
      %v4680 = vpop.f32.mrb[0].mxu0
      %v4681 = vadd.f32 0.0, %v4680
      %v4682 = vpop.f32.mrb[0].mxu0
      %v4683 = vpop.f32.mrb[0].mxu0
      %v4684 = vadd.f32 0.0, %v4683
      %v4685 = vpop.f32.mrb[0].mxu0
      %4686 = vmatprep.mubr.bf16.mxu0 0
      %4687 = vmatmul.mubr.bf16.gmra.mrb[0].mxu0 %v4529
      %v4688 = vpop.f32.mrb[0].mxu0
      %v4689 = vadd.f32 0.0, %v4688
      %v4690 = vpop.f32.mrb[0].mxu0
      %v4691 = vpop.f32.mrb[0].mxu0
      %v4692 = vadd.f32 0.0, %v4691
      %v4693 = vpop.f32.mrb[0].mxu0
      %4694 = vdwg.mxu0
      %v4695 = vadd.f32 %v4225, %v4569
      %v4696 = vadd.f32 %v4226, %v4572
      %v4697 = vadd.f32 %v4227, %v4577
      %v4698 = vadd.f32 %v4228, %v4580
      %v4699 = vadd.f32 %v4229, %v4585
      %v4700 = vadd.f32 %v4230, %v4588
      %v4701 = vadd.f32 %v4231, %v4593
      %v4702 = vadd.f32 %v4232, %v4596
      %v4703 = vadd.f32 %v4233, %v4601
      %v4704 = vadd.f32 %v4234, %v4604
      %v4705 = vadd.f32 %v4235, %v4609
      %v4706 = vadd.f32 %v4236, %v4612
      %v4707 = vadd.f32 %v4237, %v4617
      %v4708 = vadd.f32 %v4238, %v4620
      %v4709 = vadd.f32 %v4239, %v4625
      %v4710 = vadd.f32 %v4240, %v4628
      %v4711 = vadd.f32 %v4241, %v4633
      %v4712 = vadd.f32 %v4242, %v4636
      %v4713 = vadd.f32 %v4243, %v4641
      %v4714 = vadd.f32 %v4244, %v4644
      %v4715 = vadd.f32 %v4245, %v4649
      %v4716 = vadd.f32 %v4246, %v4652
      %v4717 = vadd.f32 %v4247, %v4657
      %v4718 = vadd.f32 %v4248, %v4660
      %v4719 = vadd.f32 %v4249, %v4665
      %v4720 = vadd.f32 %v4250, %v4668
      %v4721 = vadd.f32 %v4251, %v4673
      %v4722 = vadd.f32 %v4252, %v4676
      %v4723 = vadd.f32 %v4253, %v4681
      %v4724 = vadd.f32 %v4254, %v4684
      %v4725 = vadd.f32 %v4255, %v4689
      %v4726 = vadd.f32 %v4256, %v4692
      %v4727 = vld [vmem:[%s2] sm:$0x1]
      %v4729 = vlaneseq
      %v4730 = vshrl.u32 %v4729, 7
      %v4731 = vsub.s32 0, %v4730
      %v4732 = vrot.slane %v4727, %v4731
      %v4734 = vadd.f32 %v4695, %v4732
      %v4735 = vadd.f32 %v4696, %v4732
      %v4736 = vadd.f32 %v4697, %v4732
      %v4737 = vadd.f32 %v4698, %v4732
      %v4738 = vadd.f32 %v4699, %v4732
      %v4739 = vadd.f32 %v4700, %v4732
      %v4740 = vadd.f32 %v4701, %v4732
      %v4741 = vadd.f32 %v4702, %v4732
      %v4742 = vadd.f32 %v4703, %v4732
      %v4743 = vadd.f32 %v4704, %v4732
      %v4744 = vadd.f32 %v4705, %v4732
      %v4745 = vadd.f32 %v4706, %v4732
      %v4746 = vadd.f32 %v4707, %v4732
      %v4747 = vadd.f32 %v4708, %v4732
      %v4748 = vadd.f32 %v4709, %v4732
      %v4749 = vadd.f32 %v4710, %v4732
      %v4750 = vadd.f32 %v4711, %v4732
      %v4751 = vadd.f32 %v4712, %v4732
      %v4752 = vadd.f32 %v4713, %v4732
      %v4753 = vadd.f32 %v4714, %v4732
      %v4754 = vadd.f32 %v4715, %v4732
      %v4755 = vadd.f32 %v4716, %v4732
      %v4756 = vadd.f32 %v4717, %v4732
      %v4757 = vadd.f32 %v4718, %v4732
      %v4758 = vadd.f32 %v4719, %v4732
      %v4759 = vadd.f32 %v4720, %v4732
      %v4760 = vadd.f32 %v4721, %v4732
      %v4761 = vadd.f32 %v4722, %v4732
      %v4762 = vadd.f32 %v4723, %v4732
      %v4763 = vadd.f32 %v4724, %v4732
      %v4764 = vadd.f32 %v4725, %v4732
      %v4765 = vadd.f32 %v4726, %v4732
      %v4766 = vmax.f32 %v4734, 0.0
      %v4767 = vmax.f32 %v4735, 0.0
      %v4768 = vmax.f32 %v4736, 0.0
      %v4769 = vmax.f32 %v4737, 0.0
      %v4770 = vmax.f32 %v4738, 0.0
      %v4771 = vmax.f32 %v4739, 0.0
      %v4772 = vmax.f32 %v4740, 0.0
      %v4773 = vmax.f32 %v4741, 0.0
      %v4774 = vmax.f32 %v4742, 0.0
      %v4775 = vmax.f32 %v4743, 0.0
      %v4776 = vmax.f32 %v4744, 0.0
      %v4777 = vmax.f32 %v4745, 0.0
      %v4778 = vmax.f32 %v4746, 0.0
      %v4779 = vmax.f32 %v4747, 0.0
      %v4780 = vmax.f32 %v4748, 0.0
      %v4781 = vmax.f32 %v4749, 0.0
      %v4782 = vmax.f32 %v4750, 0.0
      %v4783 = vmax.f32 %v4751, 0.0
      %v4784 = vmax.f32 %v4752, 0.0
      %v4785 = vmax.f32 %v4753, 0.0
      %v4786 = vmax.f32 %v4754, 0.0
      %v4787 = vmax.f32 %v4755, 0.0
      %v4788 = vmax.f32 %v4756, 0.0
      %v4789 = vmax.f32 %v4757, 0.0
      %v4790 = vmax.f32 %v4758, 0.0
      %v4791 = vmax.f32 %v4759, 0.0
      %v4792 = vmax.f32 %v4760, 0.0
      %v4793 = vmax.f32 %v4761, 0.0
      %v4794 = vmax.f32 %v4762, 0.0
      %v4795 = vmax.f32 %v4763, 0.0
      %v4796 = vmax.f32 %v4764, 0.0
      %v4797 = vmax.f32 %v4765, 0.0
      %4798 = vmatprep.subr.mxu0 0.0
      %4799 = vmatpush1.msra.mxu0 %v4766
      %4800 = vmatprep.subr.mxu0 0.0
      %4801 = vmatpush1.msra.mxu0 %v4767
      %4802 = vmatprep.subr.mxu0 0.0
      %4803 = vmatpush1.msra.mxu0 %v4768
      %4804 = vmatprep.subr.mxu0 0.0
      %4805 = vmatpush1.msra.mxu0 %v4769
      %4806 = vmatprep.subr.mxu0 0.0
      %4807 = vmatpush1.msra.mxu0 %v4770
      %4808 = vmatprep.subr.mxu0 0.0
      %4809 = vmatpush1.msra.mxu0 %v4771
      %4810 = vmatprep.subr.mxu0 0.0
      %4811 = vmatpush1.msra.mxu0 %v4772
      %4812 = vmatprep.subr.mxu0 0.0
      %4813 = vmatpush1.msra.mxu0 %v4773
      %4814 = vmatprep.subr.mxu0 0.0
      %4815 = vmatpush1.msra.mxu0 %v4774
      %4816 = vmatprep.subr.mxu0 0.0
      %4817 = vmatpush1.msra.mxu0 %v4775
      %4818 = vmatprep.subr.mxu0 0.0
      %4819 = vmatpush1.msra.mxu0 %v4776
      %4820 = vmatprep.subr.mxu0 0.0
      %4821 = vmatpush1.msra.mxu0 %v4777
      %4822 = vmatprep.subr.mxu0 0.0
      %4823 = vmatpush1.msra.mxu0 %v4778
      %4824 = vmatprep.subr.mxu0 0.0
      %4825 = vmatpush1.msra.mxu0 %v4779
      %4826 = vmatprep.subr.mxu0 0.0
      %4827 = vmatpush1.msra.mxu0 %v4780
      %4828 = vmatprep.subr.mxu0 0.0
      %4829 = vmatpush1.msra.mxu0 %v4781
      %4830 = vmatprep.subr.mxu0 0.0
      %4831 = vmatpush1.msra.mxu0 %v4782
      %4832 = vmatprep.subr.mxu0 0.0
      %4833 = vmatpush1.msra.mxu0 %v4783
      %4834 = vmatprep.subr.mxu0 0.0
      %4835 = vmatpush1.msra.mxu0 %v4784
      %4836 = vmatprep.subr.mxu0 0.0
      %4837 = vmatpush1.msra.mxu0 %v4785
      %4838 = vmatprep.subr.mxu0 0.0
      %4839 = vmatpush1.msra.mxu0 %v4786
      %4840 = vmatprep.subr.mxu0 0.0
      %4841 = vmatpush1.msra.mxu0 %v4787
      %4842 = vmatprep.subr.mxu0 0.0
      %4843 = vmatpush1.msra.mxu0 %v4788
      %4844 = vmatprep.subr.mxu0 0.0
      %4845 = vmatpush1.msra.mxu0 %v4789
      %4846 = vmatprep.subr.mxu0 0.0
      %4847 = vmatpush1.msra.mxu0 %v4790
      %4848 = vmatprep.subr.mxu0 0.0
      %4849 = vmatpush1.msra.mxu0 %v4791
      %4850 = vmatprep.subr.mxu0 0.0
      %4851 = vmatpush1.msra.mxu0 %v4792
      %4852 = vmatprep.subr.mxu0 0.0
      %4853 = vmatpush1.msra.mxu0 %v4793
      %4854 = vmatprep.subr.mxu0 0.0
      %4855 = vmatpush1.msra.mxu0 %v4794
      %4856 = vmatprep.subr.mxu0 0.0
      %4857 = vmatpush1.msra.mxu0 %v4795
      %4858 = vmatprep.subr.mxu0 0.0
      %4859 = vmatpush1.msra.mxu0 %v4796
      %4860 = vmatprep.subr.mxu0 0.0
      %4861 = vmatpush1.msra.mxu0 %v4797
      %4862 = vmatprep.mubr.f32.mxu0 1.0
      %4863 = vmatmul.mubr.f32.gmra.mrb[0].mxu0 1.0
      %v4864 = vpop.f32.mrb[0].mxu0
      %v4865 = vadd.f32 0.0, %v4864
      %v4866 = vpop.f32.mrb[0].mxu0
      %4867 = vdwg.mxu0
      %v4868 = vmul.f32 %v4865, 0.00390625
      %4869 = vst [vmem:[%s166] sm:$0x1] %v4868
      %p4870 = scmp.lt.s32.totalorder %s14, 1
      %s4871 = scalar_select %p4870, %s14, 1
      %s4872 = scalar_lea.vmem %s3, %s4871
      // Predicated region
      $region33: #{melanoma_net_forward.3} parent=31 // pred_check
        %p4873 = pneg %p100
      $region34: #{melanoma_net_forward.3} parent=31 // pred_check_branch
        %4875 = sbr.rel (%p4873) target = $region36
      $region35: #{melanoma_net_forward.3} parent=31 // pred_region
        _
      $region36: #{melanoma_net_forward.3} parent=31 // pred_fallthru
        _
    $region32: #{melanoma_net_forward.3} parent=5 // pred_fallthru
      _
    %p4876 = scmp.le.s32.totalorder 2, %s9
    // Predicated region
    $region37: #{melanoma_net_forward.3} parent=5 // pred_check
      %p4877 = pneg %p4876
    $region38: #{melanoma_net_forward.3} parent=5 // pred_check_branch
      %4879 = sbr.rel (%p4877) target = $region40
    $region39: #{melanoma_net_forward.3} parent=5 // pred_region
      %s4880 = ssub.s32 %s9, 2
      // Predicated region
      $region41: #{melanoma_net_forward.3} parent=39 // pred_check
        %p4881 = pneg %p106
      $region42: #{melanoma_net_forward.3} parent=39 // pred_check_branch
        %4883 = sbr.rel (%p4881) target = $region44
      $region43: #{melanoma_net_forward.3} parent=39 // pred_region
        %p4884 = scmp.lt.s32.totalorder %s15, 1
        %s4885 = scalar_select %p4884, %s15, 1
        %s4886 = scalar_lea.vmem %s3, %s4885
      $region44: #{melanoma_net_forward.3} parent=39 // pred_fallthru
        _
    $region40: #{melanoma_net_forward.3} parent=5 // pred_fallthru
      _
  $region6: #{melanoma_net_forward.3} parent=0 // loop_footer
    %s13 = sadd.s32 1, %s9
  $region7: #{melanoma_net_forward.3} parent=0 // loop_footer_branch
    %8 = sbr.rel target = $region3
  $region8: #{melanoma_net_forward.3} parent=0 // loop_exit
    _

</llo_original>
